<compile_context>
chip_gen: v5e
topology: v5e:2x2
jax: 0.10.0
libtpu: 0.0.40
codegen_flags: <defaults>
</compile_context>

<pallas_src>
import math

import jax
import jax.numpy as jnp
from jax import lax
from jax.experimental import pallas as pl
from jax.experimental.pallas import tpu as pltpu

THRESH = 1.0
DECAY = 0.5
LANES = 128
CHUNK = 32                       # 128-neuron groups per inner chunk (mem carry ~ 4 vregs)
VMEM_BUDGET = 24 * 1024 * 1024   # budget for pipelined block buffers
VMEM_LIMIT = 48 * 1024 * 1024    # scoped VMEM limit handed to Mosaic
MIN_BLOCK_BYTES = 1 << 20        # don't shrink blocks below ~1 MiB of real data


# ----------------------------------------------------------------------------
# Shared recurrence (runs on lane-dense (cs, 128) slabs, mem stays in vregs).
# ----------------------------------------------------------------------------
def _lif_chunk_recurrence(x_ref, s_ref, c0, cs, *, time_major):
    """LIF recurrence for `cs` neuron groups starting at row `c0`.

    time_major=True : x_ref/s_ref are (T, rows, 128)
    time_major=False: x_ref/s_ref are (rows, T, 128)
    Neurons are lane-dense (last dim = 128) in both layouts.
    """
    lanes = x_ref.shape[-1]
    if time_major:
        T = x_ref.shape[0]
        idx = lambda t: (t, pl.ds(c0, cs), slice(None))
    else:
        T = x_ref.shape[1]
        idx = lambda t: (pl.ds(c0, cs), t, slice(None))

    def step(t, mem):
        # Mirrors the PyTorch loop bit-for-bit:
        #   mem = mem*decay + x_t ; spike = (mem - thresh >= 0) ; mem *= (1 - spike)
        mem = mem * DECAY + x_ref[idx(t)]
        spk = (mem - THRESH >= 0.0).astype(jnp.float32)
        s_ref[idx(t)] = spk
        return mem * (1.0 - spk)

    mem = jnp.zeros((cs, lanes), jnp.float32)
    if T <= 64:
        for t in range(T):            # static unroll: constant indices everywhere
            mem = step(t, mem)
    else:
        lax.fori_loop(0, T, step, mem, unroll=8)


# ----------------------------------------------------------------------------
# Primary kernel: natural (..., T) layout in/out, relayout done on-chip.
# ----------------------------------------------------------------------------
def _lif_fused_kernel(x_ref, o_ref, xt_ref, st_ref):
    """x_ref, o_ref: (rows, 128, T) natural-layout blocks (T on lanes).
    xt_ref, st_ref: (chunk, T, 128) VMEM scratch, neurons lane-dense."""
    rows = x_ref.shape[0]
    chunk = xt_ref.shape[0]
    for c0 in range(0, rows, chunk):          # static chunk loop
        cs = min(chunk, rows - c0)
        sl = pl.ds(c0, cs)
        csl = pl.ds(0, cs)
        # In-VMEM relayout (idle XLU): (cs, 128, T) -> (cs, T, 128).
        xt_ref[csl] = jnp.swapaxes(x_ref[sl], 1, 2)
        _lif_chunk_recurrence(xt_ref, st_ref, 0, cs, time_major=False)
        # Spikes back to the natural layout; one dense block store per chunk.
        o_ref[sl] = jnp.swapaxes(st_ref[csl], 1, 2)


# ----------------------------------------------------------------------------
# Fallback kernel: time-major layout (wrapper does the HBM relayout).
# ----------------------------------------------------------------------------
def _lif_tmajor_kernel(x_ref, o_ref):
    """x_ref, o_ref: (T, rows, 128) blocks."""
    rows = x_ref.shape[1]
    for c0 in range(0, rows, CHUNK):
        cs = min(CHUNK, rows - c0)
        _lif_chunk_recurrence(x_ref, o_ref, c0, cs, time_major=True)


# ----------------------------------------------------------------------------
# Block sizing.
# ----------------------------------------------------------------------------
def _pick_rows(G, row_bytes_vmem, row_bytes_real, budget):
    """128-neuron groups per block: fit the VMEM budget, keep blocks >= ~1 MiB
    of real data, and only then push toward >= 8 grid steps."""
    rows_budget = max(1, budget // row_bytes_vmem)
    rows_min = pl.cdiv(MIN_BLOCK_BYTES, row_bytes_real)
    rows = min(G, rows_budget, max(rows_min, pl.cdiv(G, 8)))
    if G >= 8:
        rows = max(8, (rows // 8) * 8)
    else:
        rows = G
    return int(rows)


# ----------------------------------------------------------------------------
# Wrappers.
# ----------------------------------------------------------------------------
@jax.jit
def _lif_fused(x):
    shape = x.shape
    T = shape[-1]
    N = math.prod(shape[:-1])
    xf = x.astype(jnp.float32).reshape(N, T)      # contiguous reshape: free

    G = pl.cdiv(N, LANES)
    Np = G * LANES
    if Np != N:
        # TODO(synk): this pad (+ matching slice below) costs one extra HBM pass;
        # only taken when the flattened neuron count is not a multiple of 128.
        xf = jnp.pad(xf, ((0, Np - N), (0, 0)))
    x3 = xf.reshape(G, LANES, T)                  # free: row-major split

    # Chunk scratch holds one chunk's full, transposed time series.
    t8 = -(-T // 8) * 8
    chunk = max(8, (min(CHUNK, (4 * 1024 * 1024) // (t8 * LANES * 4)) // 8) * 8)
    scratch_bytes = 2 * chunk * t8 * LANES * 4
    # Natural-layout in/out blocks are lane-padded to 128 on the minor (T) axis.
    t_lanes = -(-T // LANES) * LANES
    row_bytes_vmem = 4 * LANES * t_lanes * 4      # 2 in + 2 out buffers per row
    row_bytes_real = LANES * T * 4
    budget = max(row_bytes_vmem, VMEM_BUDGET - scratch_bytes)
    rows = _pick_rows(G, row_bytes_vmem, row_bytes_real, budget)

    out = pl.pallas_call(
        _lif_fused_kernel,
        out_shape=jax.ShapeDtypeStruct((G, LANES, T), jnp.float32),
        grid_spec=pltpu.PrefetchScalarGridSpec(
            num_scalar_prefetch=0,
            grid=(pl.cdiv(G, rows),),
            in_specs=[pl.BlockSpec((rows, LANES, T), lambda i: (i, 0, 0))],
            out_specs=pl.BlockSpec((rows, LANES, T), lambda i: (i, 0, 0)),
            scratch_shapes=[pltpu.VMEM((chunk, T, LANES), jnp.float32),
                            pltpu.VMEM((chunk, T, LANES), jnp.float32)],
        ),
        compiler_params=pltpu.CompilerParams(
            dimension_semantics=("parallel",),
            vmem_limit_bytes=VMEM_LIMIT,
        ),
    )(x3)

    out = out.reshape(Np, T)
    if Np != N:
        out = out[:N]
    return out.reshape(shape)


@jax.jit
def _lif_tmajor(x):
    """Fallback: XLA transposes to/from a time-major layout around the kernel."""
    shape = x.shape
    T = shape[-1]
    N = math.prod(shape[:-1])
    xf = x.astype(jnp.float32).reshape(N, T)

    G = pl.cdiv(N, LANES)
    Np = G * LANES
    xt = xf.T                                     # (T, N): one XLA relayout pass
    if Np != N:
        xt = jnp.pad(xt, ((0, 0), (0, Np - N)))
    x3 = xt.reshape(T, G, LANES)

    row_bytes = 4 * T * LANES * 4                 # 2 in + 2 out dense buffers per row
    rows = _pick_rows(G, row_bytes, T * LANES * 4, VMEM_BUDGET)

    out = pl.pallas_call(
        _lif_tmajor_kernel,
        out_shape=jax.ShapeDtypeStruct((T, G, LANES), jnp.float32),
        grid_spec=pltpu.PrefetchScalarGridSpec(
            num_scalar_prefetch=0,
            grid=(pl.cdiv(G, rows),),
            in_specs=[pl.BlockSpec((T, rows, LANES), lambda i: (0, i, 0))],
            out_specs=pl.BlockSpec((T, rows, LANES), lambda i: (0, i, 0)),
        ),
        compiler_params=pltpu.CompilerParams(
            dimension_semantics=("parallel",),
            vmem_limit_bytes=VMEM_LIMIT,
        ),
    )(x3)

    out = out.reshape(T, Np)
    if Np != N:
        out = out[:, :N]
    return out.T.reshape(shape)                   # second XLA relayout pass


_LIF_IMPL = None


def lif_forward(x):
    """LIF forward pass: x of shape (..., T) -> float32 spikes, same shape."""
    global _LIF_IMPL
    if _LIF_IMPL is None:
        try:
            out = jax.block_until_ready(_lif_fused(x))
            _LIF_IMPL = _lif_fused
            return out
        except Exception:
            # In-kernel (128, T) <-> (T, 128) relayout not supported by this Mosaic
            # build / shape: fall back to wrapper transposes + time-major kernel.
            _LIF_IMPL = _lif_tmajor
    return _LIF_IMPL(x)


# ----------------------------------------------------------------------------
# Pure-JAX reference mirroring the PyTorch loop.
# ----------------------------------------------------------------------------
def lif_reference(x):
    T = x.shape[-1]
    mem = jnp.zeros(x.shape[:-1], jnp.float32)
    spikes = []
    for t in range(T):
        mem = mem * DECAY + x[..., t]
        spk = (mem - THRESH >= 0).astype(jnp.float32)
        mem = mem * (1.0 - spk)
        spikes.append(spk)
    return jnp.stack(spikes, axis=-1)


if __name__ == "__main__":
    key = jax.random.PRNGKey(0)
    B, C, H, W, T = 2, 4, 16, 16, 8
    x = jax.random.uniform(key, (B, C, H, W, T), jnp.float32, minval=0.0,
                           maxval=2.0)

    out = jax.block_until_ready(lif_forward(x))
    ref = lif_reference(x)

    assert out.shape == x.shape, (out.shape, x.shape)
    assert jnp.array_equal(out, ref), "mismatch vs reference"
    print("KERNEL_OK")
</pallas_src>

<mosaic_0001>
module attributes {stable_mosaic.version = 11 : i64} {
  func.func @_lif_fused_kernel(%arg0: i32, %arg1: memref<16x128x8xf32, #tpu.memory_space<vmem>>, %arg2: memref<16x128x8xf32, #tpu.memory_space<vmem>>, %arg3: memref<32x8x128xf32, #tpu.memory_space<vmem>>, %arg4: memref<32x8x128xf32, #tpu.memory_space<vmem>>) attributes {dimension_semantics = [#tpu.dimension_semantics<parallel>], iteration_bounds = array<i64: 1>, scalar_prefetch = 0 : i64, scratch_operands = 2 : i64, tpu.core_type = #tpu.core_type<tc>, window_params = [{transform_indices = @transform_0, window_bounds = array<i64: 16, 128, 8>}, {transform_indices = @transform_1, window_bounds = array<i64: 16, 128, 8>}]} {
    %c0 = arith.constant 0 : index
    %c0_0 = arith.constant 0 : index
    %c0_1 = arith.constant 0 : index
    %0 = vector.load %arg1[%c0, %c0_0, %c0_1] : memref<16x128x8xf32, #tpu.memory_space<vmem>>, vector<16x128x8xf32>
    %1 = tpu.transpose %0, [0, 2, 1] : vector<16x128x8xf32> -> vector<16x8x128xf32>
    %c0_2 = arith.constant 0 : index
    %c0_3 = arith.constant 0 : index
    %c0_4 = arith.constant 0 : index
    %2 = vector.load %arg3[%c0_2, %c0_3, %c0_4] : memref<32x8x128xf32, #tpu.memory_space<vmem>>, vector<16x8x128xf32>
    tpu.vector_store %arg3[%c0_2, %c0_3, %c0_4], %1 {strides = array<i32>} : memref<32x8x128xf32, #tpu.memory_space<vmem>>, vector<16x8x128xf32>,
    %cst = arith.constant 0.000000e+00 : f32
    %3 = vector.broadcast %cst : f32 to vector<16x128xf32>
    %cst_5 = arith.constant 5.000000e-01 : f32
    %4 = vector.broadcast %cst_5 : f32 to vector<16x128xf32>
    %5 = arith.mulf %3, %4 : vector<16x128xf32>
    %c0_6 = arith.constant 0 : index
    %c0_7 = arith.constant 0 : index
    %c0_8 = arith.constant 0 : index
    %6 = vector.load %arg3[%c0_6, %c0_7, %c0_8] : memref<32x8x128xf32, #tpu.memory_space<vmem>>, vector<16x1x128xf32>
    %7 = vector.shape_cast %6 : vector<16x1x128xf32> to vector<16x128xf32>
    %8 = arith.addf %5, %7 : vector<16x128xf32>
    %cst_9 = arith.constant 1.000000e+00 : f32
    %9 = vector.broadcast %cst_9 : f32 to vector<16x128xf32>
    %10 = arith.subf %8, %9 : vector<16x128xf32>
    %cst_10 = arith.constant 0.000000e+00 : f32
    %11 = vector.broadcast %cst_10 : f32 to vector<16x128xf32>
    %12 = arith.cmpf oge, %10, %11 : vector<16x128xf32>
    %13 = arith.extui %12 : vector<16x128xi1> to vector<16x128xi32>
    %14 = arith.sitofp %13 : vector<16x128xi32> to vector<16x128xf32>
    %c0_11 = arith.constant 0 : index
    %c0_12 = arith.constant 0 : index
    %c0_13 = arith.constant 0 : index
    %15 = vector.load %arg4[%c0_11, %c0_12, %c0_13] : memref<32x8x128xf32, #tpu.memory_space<vmem>>, vector<16x1x128xf32>
    %16 = vector.shape_cast %15 : vector<16x1x128xf32> to vector<16x128xf32>
    %17 = vector.shape_cast %14 : vector<16x128xf32> to vector<16x1x128xf32>
    tpu.vector_store %arg4[%c0_11, %c0_12, %c0_13], %17 {strides = array<i32>} : memref<32x8x128xf32, #tpu.memory_space<vmem>>, vector<16x1x128xf32>,
    %cst_14 = arith.constant 1.000000e+00 : f32
    %18 = vector.broadcast %cst_14 : f32 to vector<16x128xf32>
    %19 = arith.subf %18, %14 : vector<16x128xf32>
    %20 = arith.mulf %8, %19 : vector<16x128xf32>
    %cst_15 = arith.constant 5.000000e-01 : f32
    %21 = vector.broadcast %cst_15 : f32 to vector<16x128xf32>
    %22 = arith.mulf %20, %21 : vector<16x128xf32>
    %c0_16 = arith.constant 0 : index
    %c1 = arith.constant 1 : index
    %c0_17 = arith.constant 0 : index
    %23 = vector.load %arg3[%c0_16, %c1, %c0_17] : memref<32x8x128xf32, #tpu.memory_space<vmem>>, vector<16x1x128xf32>
    %24 = vector.shape_cast %23 : vector<16x1x128xf32> to vector<16x128xf32>
    %25 = arith.addf %22, %24 : vector<16x128xf32>
    %cst_18 = arith.constant 1.000000e+00 : f32
    %26 = vector.broadcast %cst_18 : f32 to vector<16x128xf32>
    %27 = arith.subf %25, %26 : vector<16x128xf32>
    %cst_19 = arith.constant 0.000000e+00 : f32
    %28 = vector.broadcast %cst_19 : f32 to vector<16x128xf32>
    %29 = arith.cmpf oge, %27, %28 : vector<16x128xf32>
    %30 = arith.extui %29 : vector<16x128xi1> to vector<16x128xi32>
    %31 = arith.sitofp %30 : vector<16x128xi32> to vector<16x128xf32>
    %c0_20 = arith.constant 0 : index
    %c1_21 = arith.constant 1 : index
    %c0_22 = arith.constant 0 : index
    %32 = vector.load %arg4[%c0_20, %c1_21, %c0_22] : memref<32x8x128xf32, #tpu.memory_space<vmem>>, vector<16x1x128xf32>
    %33 = vector.shape_cast %32 : vector<16x1x128xf32> to vector<16x128xf32>
    %34 = vector.shape_cast %31 : vector<16x128xf32> to vector<16x1x128xf32>
    tpu.vector_store %arg4[%c0_20, %c1_21, %c0_22], %34 {strides = array<i32>} : memref<32x8x128xf32, #tpu.memory_space<vmem>>, vector<16x1x128xf32>,
    %cst_23 = arith.constant 1.000000e+00 : f32
    %35 = vector.broadcast %cst_23 : f32 to vector<16x128xf32>
    %36 = arith.subf %35, %31 : vector<16x128xf32>
    %37 = arith.mulf %25, %36 : vector<16x128xf32>
    %cst_24 = arith.constant 5.000000e-01 : f32
    %38 = vector.broadcast %cst_24 : f32 to vector<16x128xf32>
    %39 = arith.mulf %37, %38 : vector<16x128xf32>
    %c0_25 = arith.constant 0 : index
    %c2 = arith.constant 2 : index
    %c0_26 = arith.constant 0 : index
    %40 = vector.load %arg3[%c0_25, %c2, %c0_26] : memref<32x8x128xf32, #tpu.memory_space<vmem>>, vector<16x1x128xf32>
    %41 = vector.shape_cast %40 : vector<16x1x128xf32> to vector<16x128xf32>
    %42 = arith.addf %39, %41 : vector<16x128xf32>
    %cst_27 = arith.constant 1.000000e+00 : f32
    %43 = vector.broadcast %cst_27 : f32 to vector<16x128xf32>
    %44 = arith.subf %42, %43 : vector<16x128xf32>
    %cst_28 = arith.constant 0.000000e+00 : f32
    %45 = vector.broadcast %cst_28 : f32 to vector<16x128xf32>
    %46 = arith.cmpf oge, %44, %45 : vector<16x128xf32>
    %47 = arith.extui %46 : vector<16x128xi1> to vector<16x128xi32>
    %48 = arith.sitofp %47 : vector<16x128xi32> to vector<16x128xf32>
    %c0_29 = arith.constant 0 : index
    %c2_30 = arith.constant 2 : index
    %c0_31 = arith.constant 0 : index
    %49 = vector.load %arg4[%c0_29, %c2_30, %c0_31] : memref<32x8x128xf32, #tpu.memory_space<vmem>>, vector<16x1x128xf32>
    %50 = vector.shape_cast %49 : vector<16x1x128xf32> to vector<16x128xf32>
    %51 = vector.shape_cast %48 : vector<16x128xf32> to vector<16x1x128xf32>
    tpu.vector_store %arg4[%c0_29, %c2_30, %c0_31], %51 {strides = array<i32>} : memref<32x8x128xf32, #tpu.memory_space<vmem>>, vector<16x1x128xf32>,
    %cst_32 = arith.constant 1.000000e+00 : f32
    %52 = vector.broadcast %cst_32 : f32 to vector<16x128xf32>
    %53 = arith.subf %52, %48 : vector<16x128xf32>
    %54 = arith.mulf %42, %53 : vector<16x128xf32>
    %cst_33 = arith.constant 5.000000e-01 : f32
    %55 = vector.broadcast %cst_33 : f32 to vector<16x128xf32>
    %56 = arith.mulf %54, %55 : vector<16x128xf32>
    %c0_34 = arith.constant 0 : index
    %c3 = arith.constant 3 : index
    %c0_35 = arith.constant 0 : index
    %57 = vector.load %arg3[%c0_34, %c3, %c0_35] : memref<32x8x128xf32, #tpu.memory_space<vmem>>, vector<16x1x128xf32>
    %58 = vector.shape_cast %57 : vector<16x1x128xf32> to vector<16x128xf32>
    %59 = arith.addf %56, %58 : vector<16x128xf32>
    %cst_36 = arith.constant 1.000000e+00 : f32
    %60 = vector.broadcast %cst_36 : f32 to vector<16x128xf32>
    %61 = arith.subf %59, %60 : vector<16x128xf32>
    %cst_37 = arith.constant 0.000000e+00 : f32
    %62 = vector.broadcast %cst_37 : f32 to vector<16x128xf32>
    %63 = arith.cmpf oge, %61, %62 : vector<16x128xf32>
    %64 = arith.extui %63 : vector<16x128xi1> to vector<16x128xi32>
    %65 = arith.sitofp %64 : vector<16x128xi32> to vector<16x128xf32>
    %c0_38 = arith.constant 0 : index
    %c3_39 = arith.constant 3 : index
    %c0_40 = arith.constant 0 : index
    %66 = vector.load %arg4[%c0_38, %c3_39, %c0_40] : memref<32x8x128xf32, #tpu.memory_space<vmem>>, vector<16x1x128xf32>
    %67 = vector.shape_cast %66 : vector<16x1x128xf32> to vector<16x128xf32>
    %68 = vector.shape_cast %65 : vector<16x128xf32> to vector<16x1x128xf32>
    tpu.vector_store %arg4[%c0_38, %c3_39, %c0_40], %68 {strides = array<i32>} : memref<32x8x128xf32, #tpu.memory_space<vmem>>, vector<16x1x128xf32>,
    %cst_41 = arith.constant 1.000000e+00 : f32
    %69 = vector.broadcast %cst_41 : f32 to vector<16x128xf32>
    %70 = arith.subf %69, %65 : vector<16x128xf32>
    %71 = arith.mulf %59, %70 : vector<16x128xf32>
    %cst_42 = arith.constant 5.000000e-01 : f32
    %72 = vector.broadcast %cst_42 : f32 to vector<16x128xf32>
    %73 = arith.mulf %71, %72 : vector<16x128xf32>
    %c0_43 = arith.constant 0 : index
    %c4 = arith.constant 4 : index
    %c0_44 = arith.constant 0 : index
    %74 = vector.load %arg3[%c0_43, %c4, %c0_44] : memref<32x8x128xf32, #tpu.memory_space<vmem>>, vector<16x1x128xf32>
    %75 = vector.shape_cast %74 : vector<16x1x128xf32> to vector<16x128xf32>
    %76 = arith.addf %73, %75 : vector<16x128xf32>
    %cst_45 = arith.constant 1.000000e+00 : f32
    %77 = vector.broadcast %cst_45 : f32 to vector<16x128xf32>
    %78 = arith.subf %76, %77 : vector<16x128xf32>
    %cst_46 = arith.constant 0.000000e+00 : f32
    %79 = vector.broadcast %cst_46 : f32 to vector<16x128xf32>
    %80 = arith.cmpf oge, %78, %79 : vector<16x128xf32>
    %81 = arith.extui %80 : vector<16x128xi1> to vector<16x128xi32>
    %82 = arith.sitofp %81 : vector<16x128xi32> to vector<16x128xf32>
    %c0_47 = arith.constant 0 : index
    %c4_48 = arith.constant 4 : index
    %c0_49 = arith.constant 0 : index
    %83 = vector.load %arg4[%c0_47, %c4_48, %c0_49] : memref<32x8x128xf32, #tpu.memory_space<vmem>>, vector<16x1x128xf32>
    %84 = vector.shape_cast %83 : vector<16x1x128xf32> to vector<16x128xf32>
    %85 = vector.shape_cast %82 : vector<16x128xf32> to vector<16x1x128xf32>
    tpu.vector_store %arg4[%c0_47, %c4_48, %c0_49], %85 {strides = array<i32>} : memref<32x8x128xf32, #tpu.memory_space<vmem>>, vector<16x1x128xf32>,
    %cst_50 = arith.constant 1.000000e+00 : f32
    %86 = vector.broadcast %cst_50 : f32 to vector<16x128xf32>
    %87 = arith.subf %86, %82 : vector<16x128xf32>
    %88 = arith.mulf %76, %87 : vector<16x128xf32>
    %cst_51 = arith.constant 5.000000e-01 : f32
    %89 = vector.broadcast %cst_51 : f32 to vector<16x128xf32>
    %90 = arith.mulf %88, %89 : vector<16x128xf32>
    %c0_52 = arith.constant 0 : index
    %c5 = arith.constant 5 : index
    %c0_53 = arith.constant 0 : index
    %91 = vector.load %arg3[%c0_52, %c5, %c0_53] : memref<32x8x128xf32, #tpu.memory_space<vmem>>, vector<16x1x128xf32>
    %92 = vector.shape_cast %91 : vector<16x1x128xf32> to vector<16x128xf32>
    %93 = arith.addf %90, %92 : vector<16x128xf32>
    %cst_54 = arith.constant 1.000000e+00 : f32
    %94 = vector.broadcast %cst_54 : f32 to vector<16x128xf32>
    %95 = arith.subf %93, %94 : vector<16x128xf32>
    %cst_55 = arith.constant 0.000000e+00 : f32
    %96 = vector.broadcast %cst_55 : f32 to vector<16x128xf32>
    %97 = arith.cmpf oge, %95, %96 : vector<16x128xf32>
    %98 = arith.extui %97 : vector<16x128xi1> to vector<16x128xi32>
    %99 = arith.sitofp %98 : vector<16x128xi32> to vector<16x128xf32>
    %c0_56 = arith.constant 0 : index
    %c5_57 = arith.constant 5 : index
    %c0_58 = arith.constant 0 : index
    %100 = vector.load %arg4[%c0_56, %c5_57, %c0_58] : memref<32x8x128xf32, #tpu.memory_space<vmem>>, vector<16x1x128xf32>
    %101 = vector.shape_cast %100 : vector<16x1x128xf32> to vector<16x128xf32>
    %102 = vector.shape_cast %99 : vector<16x128xf32> to vector<16x1x128xf32>
    tpu.vector_store %arg4[%c0_56, %c5_57, %c0_58], %102 {strides = array<i32>} : memref<32x8x128xf32, #tpu.memory_space<vmem>>, vector<16x1x128xf32>,
    %cst_59 = arith.constant 1.000000e+00 : f32
    %103 = vector.broadcast %cst_59 : f32 to vector<16x128xf32>
    %104 = arith.subf %103, %99 : vector<16x128xf32>
    %105 = arith.mulf %93, %104 : vector<16x128xf32>
    %cst_60 = arith.constant 5.000000e-01 : f32
    %106 = vector.broadcast %cst_60 : f32 to vector<16x128xf32>
    %107 = arith.mulf %105, %106 : vector<16x128xf32>
    %c0_61 = arith.constant 0 : index
    %c6 = arith.constant 6 : index
    %c0_62 = arith.constant 0 : index
    %108 = vector.load %arg3[%c0_61, %c6, %c0_62] : memref<32x8x128xf32, #tpu.memory_space<vmem>>, vector<16x1x128xf32>
    %109 = vector.shape_cast %108 : vector<16x1x128xf32> to vector<16x128xf32>
    %110 = arith.addf %107, %109 : vector<16x128xf32>
    %cst_63 = arith.constant 1.000000e+00 : f32
    %111 = vector.broadcast %cst_63 : f32 to vector<16x128xf32>
    %112 = arith.subf %110, %111 : vector<16x128xf32>
    %cst_64 = arith.constant 0.000000e+00 : f32
    %113 = vector.broadcast %cst_64 : f32 to vector<16x128xf32>
    %114 = arith.cmpf oge, %112, %113 : vector<16x128xf32>
    %115 = arith.extui %114 : vector<16x128xi1> to vector<16x128xi32>
    %116 = arith.sitofp %115 : vector<16x128xi32> to vector<16x128xf32>
    %c0_65 = arith.constant 0 : index
    %c6_66 = arith.constant 6 : index
    %c0_67 = arith.constant 0 : index
    %117 = vector.load %arg4[%c0_65, %c6_66, %c0_67] : memref<32x8x128xf32, #tpu.memory_space<vmem>>, vector<16x1x128xf32>
    %118 = vector.shape_cast %117 : vector<16x1x128xf32> to vector<16x128xf32>
    %119 = vector.shape_cast %116 : vector<16x128xf32> to vector<16x1x128xf32>
    tpu.vector_store %arg4[%c0_65, %c6_66, %c0_67], %119 {strides = array<i32>} : memref<32x8x128xf32, #tpu.memory_space<vmem>>, vector<16x1x128xf32>,
    %cst_68 = arith.constant 1.000000e+00 : f32
    %120 = vector.broadcast %cst_68 : f32 to vector<16x128xf32>
    %121 = arith.subf %120, %116 : vector<16x128xf32>
    %122 = arith.mulf %110, %121 : vector<16x128xf32>
    %cst_69 = arith.constant 5.000000e-01 : f32
    %123 = vector.broadcast %cst_69 : f32 to vector<16x128xf32>
    %124 = arith.mulf %122, %123 : vector<16x128xf32>
    %c0_70 = arith.constant 0 : index
    %c7 = arith.constant 7 : index
    %c0_71 = arith.constant 0 : index
    %125 = vector.load %arg3[%c0_70, %c7, %c0_71] : memref<32x8x128xf32, #tpu.memory_space<vmem>>, vector<16x1x128xf32>
    %126 = vector.shape_cast %125 : vector<16x1x128xf32> to vector<16x128xf32>
    %127 = arith.addf %124, %126 : vector<16x128xf32>
    %cst_72 = arith.constant 1.000000e+00 : f32
    %128 = vector.broadcast %cst_72 : f32 to vector<16x128xf32>
    %129 = arith.subf %127, %128 : vector<16x128xf32>
    %cst_73 = arith.constant 0.000000e+00 : f32
    %130 = vector.broadcast %cst_73 : f32 to vector<16x128xf32>
    %131 = arith.cmpf oge, %129, %130 : vector<16x128xf32>
    %132 = arith.extui %131 : vector<16x128xi1> to vector<16x128xi32>
    %133 = arith.sitofp %132 : vector<16x128xi32> to vector<16x128xf32>
    %c0_74 = arith.constant 0 : index
    %c7_75 = arith.constant 7 : index
    %c0_76 = arith.constant 0 : index
    %134 = vector.load %arg4[%c0_74, %c7_75, %c0_76] : memref<32x8x128xf32, #tpu.memory_space<vmem>>, vector<16x1x128xf32>
    %135 = vector.shape_cast %134 : vector<16x1x128xf32> to vector<16x128xf32>
    %136 = vector.shape_cast %133 : vector<16x128xf32> to vector<16x1x128xf32>
    tpu.vector_store %arg4[%c0_74, %c7_75, %c0_76], %136 {strides = array<i32>} : memref<32x8x128xf32, #tpu.memory_space<vmem>>, vector<16x1x128xf32>,
    %c0_77 = arith.constant 0 : index
    %c0_78 = arith.constant 0 : index
    %c0_79 = arith.constant 0 : index
    %137 = vector.load %arg4[%c0_77, %c0_78, %c0_79] : memref<32x8x128xf32, #tpu.memory_space<vmem>>, vector<16x8x128xf32>
    %138 = tpu.transpose %137, [0, 2, 1] : vector<16x8x128xf32> -> vector<16x128x8xf32>
    %c0_80 = arith.constant 0 : index
    %c0_81 = arith.constant 0 : index
    %c0_82 = arith.constant 0 : index
    %139 = vector.load %arg2[%c0_80, %c0_81, %c0_82] : memref<16x128x8xf32, #tpu.memory_space<vmem>>, vector<16x128x8xf32>
    tpu.vector_store %arg2[%c0_80, %c0_81, %c0_82], %138 {strides = array<i32>} : memref<16x128x8xf32, #tpu.memory_space<vmem>>, vector<16x128x8xf32>,
    return
  }
  func.func @transform_0(%arg0: i32) -> (i32, i32, i32) {
    %c0_i32 = arith.constant 0 : i32
    %c0_i32_0 = arith.constant 0 : i32
    %c0_i32_1 = arith.constant 0 : i32
    return %arg0, %c0_i32, %c0_i32_0 : i32, i32, i32
  }
  func.func @transform_1(%arg0: i32) -> (i32, i32, i32) {
    %c0_i32 = arith.constant 0 : i32
    %c0_i32_0 = arith.constant 0 : i32
    %c0_i32_1 = arith.constant 0 : i32
    return %arg0, %c0_i32, %c0_i32_0 : i32, i32, i32
  }
}

module attributes {stable_mosaic.version = 11 : i64} {
  func.func @_lif_tmajor_kernel(%arg0: i32, %arg1: memref<8x16x128xf32, #tpu.memory_space<vmem>>, %arg2: memref<8x16x128xf32, #tpu.memory_space<vmem>>) attributes {dimension_semantics = [#tpu.dimension_semantics<parallel>], iteration_bounds = array<i64: 1>, scalar_prefetch = 0 : i64, scratch_operands = 0 : i64, tpu.core_type = #tpu.core_type<tc>, window_params = [{transform_indices = @transform_0, window_bounds = array<i64: 8, 16, 128>}, {transform_indices = @transform_1, window_bounds = array<i64: 8, 16, 128>}]} {
    %cst = arith.constant 0.000000e+00 : f32
    %0 = vector.broadcast %cst : f32 to vector<16x128xf32>
    %cst_0 = arith.constant 5.000000e-01 : f32
    %1 = vector.broadcast %cst_0 : f32 to vector<16x128xf32>
    %2 = arith.mulf %0, %1 : vector<16x128xf32>
    %c0 = arith.constant 0 : index
    %c0_1 = arith.constant 0 : index
    %c0_2 = arith.constant 0 : index
    %3 = vector.load %arg1[%c0, %c0_1, %c0_2] : memref<8x16x128xf32, #tpu.memory_space<vmem>>, vector<1x16x128xf32>
    %4 = vector.shape_cast %3 : vector<1x16x128xf32> to vector<16x128xf32>
    %5 = arith.addf %2, %4 : vector<16x128xf32>
    %cst_3 = arith.constant 1.000000e+00 : f32
    %6 = vector.broadcast %cst_3 : f32 to vector<16x128xf32>
    %7 = arith.subf %5, %6 : vector<16x128xf32>
    %cst_4 = arith.constant 0.000000e+00 : f32
    %8 = vector.broadcast %cst_4 : f32 to vector<16x128xf32>
    %9 = arith.cmpf oge, %7, %8 : vector<16x128xf32>
    %10 = arith.extui %9 : vector<16x128xi1> to vector<16x128xi32>
    %11 = arith.sitofp %10 : vector<16x128xi32> to vector<16x128xf32>
    %c0_5 = arith.constant 0 : index
    %c0_6 = arith.constant 0 : index
    %c0_7 = arith.constant 0 : index
    %12 = vector.load %arg2[%c0_5, %c0_6, %c0_7] : memref<8x16x128xf32, #tpu.memory_space<vmem>>, vector<1x16x128xf32>
    %13 = vector.shape_cast %12 : vector<1x16x128xf32> to vector<16x128xf32>
    %14 = vector.shape_cast %11 : vector<16x128xf32> to vector<1x16x128xf32>
    tpu.vector_store %arg2[%c0_5, %c0_6, %c0_7], %14 {strides = array<i32>} : memref<8x16x128xf32, #tpu.memory_space<vmem>>, vector<1x16x128xf32>,
    %cst_8 = arith.constant 1.000000e+00 : f32
    %15 = vector.broadcast %cst_8 : f32 to vector<16x128xf32>
    %16 = arith.subf %15, %11 : vector<16x128xf32>
    %17 = arith.mulf %5, %16 : vector<16x128xf32>
    %cst_9 = arith.constant 5.000000e-01 : f32
    %18 = vector.broadcast %cst_9 : f32 to vector<16x128xf32>
    %19 = arith.mulf %17, %18 : vector<16x128xf32>
    %c1 = arith.constant 1 : index
    %c0_10 = arith.constant 0 : index
    %c0_11 = arith.constant 0 : index
    %20 = vector.load %arg1[%c1, %c0_10, %c0_11] : memref<8x16x128xf32, #tpu.memory_space<vmem>>, vector<1x16x128xf32>
    %21 = vector.shape_cast %20 : vector<1x16x128xf32> to vector<16x128xf32>
    %22 = arith.addf %19, %21 : vector<16x128xf32>
    %cst_12 = arith.constant 1.000000e+00 : f32
    %23 = vector.broadcast %cst_12 : f32 to vector<16x128xf32>
    %24 = arith.subf %22, %23 : vector<16x128xf32>
    %cst_13 = arith.constant 0.000000e+00 : f32
    %25 = vector.broadcast %cst_13 : f32 to vector<16x128xf32>
    %26 = arith.cmpf oge, %24, %25 : vector<16x128xf32>
    %27 = arith.extui %26 : vector<16x128xi1> to vector<16x128xi32>
    %28 = arith.sitofp %27 : vector<16x128xi32> to vector<16x128xf32>
    %c1_14 = arith.constant 1 : index
    %c0_15 = arith.constant 0 : index
    %c0_16 = arith.constant 0 : index
    %29 = vector.load %arg2[%c1_14, %c0_15, %c0_16] : memref<8x16x128xf32, #tpu.memory_space<vmem>>, vector<1x16x128xf32>
    %30 = vector.shape_cast %29 : vector<1x16x128xf32> to vector<16x128xf32>
    %31 = vector.shape_cast %28 : vector<16x128xf32> to vector<1x16x128xf32>
    tpu.vector_store %arg2[%c1_14, %c0_15, %c0_16], %31 {strides = array<i32>} : memref<8x16x128xf32, #tpu.memory_space<vmem>>, vector<1x16x128xf32>,
    %cst_17 = arith.constant 1.000000e+00 : f32
    %32 = vector.broadcast %cst_17 : f32 to vector<16x128xf32>
    %33 = arith.subf %32, %28 : vector<16x128xf32>
    %34 = arith.mulf %22, %33 : vector<16x128xf32>
    %cst_18 = arith.constant 5.000000e-01 : f32
    %35 = vector.broadcast %cst_18 : f32 to vector<16x128xf32>
    %36 = arith.mulf %34, %35 : vector<16x128xf32>
    %c2 = arith.constant 2 : index
    %c0_19 = arith.constant 0 : index
    %c0_20 = arith.constant 0 : index
    %37 = vector.load %arg1[%c2, %c0_19, %c0_20] : memref<8x16x128xf32, #tpu.memory_space<vmem>>, vector<1x16x128xf32>
    %38 = vector.shape_cast %37 : vector<1x16x128xf32> to vector<16x128xf32>
    %39 = arith.addf %36, %38 : vector<16x128xf32>
    %cst_21 = arith.constant 1.000000e+00 : f32
    %40 = vector.broadcast %cst_21 : f32 to vector<16x128xf32>
    %41 = arith.subf %39, %40 : vector<16x128xf32>
    %cst_22 = arith.constant 0.000000e+00 : f32
    %42 = vector.broadcast %cst_22 : f32 to vector<16x128xf32>
    %43 = arith.cmpf oge, %41, %42 : vector<16x128xf32>
    %44 = arith.extui %43 : vector<16x128xi1> to vector<16x128xi32>
    %45 = arith.sitofp %44 : vector<16x128xi32> to vector<16x128xf32>
    %c2_23 = arith.constant 2 : index
    %c0_24 = arith.constant 0 : index
    %c0_25 = arith.constant 0 : index
    %46 = vector.load %arg2[%c2_23, %c0_24, %c0_25] : memref<8x16x128xf32, #tpu.memory_space<vmem>>, vector<1x16x128xf32>
    %47 = vector.shape_cast %46 : vector<1x16x128xf32> to vector<16x128xf32>
    %48 = vector.shape_cast %45 : vector<16x128xf32> to vector<1x16x128xf32>
    tpu.vector_store %arg2[%c2_23, %c0_24, %c0_25], %48 {strides = array<i32>} : memref<8x16x128xf32, #tpu.memory_space<vmem>>, vector<1x16x128xf32>,
    %cst_26 = arith.constant 1.000000e+00 : f32
    %49 = vector.broadcast %cst_26 : f32 to vector<16x128xf32>
    %50 = arith.subf %49, %45 : vector<16x128xf32>
    %51 = arith.mulf %39, %50 : vector<16x128xf32>
    %cst_27 = arith.constant 5.000000e-01 : f32
    %52 = vector.broadcast %cst_27 : f32 to vector<16x128xf32>
    %53 = arith.mulf %51, %52 : vector<16x128xf32>
    %c3 = arith.constant 3 : index
    %c0_28 = arith.constant 0 : index
    %c0_29 = arith.constant 0 : index
    %54 = vector.load %arg1[%c3, %c0_28, %c0_29] : memref<8x16x128xf32, #tpu.memory_space<vmem>>, vector<1x16x128xf32>
    %55 = vector.shape_cast %54 : vector<1x16x128xf32> to vector<16x128xf32>
    %56 = arith.addf %53, %55 : vector<16x128xf32>
    %cst_30 = arith.constant 1.000000e+00 : f32
    %57 = vector.broadcast %cst_30 : f32 to vector<16x128xf32>
    %58 = arith.subf %56, %57 : vector<16x128xf32>
    %cst_31 = arith.constant 0.000000e+00 : f32
    %59 = vector.broadcast %cst_31 : f32 to vector<16x128xf32>
    %60 = arith.cmpf oge, %58, %59 : vector<16x128xf32>
    %61 = arith.extui %60 : vector<16x128xi1> to vector<16x128xi32>
    %62 = arith.sitofp %61 : vector<16x128xi32> to vector<16x128xf32>
    %c3_32 = arith.constant 3 : index
    %c0_33 = arith.constant 0 : index
    %c0_34 = arith.constant 0 : index
    %63 = vector.load %arg2[%c3_32, %c0_33, %c0_34] : memref<8x16x128xf32, #tpu.memory_space<vmem>>, vector<1x16x128xf32>
    %64 = vector.shape_cast %63 : vector<1x16x128xf32> to vector<16x128xf32>
    %65 = vector.shape_cast %62 : vector<16x128xf32> to vector<1x16x128xf32>
    tpu.vector_store %arg2[%c3_32, %c0_33, %c0_34], %65 {strides = array<i32>} : memref<8x16x128xf32, #tpu.memory_space<vmem>>, vector<1x16x128xf32>,
    %cst_35 = arith.constant 1.000000e+00 : f32
    %66 = vector.broadcast %cst_35 : f32 to vector<16x128xf32>
    %67 = arith.subf %66, %62 : vector<16x128xf32>
    %68 = arith.mulf %56, %67 : vector<16x128xf32>
    %cst_36 = arith.constant 5.000000e-01 : f32
    %69 = vector.broadcast %cst_36 : f32 to vector<16x128xf32>
    %70 = arith.mulf %68, %69 : vector<16x128xf32>
    %c4 = arith.constant 4 : index
    %c0_37 = arith.constant 0 : index
    %c0_38 = arith.constant 0 : index
    %71 = vector.load %arg1[%c4, %c0_37, %c0_38] : memref<8x16x128xf32, #tpu.memory_space<vmem>>, vector<1x16x128xf32>
    %72 = vector.shape_cast %71 : vector<1x16x128xf32> to vector<16x128xf32>
    %73 = arith.addf %70, %72 : vector<16x128xf32>
    %cst_39 = arith.constant 1.000000e+00 : f32
    %74 = vector.broadcast %cst_39 : f32 to vector<16x128xf32>
    %75 = arith.subf %73, %74 : vector<16x128xf32>
    %cst_40 = arith.constant 0.000000e+00 : f32
    %76 = vector.broadcast %cst_40 : f32 to vector<16x128xf32>
    %77 = arith.cmpf oge, %75, %76 : vector<16x128xf32>
    %78 = arith.extui %77 : vector<16x128xi1> to vector<16x128xi32>
    %79 = arith.sitofp %78 : vector<16x128xi32> to vector<16x128xf32>
    %c4_41 = arith.constant 4 : index
    %c0_42 = arith.constant 0 : index
    %c0_43 = arith.constant 0 : index
    %80 = vector.load %arg2[%c4_41, %c0_42, %c0_43] : memref<8x16x128xf32, #tpu.memory_space<vmem>>, vector<1x16x128xf32>
    %81 = vector.shape_cast %80 : vector<1x16x128xf32> to vector<16x128xf32>
    %82 = vector.shape_cast %79 : vector<16x128xf32> to vector<1x16x128xf32>
    tpu.vector_store %arg2[%c4_41, %c0_42, %c0_43], %82 {strides = array<i32>} : memref<8x16x128xf32, #tpu.memory_space<vmem>>, vector<1x16x128xf32>,
    %cst_44 = arith.constant 1.000000e+00 : f32
    %83 = vector.broadcast %cst_44 : f32 to vector<16x128xf32>
    %84 = arith.subf %83, %79 : vector<16x128xf32>
    %85 = arith.mulf %73, %84 : vector<16x128xf32>
    %cst_45 = arith.constant 5.000000e-01 : f32
    %86 = vector.broadcast %cst_45 : f32 to vector<16x128xf32>
    %87 = arith.mulf %85, %86 : vector<16x128xf32>
    %c5 = arith.constant 5 : index
    %c0_46 = arith.constant 0 : index
    %c0_47 = arith.constant 0 : index
    %88 = vector.load %arg1[%c5, %c0_46, %c0_47] : memref<8x16x128xf32, #tpu.memory_space<vmem>>, vector<1x16x128xf32>
    %89 = vector.shape_cast %88 : vector<1x16x128xf32> to vector<16x128xf32>
    %90 = arith.addf %87, %89 : vector<16x128xf32>
    %cst_48 = arith.constant 1.000000e+00 : f32
    %91 = vector.broadcast %cst_48 : f32 to vector<16x128xf32>
    %92 = arith.subf %90, %91 : vector<16x128xf32>
    %cst_49 = arith.constant 0.000000e+00 : f32
    %93 = vector.broadcast %cst_49 : f32 to vector<16x128xf32>
    %94 = arith.cmpf oge, %92, %93 : vector<16x128xf32>
    %95 = arith.extui %94 : vector<16x128xi1> to vector<16x128xi32>
    %96 = arith.sitofp %95 : vector<16x128xi32> to vector<16x128xf32>
    %c5_50 = arith.constant 5 : index
    %c0_51 = arith.constant 0 : index
    %c0_52 = arith.constant 0 : index
    %97 = vector.load %arg2[%c5_50, %c0_51, %c0_52] : memref<8x16x128xf32, #tpu.memory_space<vmem>>, vector<1x16x128xf32>
    %98 = vector.shape_cast %97 : vector<1x16x128xf32> to vector<16x128xf32>
    %99 = vector.shape_cast %96 : vector<16x128xf32> to vector<1x16x128xf32>
    tpu.vector_store %arg2[%c5_50, %c0_51, %c0_52], %99 {strides = array<i32>} : memref<8x16x128xf32, #tpu.memory_space<vmem>>, vector<1x16x128xf32>,
    %cst_53 = arith.constant 1.000000e+00 : f32
    %100 = vector.broadcast %cst_53 : f32 to vector<16x128xf32>
    %101 = arith.subf %100, %96 : vector<16x128xf32>
    %102 = arith.mulf %90, %101 : vector<16x128xf32>
    %cst_54 = arith.constant 5.000000e-01 : f32
    %103 = vector.broadcast %cst_54 : f32 to vector<16x128xf32>
    %104 = arith.mulf %102, %103 : vector<16x128xf32>
    %c6 = arith.constant 6 : index
    %c0_55 = arith.constant 0 : index
    %c0_56 = arith.constant 0 : index
    %105 = vector.load %arg1[%c6, %c0_55, %c0_56] : memref<8x16x128xf32, #tpu.memory_space<vmem>>, vector<1x16x128xf32>
    %106 = vector.shape_cast %105 : vector<1x16x128xf32> to vector<16x128xf32>
    %107 = arith.addf %104, %106 : vector<16x128xf32>
    %cst_57 = arith.constant 1.000000e+00 : f32
    %108 = vector.broadcast %cst_57 : f32 to vector<16x128xf32>
    %109 = arith.subf %107, %108 : vector<16x128xf32>
    %cst_58 = arith.constant 0.000000e+00 : f32
    %110 = vector.broadcast %cst_58 : f32 to vector<16x128xf32>
    %111 = arith.cmpf oge, %109, %110 : vector<16x128xf32>
    %112 = arith.extui %111 : vector<16x128xi1> to vector<16x128xi32>
    %113 = arith.sitofp %112 : vector<16x128xi32> to vector<16x128xf32>
    %c6_59 = arith.constant 6 : index
    %c0_60 = arith.constant 0 : index
    %c0_61 = arith.constant 0 : index
    %114 = vector.load %arg2[%c6_59, %c0_60, %c0_61] : memref<8x16x128xf32, #tpu.memory_space<vmem>>, vector<1x16x128xf32>
    %115 = vector.shape_cast %114 : vector<1x16x128xf32> to vector<16x128xf32>
    %116 = vector.shape_cast %113 : vector<16x128xf32> to vector<1x16x128xf32>
    tpu.vector_store %arg2[%c6_59, %c0_60, %c0_61], %116 {strides = array<i32>} : memref<8x16x128xf32, #tpu.memory_space<vmem>>, vector<1x16x128xf32>,
    %cst_62 = arith.constant 1.000000e+00 : f32
    %117 = vector.broadcast %cst_62 : f32 to vector<16x128xf32>
    %118 = arith.subf %117, %113 : vector<16x128xf32>
    %119 = arith.mulf %107, %118 : vector<16x128xf32>
    %cst_63 = arith.constant 5.000000e-01 : f32
    %120 = vector.broadcast %cst_63 : f32 to vector<16x128xf32>
    %121 = arith.mulf %119, %120 : vector<16x128xf32>
    %c7 = arith.constant 7 : index
    %c0_64 = arith.constant 0 : index
    %c0_65 = arith.constant 0 : index
    %122 = vector.load %arg1[%c7, %c0_64, %c0_65] : memref<8x16x128xf32, #tpu.memory_space<vmem>>, vector<1x16x128xf32>
    %123 = vector.shape_cast %122 : vector<1x16x128xf32> to vector<16x128xf32>
    %124 = arith.addf %121, %123 : vector<16x128xf32>
    %cst_66 = arith.constant 1.000000e+00 : f32
    %125 = vector.broadcast %cst_66 : f32 to vector<16x128xf32>
    %126 = arith.subf %124, %125 : vector<16x128xf32>
    %cst_67 = arith.constant 0.000000e+00 : f32
    %127 = vector.broadcast %cst_67 : f32 to vector<16x128xf32>
    %128 = arith.cmpf oge, %126, %127 : vector<16x128xf32>
    %129 = arith.extui %128 : vector<16x128xi1> to vector<16x128xi32>
    %130 = arith.sitofp %129 : vector<16x128xi32> to vector<16x128xf32>
    %c7_68 = arith.constant 7 : index
    %c0_69 = arith.constant 0 : index
    %c0_70 = arith.constant 0 : index
    %131 = vector.load %arg2[%c7_68, %c0_69, %c0_70] : memref<8x16x128xf32, #tpu.memory_space<vmem>>, vector<1x16x128xf32>
    %132 = vector.shape_cast %131 : vector<1x16x128xf32> to vector<16x128xf32>
    %133 = vector.shape_cast %130 : vector<16x128xf32> to vector<1x16x128xf32>
    tpu.vector_store %arg2[%c7_68, %c0_69, %c0_70], %133 {strides = array<i32>} : memref<8x16x128xf32, #tpu.memory_space<vmem>>, vector<1x16x128xf32>,
    return
  }
  func.func @transform_0(%arg0: i32) -> (i32, i32, i32) {
    %c0_i32 = arith.constant 0 : i32
    %c0_i32_0 = arith.constant 0 : i32
    %c0_i32_1 = arith.constant 0 : i32
    return %c0_i32, %arg0, %c0_i32_0 : i32, i32, i32
  }
  func.func @transform_1(%arg0: i32) -> (i32, i32, i32) {
    %c0_i32 = arith.constant 0 : i32
    %c0_i32_0 = arith.constant 0 : i32
    %c0_i32_1 = arith.constant 0 : i32
    return %c0_i32, %arg0, %c0_i32_0 : i32, i32, i32
  }
}

</mosaic_0001>

<llo_original>
// kernel: _lif_fused.1
$region0: #{_lif_fused.1}
  #allocation0 [shape = 'u32[]', space=smem, size = 0x4, offset = 0x4, fixed_abs, tag = 'smem constant byte address 0x4 - core index']
  #allocation1 [shape = 'u32[72,128]{1,0:T(1,128)}', space=vmem, size = 0x9000, scoped, tag = 'internal scratch']
  #allocation2 [shape = 'f32[32,8,128]{2,1,0:T(8,128)}', space=vmem, size = 0x20000, scoped, tag = 'scratch operand']
  #allocation3 [shape = 'f32[32,8,128]{2,1,0:T(8,128)}', space=vmem, size = 0x20000, scoped, tag = 'scratch operand']
  %s0 = inlined_call_operand.vmem [shape: f32[16,128,8], index: 0, kind: input, shape index: {}]
  %s1 = inlined_call_operand.vmem [shape: f32[16,128,8], index: 1, kind: output, shape index: {}]
  %s2 = sld [smem:[#allocation0]]
  $region14: #{_lif_fused.1} parent=0
    _
  %s4 = ssub.s32 1, %s2
  %s5 = scalar_select 0, %s4, %s2
  // Predicated region
  $region2: #{_lif_fused.1} parent=0 // pred_check
    _
  $region3: #{_lif_fused.1} parent=0 // pred_check_branch
    %7 = sbr.rel (0) target = $region5
  $region4: #{_lif_fused.1} parent=0 // pred_region
    _
  $region5: #{_lif_fused.1} parent=0 // pred_fallthru
    _
  %v8 = vld [vmem:[%s0] sm:$0xff]
  %v9 = vld [vmem:[%s0 + $0x8] sm:$0xff]
  %v10 = vld [vmem:[%s0 + $0x10] sm:$0xff]
  %v11 = vld [vmem:[%s0 + $0x18] sm:$0xff]
  %v12 = vld [vmem:[%s0 + $0x20] sm:$0xff]
  %v13 = vld [vmem:[%s0 + $0x28] sm:$0xff]
  %v14 = vld [vmem:[%s0 + $0x30] sm:$0xff]
  %v15 = vld [vmem:[%s0 + $0x38] sm:$0xff]
  %v16 = vld [vmem:[%s0 + $0x40] sm:$0xff]
  %v17 = vld [vmem:[%s0 + $0x48] sm:$0xff]
  %v18 = vld [vmem:[%s0 + $0x50] sm:$0xff]
  %v19 = vld [vmem:[%s0 + $0x58] sm:$0xff]
  %v20 = vld [vmem:[%s0 + $0x60] sm:$0xff]
  %v21 = vld [vmem:[%s0 + $0x68] sm:$0xff]
  %v22 = vld [vmem:[%s0 + $0x70] sm:$0xff]
  %v23 = vld [vmem:[%s0 + $0x78] sm:$0xff]
  %v24 = vld [vmem:[%s0 + $0x80] sm:$0xff]
  %v25 = vld [vmem:[%s0 + $0x88] sm:$0xff]
  %v26 = vld [vmem:[%s0 + $0x90] sm:$0xff]
  %v27 = vld [vmem:[%s0 + $0x98] sm:$0xff]
  %v28 = vld [vmem:[%s0 + $0xa0] sm:$0xff]
  %v29 = vld [vmem:[%s0 + $0xa8] sm:$0xff]
  %v30 = vld [vmem:[%s0 + $0xb0] sm:$0xff]
  %v31 = vld [vmem:[%s0 + $0xb8] sm:$0xff]
  %v32 = vld [vmem:[%s0 + $0xc0] sm:$0xff]
  %v33 = vld [vmem:[%s0 + $0xc8] sm:$0xff]
  %v34 = vld [vmem:[%s0 + $0xd0] sm:$0xff]
  %v35 = vld [vmem:[%s0 + $0xd8] sm:$0xff]
  %v36 = vld [vmem:[%s0 + $0xe0] sm:$0xff]
  %v37 = vld [vmem:[%s0 + $0xe8] sm:$0xff]
  %v38 = vld [vmem:[%s0 + $0xf0] sm:$0xff]
  %v39 = vld [vmem:[%s0 + $0xf8] sm:$0xff]
  %v40 = vld [vmem:[%s0 + $0x100] sm:$0xff]
  %v41 = vld [vmem:[%s0 + $0x108] sm:$0xff]
  %v42 = vld [vmem:[%s0 + $0x110] sm:$0xff]
  %v43 = vld [vmem:[%s0 + $0x118] sm:$0xff]
  %v44 = vld [vmem:[%s0 + $0x120] sm:$0xff]
  %v45 = vld [vmem:[%s0 + $0x128] sm:$0xff]
  %v46 = vld [vmem:[%s0 + $0x130] sm:$0xff]
  %v47 = vld [vmem:[%s0 + $0x138] sm:$0xff]
  %v48 = vld [vmem:[%s0 + $0x140] sm:$0xff]
  %v49 = vld [vmem:[%s0 + $0x148] sm:$0xff]
  %v50 = vld [vmem:[%s0 + $0x150] sm:$0xff]
  %v51 = vld [vmem:[%s0 + $0x158] sm:$0xff]
  %v52 = vld [vmem:[%s0 + $0x160] sm:$0xff]
  %v53 = vld [vmem:[%s0 + $0x168] sm:$0xff]
  %v54 = vld [vmem:[%s0 + $0x170] sm:$0xff]
  %v55 = vld [vmem:[%s0 + $0x178] sm:$0xff]
  %v56 = vld [vmem:[%s0 + $0x180] sm:$0xff]
  %v57 = vld [vmem:[%s0 + $0x188] sm:$0xff]
  %v58 = vld [vmem:[%s0 + $0x190] sm:$0xff]
  %v59 = vld [vmem:[%s0 + $0x198] sm:$0xff]
  %v60 = vld [vmem:[%s0 + $0x1a0] sm:$0xff]
  %v61 = vld [vmem:[%s0 + $0x1a8] sm:$0xff]
  %v62 = vld [vmem:[%s0 + $0x1b0] sm:$0xff]
  %v63 = vld [vmem:[%s0 + $0x1b8] sm:$0xff]
  %v64 = vld [vmem:[%s0 + $0x1c0] sm:$0xff]
  %v65 = vld [vmem:[%s0 + $0x1c8] sm:$0xff]
  %v66 = vld [vmem:[%s0 + $0x1d0] sm:$0xff]
  %v67 = vld [vmem:[%s0 + $0x1d8] sm:$0xff]
  %v68 = vld [vmem:[%s0 + $0x1e0] sm:$0xff]
  %v69 = vld [vmem:[%s0 + $0x1e8] sm:$0xff]
  %v70 = vld [vmem:[%s0 + $0x1f0] sm:$0xff]
  %v71 = vld [vmem:[%s0 + $0x1f8] sm:$0xff]
  %v72 = vld [vmem:[%s0 + $0x200] sm:$0xff]
  %v73 = vld [vmem:[%s0 + $0x208] sm:$0xff]
  %v74 = vld [vmem:[%s0 + $0x210] sm:$0xff]
  %v75 = vld [vmem:[%s0 + $0x218] sm:$0xff]
  %v76 = vld [vmem:[%s0 + $0x220] sm:$0xff]
  %v77 = vld [vmem:[%s0 + $0x228] sm:$0xff]
  %v78 = vld [vmem:[%s0 + $0x230] sm:$0xff]
  %v79 = vld [vmem:[%s0 + $0x238] sm:$0xff]
  %v80 = vld [vmem:[%s0 + $0x240] sm:$0xff]
  %v81 = vld [vmem:[%s0 + $0x248] sm:$0xff]
  %v82 = vld [vmem:[%s0 + $0x250] sm:$0xff]
  %v83 = vld [vmem:[%s0 + $0x258] sm:$0xff]
  %v84 = vld [vmem:[%s0 + $0x260] sm:$0xff]
  %v85 = vld [vmem:[%s0 + $0x268] sm:$0xff]
  %v86 = vld [vmem:[%s0 + $0x270] sm:$0xff]
  %v87 = vld [vmem:[%s0 + $0x278] sm:$0xff]
  %v88 = vld [vmem:[%s0 + $0x280] sm:$0xff]
  %v89 = vld [vmem:[%s0 + $0x288] sm:$0xff]
  %v90 = vld [vmem:[%s0 + $0x290] sm:$0xff]
  %v91 = vld [vmem:[%s0 + $0x298] sm:$0xff]
  %v92 = vld [vmem:[%s0 + $0x2a0] sm:$0xff]
  %v93 = vld [vmem:[%s0 + $0x2a8] sm:$0xff]
  %v94 = vld [vmem:[%s0 + $0x2b0] sm:$0xff]
  %v95 = vld [vmem:[%s0 + $0x2b8] sm:$0xff]
  %v96 = vld [vmem:[%s0 + $0x2c0] sm:$0xff]
  %v97 = vld [vmem:[%s0 + $0x2c8] sm:$0xff]
  %v98 = vld [vmem:[%s0 + $0x2d0] sm:$0xff]
  %v99 = vld [vmem:[%s0 + $0x2d8] sm:$0xff]
  %v100 = vld [vmem:[%s0 + $0x2e0] sm:$0xff]
  %v101 = vld [vmem:[%s0 + $0x2e8] sm:$0xff]
  %v102 = vld [vmem:[%s0 + $0x2f0] sm:$0xff]
  %v103 = vld [vmem:[%s0 + $0x2f8] sm:$0xff]
  %v104 = vld [vmem:[%s0 + $0x300] sm:$0xff]
  %v105 = vld [vmem:[%s0 + $0x308] sm:$0xff]
  %v106 = vld [vmem:[%s0 + $0x310] sm:$0xff]
  %v107 = vld [vmem:[%s0 + $0x318] sm:$0xff]
  %v108 = vld [vmem:[%s0 + $0x320] sm:$0xff]
  %v109 = vld [vmem:[%s0 + $0x328] sm:$0xff]
  %v110 = vld [vmem:[%s0 + $0x330] sm:$0xff]
  %v111 = vld [vmem:[%s0 + $0x338] sm:$0xff]
  %v112 = vld [vmem:[%s0 + $0x340] sm:$0xff]
  %v113 = vld [vmem:[%s0 + $0x348] sm:$0xff]
  %v114 = vld [vmem:[%s0 + $0x350] sm:$0xff]
  %v115 = vld [vmem:[%s0 + $0x358] sm:$0xff]
  %v116 = vld [vmem:[%s0 + $0x360] sm:$0xff]
  %v117 = vld [vmem:[%s0 + $0x368] sm:$0xff]
  %v118 = vld [vmem:[%s0 + $0x370] sm:$0xff]
  %v119 = vld [vmem:[%s0 + $0x378] sm:$0xff]
  %v120 = vld [vmem:[%s0 + $0x380] sm:$0xff]
  %v121 = vld [vmem:[%s0 + $0x388] sm:$0xff]
  %v122 = vld [vmem:[%s0 + $0x390] sm:$0xff]
  %v123 = vld [vmem:[%s0 + $0x398] sm:$0xff]
  %v124 = vld [vmem:[%s0 + $0x3a0] sm:$0xff]
  %v125 = vld [vmem:[%s0 + $0x3a8] sm:$0xff]
  %v126 = vld [vmem:[%s0 + $0x3b0] sm:$0xff]
  %v127 = vld [vmem:[%s0 + $0x3b8] sm:$0xff]
  %v128 = vld [vmem:[%s0 + $0x3c0] sm:$0xff]
  %v129 = vld [vmem:[%s0 + $0x3c8] sm:$0xff]
  %v130 = vld [vmem:[%s0 + $0x3d0] sm:$0xff]
  %v131 = vld [vmem:[%s0 + $0x3d8] sm:$0xff]
  %v132 = vld [vmem:[%s0 + $0x3e0] sm:$0xff]
  %v133 = vld [vmem:[%s0 + $0x3e8] sm:$0xff]
  %v134 = vld [vmem:[%s0 + $0x3f0] sm:$0xff]
  %v135 = vld [vmem:[%s0 + $0x3f8] sm:$0xff]
  %v136 = vld [vmem:[%s0 + $0x400] sm:$0xff]
  %v137 = vld [vmem:[%s0 + $0x408] sm:$0xff]
  %v138 = vld [vmem:[%s0 + $0x410] sm:$0xff]
  %v139 = vld [vmem:[%s0 + $0x418] sm:$0xff]
  %v140 = vld [vmem:[%s0 + $0x420] sm:$0xff]
  %v141 = vld [vmem:[%s0 + $0x428] sm:$0xff]
  %v142 = vld [vmem:[%s0 + $0x430] sm:$0xff]
  %v143 = vld [vmem:[%s0 + $0x438] sm:$0xff]
  %v144 = vld [vmem:[%s0 + $0x440] sm:$0xff]
  %v145 = vld [vmem:[%s0 + $0x448] sm:$0xff]
  %v146 = vld [vmem:[%s0 + $0x450] sm:$0xff]
  %v147 = vld [vmem:[%s0 + $0x458] sm:$0xff]
  %v148 = vld [vmem:[%s0 + $0x460] sm:$0xff]
  %v149 = vld [vmem:[%s0 + $0x468] sm:$0xff]
  %v150 = vld [vmem:[%s0 + $0x470] sm:$0xff]
  %v151 = vld [vmem:[%s0 + $0x478] sm:$0xff]
  %v152 = vld [vmem:[%s0 + $0x480] sm:$0xff]
  %v153 = vld [vmem:[%s0 + $0x488] sm:$0xff]
  %v154 = vld [vmem:[%s0 + $0x490] sm:$0xff]
  %v155 = vld [vmem:[%s0 + $0x498] sm:$0xff]
  %v156 = vld [vmem:[%s0 + $0x4a0] sm:$0xff]
  %v157 = vld [vmem:[%s0 + $0x4a8] sm:$0xff]
  %v158 = vld [vmem:[%s0 + $0x4b0] sm:$0xff]
  %v159 = vld [vmem:[%s0 + $0x4b8] sm:$0xff]
  %v160 = vld [vmem:[%s0 + $0x4c0] sm:$0xff]
  %v161 = vld [vmem:[%s0 + $0x4c8] sm:$0xff]
  %v162 = vld [vmem:[%s0 + $0x4d0] sm:$0xff]
  %v163 = vld [vmem:[%s0 + $0x4d8] sm:$0xff]
  %v164 = vld [vmem:[%s0 + $0x4e0] sm:$0xff]
  %v165 = vld [vmem:[%s0 + $0x4e8] sm:$0xff]
  %v166 = vld [vmem:[%s0 + $0x4f0] sm:$0xff]
  %v167 = vld [vmem:[%s0 + $0x4f8] sm:$0xff]
  %v168 = vld [vmem:[%s0 + $0x500] sm:$0xff]
  %v169 = vld [vmem:[%s0 + $0x508] sm:$0xff]
  %v170 = vld [vmem:[%s0 + $0x510] sm:$0xff]
  %v171 = vld [vmem:[%s0 + $0x518] sm:$0xff]
  %v172 = vld [vmem:[%s0 + $0x520] sm:$0xff]
  %v173 = vld [vmem:[%s0 + $0x528] sm:$0xff]
  %v174 = vld [vmem:[%s0 + $0x530] sm:$0xff]
  %v175 = vld [vmem:[%s0 + $0x538] sm:$0xff]
  %v176 = vld [vmem:[%s0 + $0x540] sm:$0xff]
  %v177 = vld [vmem:[%s0 + $0x548] sm:$0xff]
  %v178 = vld [vmem:[%s0 + $0x550] sm:$0xff]
  %v179 = vld [vmem:[%s0 + $0x558] sm:$0xff]
  %v180 = vld [vmem:[%s0 + $0x560] sm:$0xff]
  %v181 = vld [vmem:[%s0 + $0x568] sm:$0xff]
  %v182 = vld [vmem:[%s0 + $0x570] sm:$0xff]
  %v183 = vld [vmem:[%s0 + $0x578] sm:$0xff]
  %v184 = vld [vmem:[%s0 + $0x580] sm:$0xff]
  %v185 = vld [vmem:[%s0 + $0x588] sm:$0xff]
  %v186 = vld [vmem:[%s0 + $0x590] sm:$0xff]
  %v187 = vld [vmem:[%s0 + $0x598] sm:$0xff]
  %v188 = vld [vmem:[%s0 + $0x5a0] sm:$0xff]
  %v189 = vld [vmem:[%s0 + $0x5a8] sm:$0xff]
  %v190 = vld [vmem:[%s0 + $0x5b0] sm:$0xff]
  %v191 = vld [vmem:[%s0 + $0x5b8] sm:$0xff]
  %v192 = vld [vmem:[%s0 + $0x5c0] sm:$0xff]
  %v193 = vld [vmem:[%s0 + $0x5c8] sm:$0xff]
  %v194 = vld [vmem:[%s0 + $0x5d0] sm:$0xff]
  %v195 = vld [vmem:[%s0 + $0x5d8] sm:$0xff]
  %v196 = vld [vmem:[%s0 + $0x5e0] sm:$0xff]
  %v197 = vld [vmem:[%s0 + $0x5e8] sm:$0xff]
  %v198 = vld [vmem:[%s0 + $0x5f0] sm:$0xff]
  %v199 = vld [vmem:[%s0 + $0x5f8] sm:$0xff]
  %v200 = vld [vmem:[%s0 + $0x600] sm:$0xff]
  %v201 = vld [vmem:[%s0 + $0x608] sm:$0xff]
  %v202 = vld [vmem:[%s0 + $0x610] sm:$0xff]
  %v203 = vld [vmem:[%s0 + $0x618] sm:$0xff]
  %v204 = vld [vmem:[%s0 + $0x620] sm:$0xff]
  %v205 = vld [vmem:[%s0 + $0x628] sm:$0xff]
  %v206 = vld [vmem:[%s0 + $0x630] sm:$0xff]
  %v207 = vld [vmem:[%s0 + $0x638] sm:$0xff]
  %v208 = vld [vmem:[%s0 + $0x640] sm:$0xff]
  %v209 = vld [vmem:[%s0 + $0x648] sm:$0xff]
  %v210 = vld [vmem:[%s0 + $0x650] sm:$0xff]
  %v211 = vld [vmem:[%s0 + $0x658] sm:$0xff]
  %v212 = vld [vmem:[%s0 + $0x660] sm:$0xff]
  %v213 = vld [vmem:[%s0 + $0x668] sm:$0xff]
  %v214 = vld [vmem:[%s0 + $0x670] sm:$0xff]
  %v215 = vld [vmem:[%s0 + $0x678] sm:$0xff]
  %v216 = vld [vmem:[%s0 + $0x680] sm:$0xff]
  %v217 = vld [vmem:[%s0 + $0x688] sm:$0xff]
  %v218 = vld [vmem:[%s0 + $0x690] sm:$0xff]
  %v219 = vld [vmem:[%s0 + $0x698] sm:$0xff]
  %v220 = vld [vmem:[%s0 + $0x6a0] sm:$0xff]
  %v221 = vld [vmem:[%s0 + $0x6a8] sm:$0xff]
  %v222 = vld [vmem:[%s0 + $0x6b0] sm:$0xff]
  %v223 = vld [vmem:[%s0 + $0x6b8] sm:$0xff]
  %v224 = vld [vmem:[%s0 + $0x6c0] sm:$0xff]
  %v225 = vld [vmem:[%s0 + $0x6c8] sm:$0xff]
  %v226 = vld [vmem:[%s0 + $0x6d0] sm:$0xff]
  %v227 = vld [vmem:[%s0 + $0x6d8] sm:$0xff]
  %v228 = vld [vmem:[%s0 + $0x6e0] sm:$0xff]
  %v229 = vld [vmem:[%s0 + $0x6e8] sm:$0xff]
  %v230 = vld [vmem:[%s0 + $0x6f0] sm:$0xff]
  %v231 = vld [vmem:[%s0 + $0x6f8] sm:$0xff]
  %v232 = vld [vmem:[%s0 + $0x700] sm:$0xff]
  %v233 = vld [vmem:[%s0 + $0x708] sm:$0xff]
  %v234 = vld [vmem:[%s0 + $0x710] sm:$0xff]
  %v235 = vld [vmem:[%s0 + $0x718] sm:$0xff]
  %v236 = vld [vmem:[%s0 + $0x720] sm:$0xff]
  %v237 = vld [vmem:[%s0 + $0x728] sm:$0xff]
  %v238 = vld [vmem:[%s0 + $0x730] sm:$0xff]
  %v239 = vld [vmem:[%s0 + $0x738] sm:$0xff]
  %v240 = vld [vmem:[%s0 + $0x740] sm:$0xff]
  %v241 = vld [vmem:[%s0 + $0x748] sm:$0xff]
  %v242 = vld [vmem:[%s0 + $0x750] sm:$0xff]
  %v243 = vld [vmem:[%s0 + $0x758] sm:$0xff]
  %v244 = vld [vmem:[%s0 + $0x760] sm:$0xff]
  %v245 = vld [vmem:[%s0 + $0x768] sm:$0xff]
  %v246 = vld [vmem:[%s0 + $0x770] sm:$0xff]
  %v247 = vld [vmem:[%s0 + $0x778] sm:$0xff]
  %v248 = vld [vmem:[%s0 + $0x780] sm:$0xff]
  %v249 = vld [vmem:[%s0 + $0x788] sm:$0xff]
  %v250 = vld [vmem:[%s0 + $0x790] sm:$0xff]
  %v251 = vld [vmem:[%s0 + $0x798] sm:$0xff]
  %v252 = vld [vmem:[%s0 + $0x7a0] sm:$0xff]
  %v253 = vld [vmem:[%s0 + $0x7a8] sm:$0xff]
  %v254 = vld [vmem:[%s0 + $0x7b0] sm:$0xff]
  %v255 = vld [vmem:[%s0 + $0x7b8] sm:$0xff]
  %v256 = vld [vmem:[%s0 + $0x7c0] sm:$0xff]
  %v257 = vld [vmem:[%s0 + $0x7c8] sm:$0xff]
  %v258 = vld [vmem:[%s0 + $0x7d0] sm:$0xff]
  %v259 = vld [vmem:[%s0 + $0x7d8] sm:$0xff]
  %v260 = vld [vmem:[%s0 + $0x7e0] sm:$0xff]
  %v261 = vld [vmem:[%s0 + $0x7e8] sm:$0xff]
  %v262 = vld [vmem:[%s0 + $0x7f0] sm:$0xff]
  %v263 = vld [vmem:[%s0 + $0x7f8] sm:$0xff]
  %264 = vxpose.xlu0.b32.start [1/16] %v8, 128
  %265 = vxpose.xlu0.b32.cont [2/16] %v9, 128
  %266 = vxpose.xlu0.b32.cont [3/16] %v10, 128
  %267 = vxpose.xlu0.b32.cont [4/16] %v11, 128
  %268 = vxpose.xlu0.b32.cont [5/16] %v12, 128
  %269 = vxpose.xlu0.b32.cont [6/16] %v13, 128
  %270 = vxpose.xlu0.b32.cont [7/16] %v14, 128
  %271 = vxpose.xlu0.b32.cont [8/16] %v15, 128
  %272 = vxpose.xlu0.b32.cont [9/16] %v16, 128
  %273 = vxpose.xlu0.b32.cont [10/16] %v17, 128
  %274 = vxpose.xlu0.b32.cont [11/16] %v18, 128
  %275 = vxpose.xlu0.b32.cont [12/16] %v19, 128
  %276 = vxpose.xlu0.b32.cont [13/16] %v20, 128
  %277 = vxpose.xlu0.b32.cont [14/16] %v21, 128
  %278 = vxpose.xlu0.b32.cont [15/16] %v22, 128
  %279 = vxpose.xlu0.b32.end [16/16] %v23, 128
  %v280 = vpop.trf.xlu0
  %v281 = vpop.trf.xlu0
  %v282 = vpop.trf.xlu0
  %v283 = vpop.trf.xlu0
  %v284 = vpop.trf.xlu0
  %v285 = vpop.trf.xlu0
  %v286 = vpop.trf.xlu0
  %v287 = vpop.trf.xlu0
  %v288 = vpop.trf.xlu0
  %v289 = vpop.trf.xlu0
  %v290 = vpop.trf.xlu0
  %v291 = vpop.trf.xlu0
  %v292 = vpop.trf.xlu0
  %v293 = vpop.trf.xlu0
  %v294 = vpop.trf.xlu0
  %v295 = vpop.trf.xlu0
  %296 = vxpose.xlu0.b32.start [1/16] %v24, 128
  %297 = vxpose.xlu0.b32.cont [2/16] %v25, 128
  %298 = vxpose.xlu0.b32.cont [3/16] %v26, 128
  %299 = vxpose.xlu0.b32.cont [4/16] %v27, 128
  %300 = vxpose.xlu0.b32.cont [5/16] %v28, 128
  %301 = vxpose.xlu0.b32.cont [6/16] %v29, 128
  %302 = vxpose.xlu0.b32.cont [7/16] %v30, 128
  %303 = vxpose.xlu0.b32.cont [8/16] %v31, 128
  %304 = vxpose.xlu0.b32.cont [9/16] %v32, 128
  %305 = vxpose.xlu0.b32.cont [10/16] %v33, 128
  %306 = vxpose.xlu0.b32.cont [11/16] %v34, 128
  %307 = vxpose.xlu0.b32.cont [12/16] %v35, 128
  %308 = vxpose.xlu0.b32.cont [13/16] %v36, 128
  %309 = vxpose.xlu0.b32.cont [14/16] %v37, 128
  %310 = vxpose.xlu0.b32.cont [15/16] %v38, 128
  %311 = vxpose.xlu0.b32.end [16/16] %v39, 128
  %v312 = vpop.trf.xlu0
  %v313 = vpop.trf.xlu0
  %v314 = vpop.trf.xlu0
  %v315 = vpop.trf.xlu0
  %v316 = vpop.trf.xlu0
  %v317 = vpop.trf.xlu0
  %v318 = vpop.trf.xlu0
  %v319 = vpop.trf.xlu0
  %v320 = vpop.trf.xlu0
  %v321 = vpop.trf.xlu0
  %v322 = vpop.trf.xlu0
  %v323 = vpop.trf.xlu0
  %v324 = vpop.trf.xlu0
  %v325 = vpop.trf.xlu0
  %v326 = vpop.trf.xlu0
  %v327 = vpop.trf.xlu0
  %328 = vxpose.xlu0.b32.start [1/16] %v40, 128
  %329 = vxpose.xlu0.b32.cont [2/16] %v41, 128
  %330 = vxpose.xlu0.b32.cont [3/16] %v42, 128
  %331 = vxpose.xlu0.b32.cont [4/16] %v43, 128
  %332 = vxpose.xlu0.b32.cont [5/16] %v44, 128
  %333 = vxpose.xlu0.b32.cont [6/16] %v45, 128
  %334 = vxpose.xlu0.b32.cont [7/16] %v46, 128
  %335 = vxpose.xlu0.b32.cont [8/16] %v47, 128
  %336 = vxpose.xlu0.b32.cont [9/16] %v48, 128
  %337 = vxpose.xlu0.b32.cont [10/16] %v49, 128
  %338 = vxpose.xlu0.b32.cont [11/16] %v50, 128
  %339 = vxpose.xlu0.b32.cont [12/16] %v51, 128
  %340 = vxpose.xlu0.b32.cont [13/16] %v52, 128
  %341 = vxpose.xlu0.b32.cont [14/16] %v53, 128
  %342 = vxpose.xlu0.b32.cont [15/16] %v54, 128
  %343 = vxpose.xlu0.b32.end [16/16] %v55, 128
  %v344 = vpop.trf.xlu0
  %v345 = vpop.trf.xlu0
  %v346 = vpop.trf.xlu0
  %v347 = vpop.trf.xlu0
  %v348 = vpop.trf.xlu0
  %v349 = vpop.trf.xlu0
  %v350 = vpop.trf.xlu0
  %v351 = vpop.trf.xlu0
  %v352 = vpop.trf.xlu0
  %v353 = vpop.trf.xlu0
  %v354 = vpop.trf.xlu0
  %v355 = vpop.trf.xlu0
  %v356 = vpop.trf.xlu0
  %v357 = vpop.trf.xlu0
  %v358 = vpop.trf.xlu0
  %v359 = vpop.trf.xlu0
  %360 = vxpose.xlu0.b32.start [1/16] %v56, 128
  %361 = vxpose.xlu0.b32.cont [2/16] %v57, 128
  %362 = vxpose.xlu0.b32.cont [3/16] %v58, 128
  %363 = vxpose.xlu0.b32.cont [4/16] %v59, 128
  %364 = vxpose.xlu0.b32.cont [5/16] %v60, 128
  %365 = vxpose.xlu0.b32.cont [6/16] %v61, 128
  %366 = vxpose.xlu0.b32.cont [7/16] %v62, 128
  %367 = vxpose.xlu0.b32.cont [8/16] %v63, 128
  %368 = vxpose.xlu0.b32.cont [9/16] %v64, 128
  %369 = vxpose.xlu0.b32.cont [10/16] %v65, 128
  %370 = vxpose.xlu0.b32.cont [11/16] %v66, 128
  %371 = vxpose.xlu0.b32.cont [12/16] %v67, 128
  %372 = vxpose.xlu0.b32.cont [13/16] %v68, 128
  %373 = vxpose.xlu0.b32.cont [14/16] %v69, 128
  %374 = vxpose.xlu0.b32.cont [15/16] %v70, 128
  %375 = vxpose.xlu0.b32.end [16/16] %v71, 128
  %v376 = vpop.trf.xlu0
  %v377 = vpop.trf.xlu0
  %v378 = vpop.trf.xlu0
  %v379 = vpop.trf.xlu0
  %v380 = vpop.trf.xlu0
  %v381 = vpop.trf.xlu0
  %v382 = vpop.trf.xlu0
  %v383 = vpop.trf.xlu0
  %v384 = vpop.trf.xlu0
  %v385 = vpop.trf.xlu0
  %v386 = vpop.trf.xlu0
  %v387 = vpop.trf.xlu0
  %v388 = vpop.trf.xlu0
  %v389 = vpop.trf.xlu0
  %v390 = vpop.trf.xlu0
  %v391 = vpop.trf.xlu0
  %392 = vxpose.xlu0.b32.start [1/16] %v72, 128
  %393 = vxpose.xlu0.b32.cont [2/16] %v73, 128
  %394 = vxpose.xlu0.b32.cont [3/16] %v74, 128
  %395 = vxpose.xlu0.b32.cont [4/16] %v75, 128
  %396 = vxpose.xlu0.b32.cont [5/16] %v76, 128
  %397 = vxpose.xlu0.b32.cont [6/16] %v77, 128
  %398 = vxpose.xlu0.b32.cont [7/16] %v78, 128
  %399 = vxpose.xlu0.b32.cont [8/16] %v79, 128
  %400 = vxpose.xlu0.b32.cont [9/16] %v80, 128
  %401 = vxpose.xlu0.b32.cont [10/16] %v81, 128
  %402 = vxpose.xlu0.b32.cont [11/16] %v82, 128
  %403 = vxpose.xlu0.b32.cont [12/16] %v83, 128
  %404 = vxpose.xlu0.b32.cont [13/16] %v84, 128
  %405 = vxpose.xlu0.b32.cont [14/16] %v85, 128
  %406 = vxpose.xlu0.b32.cont [15/16] %v86, 128
  %407 = vxpose.xlu0.b32.end [16/16] %v87, 128
  %v408 = vpop.trf.xlu0
  %v409 = vpop.trf.xlu0
  %v410 = vpop.trf.xlu0
  %v411 = vpop.trf.xlu0
  %v412 = vpop.trf.xlu0
  %v413 = vpop.trf.xlu0
  %v414 = vpop.trf.xlu0
  %v415 = vpop.trf.xlu0
  %v416 = vpop.trf.xlu0
  %v417 = vpop.trf.xlu0
  %v418 = vpop.trf.xlu0
  %v419 = vpop.trf.xlu0
  %v420 = vpop.trf.xlu0
  %v421 = vpop.trf.xlu0
  %v422 = vpop.trf.xlu0
  %v423 = vpop.trf.xlu0
  %424 = vxpose.xlu0.b32.start [1/16] %v88, 128
  %425 = vxpose.xlu0.b32.cont [2/16] %v89, 128
  %426 = vxpose.xlu0.b32.cont [3/16] %v90, 128
  %427 = vxpose.xlu0.b32.cont [4/16] %v91, 128
  %428 = vxpose.xlu0.b32.cont [5/16] %v92, 128
  %429 = vxpose.xlu0.b32.cont [6/16] %v93, 128
  %430 = vxpose.xlu0.b32.cont [7/16] %v94, 128
  %431 = vxpose.xlu0.b32.cont [8/16] %v95, 128
  %432 = vxpose.xlu0.b32.cont [9/16] %v96, 128
  %433 = vxpose.xlu0.b32.cont [10/16] %v97, 128
  %434 = vxpose.xlu0.b32.cont [11/16] %v98, 128
  %435 = vxpose.xlu0.b32.cont [12/16] %v99, 128
  %436 = vxpose.xlu0.b32.cont [13/16] %v100, 128
  %437 = vxpose.xlu0.b32.cont [14/16] %v101, 128
  %438 = vxpose.xlu0.b32.cont [15/16] %v102, 128
  %439 = vxpose.xlu0.b32.end [16/16] %v103, 128
  %v440 = vpop.trf.xlu0
  %v441 = vpop.trf.xlu0
  %v442 = vpop.trf.xlu0
  %v443 = vpop.trf.xlu0
  %v444 = vpop.trf.xlu0
  %v445 = vpop.trf.xlu0
  %v446 = vpop.trf.xlu0
  %v447 = vpop.trf.xlu0
  %v448 = vpop.trf.xlu0
  %v449 = vpop.trf.xlu0
  %v450 = vpop.trf.xlu0
  %v451 = vpop.trf.xlu0
  %v452 = vpop.trf.xlu0
  %v453 = vpop.trf.xlu0
  %v454 = vpop.trf.xlu0
  %v455 = vpop.trf.xlu0
  %456 = vxpose.xlu0.b32.start [1/16] %v104, 128
  %457 = vxpose.xlu0.b32.cont [2/16] %v105, 128
  %458 = vxpose.xlu0.b32.cont [3/16] %v106, 128
  %459 = vxpose.xlu0.b32.cont [4/16] %v107, 128
  %460 = vxpose.xlu0.b32.cont [5/16] %v108, 128
  %461 = vxpose.xlu0.b32.cont [6/16] %v109, 128
  %462 = vxpose.xlu0.b32.cont [7/16] %v110, 128
  %463 = vxpose.xlu0.b32.cont [8/16] %v111, 128
  %464 = vxpose.xlu0.b32.cont [9/16] %v112, 128
  %465 = vxpose.xlu0.b32.cont [10/16] %v113, 128
  %466 = vxpose.xlu0.b32.cont [11/16] %v114, 128
  %467 = vxpose.xlu0.b32.cont [12/16] %v115, 128
  %468 = vxpose.xlu0.b32.cont [13/16] %v116, 128
  %469 = vxpose.xlu0.b32.cont [14/16] %v117, 128
  %470 = vxpose.xlu0.b32.cont [15/16] %v118, 128
  %471 = vxpose.xlu0.b32.end [16/16] %v119, 128
  %v472 = vpop.trf.xlu0
  %v473 = vpop.trf.xlu0
  %v474 = vpop.trf.xlu0
  %v475 = vpop.trf.xlu0
  %v476 = vpop.trf.xlu0
  %v477 = vpop.trf.xlu0
  %v478 = vpop.trf.xlu0
  %v479 = vpop.trf.xlu0
  %v480 = vpop.trf.xlu0
  %v481 = vpop.trf.xlu0
  %v482 = vpop.trf.xlu0
  %v483 = vpop.trf.xlu0
  %v484 = vpop.trf.xlu0
  %v485 = vpop.trf.xlu0
  %v486 = vpop.trf.xlu0
  %v487 = vpop.trf.xlu0
  %488 = vxpose.xlu0.b32.start [1/16] %v120, 128
  %489 = vxpose.xlu0.b32.cont [2/16] %v121, 128
  %490 = vxpose.xlu0.b32.cont [3/16] %v122, 128
  %491 = vxpose.xlu0.b32.cont [4/16] %v123, 128
  %492 = vxpose.xlu0.b32.cont [5/16] %v124, 128
  %493 = vxpose.xlu0.b32.cont [6/16] %v125, 128
  %494 = vxpose.xlu0.b32.cont [7/16] %v126, 128
  %495 = vxpose.xlu0.b32.cont [8/16] %v127, 128
  %496 = vxpose.xlu0.b32.cont [9/16] %v128, 128
  %497 = vxpose.xlu0.b32.cont [10/16] %v129, 128
  %498 = vxpose.xlu0.b32.cont [11/16] %v130, 128
  %499 = vxpose.xlu0.b32.cont [12/16] %v131, 128
  %500 = vxpose.xlu0.b32.cont [13/16] %v132, 128
  %501 = vxpose.xlu0.b32.cont [14/16] %v133, 128
  %502 = vxpose.xlu0.b32.cont [15/16] %v134, 128
  %503 = vxpose.xlu0.b32.end [16/16] %v135, 128
  %v504 = vpop.trf.xlu0
  %v505 = vpop.trf.xlu0
  %v506 = vpop.trf.xlu0
  %v507 = vpop.trf.xlu0
  %v508 = vpop.trf.xlu0
  %v509 = vpop.trf.xlu0
  %v510 = vpop.trf.xlu0
  %v511 = vpop.trf.xlu0
  %v512 = vpop.trf.xlu0
  %v513 = vpop.trf.xlu0
  %v514 = vpop.trf.xlu0
  %v515 = vpop.trf.xlu0
  %v516 = vpop.trf.xlu0
  %v517 = vpop.trf.xlu0
  %v518 = vpop.trf.xlu0
  %v519 = vpop.trf.xlu0
  %520 = vxpose.xlu0.b32.start [1/16] %v136, 128
  %521 = vxpose.xlu0.b32.cont [2/16] %v137, 128
  %522 = vxpose.xlu0.b32.cont [3/16] %v138, 128
  %523 = vxpose.xlu0.b32.cont [4/16] %v139, 128
  %524 = vxpose.xlu0.b32.cont [5/16] %v140, 128
  %525 = vxpose.xlu0.b32.cont [6/16] %v141, 128
  %526 = vxpose.xlu0.b32.cont [7/16] %v142, 128
  %527 = vxpose.xlu0.b32.cont [8/16] %v143, 128
  %528 = vxpose.xlu0.b32.cont [9/16] %v144, 128
  %529 = vxpose.xlu0.b32.cont [10/16] %v145, 128
  %530 = vxpose.xlu0.b32.cont [11/16] %v146, 128
  %531 = vxpose.xlu0.b32.cont [12/16] %v147, 128
  %532 = vxpose.xlu0.b32.cont [13/16] %v148, 128
  %533 = vxpose.xlu0.b32.cont [14/16] %v149, 128
  %534 = vxpose.xlu0.b32.cont [15/16] %v150, 128
  %535 = vxpose.xlu0.b32.end [16/16] %v151, 128
  %v536 = vpop.trf.xlu0
  %v537 = vpop.trf.xlu0
  %v538 = vpop.trf.xlu0
  %v539 = vpop.trf.xlu0
  %v540 = vpop.trf.xlu0
  %v541 = vpop.trf.xlu0
  %v542 = vpop.trf.xlu0
  %v543 = vpop.trf.xlu0
  %v544 = vpop.trf.xlu0
  %v545 = vpop.trf.xlu0
  %v546 = vpop.trf.xlu0
  %v547 = vpop.trf.xlu0
  %v548 = vpop.trf.xlu0
  %v549 = vpop.trf.xlu0
  %v550 = vpop.trf.xlu0
  %v551 = vpop.trf.xlu0
  %552 = vxpose.xlu0.b32.start [1/16] %v152, 128
  %553 = vxpose.xlu0.b32.cont [2/16] %v153, 128
  %554 = vxpose.xlu0.b32.cont [3/16] %v154, 128
  %555 = vxpose.xlu0.b32.cont [4/16] %v155, 128
  %556 = vxpose.xlu0.b32.cont [5/16] %v156, 128
  %557 = vxpose.xlu0.b32.cont [6/16] %v157, 128
  %558 = vxpose.xlu0.b32.cont [7/16] %v158, 128
  %559 = vxpose.xlu0.b32.cont [8/16] %v159, 128
  %560 = vxpose.xlu0.b32.cont [9/16] %v160, 128
  %561 = vxpose.xlu0.b32.cont [10/16] %v161, 128
  %562 = vxpose.xlu0.b32.cont [11/16] %v162, 128
  %563 = vxpose.xlu0.b32.cont [12/16] %v163, 128
  %564 = vxpose.xlu0.b32.cont [13/16] %v164, 128
  %565 = vxpose.xlu0.b32.cont [14/16] %v165, 128
  %566 = vxpose.xlu0.b32.cont [15/16] %v166, 128
  %567 = vxpose.xlu0.b32.end [16/16] %v167, 128
  %v568 = vpop.trf.xlu0
  %v569 = vpop.trf.xlu0
  %v570 = vpop.trf.xlu0
  %v571 = vpop.trf.xlu0
  %v572 = vpop.trf.xlu0
  %v573 = vpop.trf.xlu0
  %v574 = vpop.trf.xlu0
  %v575 = vpop.trf.xlu0
  %v576 = vpop.trf.xlu0
  %v577 = vpop.trf.xlu0
  %v578 = vpop.trf.xlu0
  %v579 = vpop.trf.xlu0
  %v580 = vpop.trf.xlu0
  %v581 = vpop.trf.xlu0
  %v582 = vpop.trf.xlu0
  %v583 = vpop.trf.xlu0
  %584 = vxpose.xlu0.b32.start [1/16] %v168, 128
  %585 = vxpose.xlu0.b32.cont [2/16] %v169, 128
  %586 = vxpose.xlu0.b32.cont [3/16] %v170, 128
  %587 = vxpose.xlu0.b32.cont [4/16] %v171, 128
  %588 = vxpose.xlu0.b32.cont [5/16] %v172, 128
  %589 = vxpose.xlu0.b32.cont [6/16] %v173, 128
  %590 = vxpose.xlu0.b32.cont [7/16] %v174, 128
  %591 = vxpose.xlu0.b32.cont [8/16] %v175, 128
  %592 = vxpose.xlu0.b32.cont [9/16] %v176, 128
  %593 = vxpose.xlu0.b32.cont [10/16] %v177, 128
  %594 = vxpose.xlu0.b32.cont [11/16] %v178, 128
  %595 = vxpose.xlu0.b32.cont [12/16] %v179, 128
  %596 = vxpose.xlu0.b32.cont [13/16] %v180, 128
  %597 = vxpose.xlu0.b32.cont [14/16] %v181, 128
  %598 = vxpose.xlu0.b32.cont [15/16] %v182, 128
  %599 = vxpose.xlu0.b32.end [16/16] %v183, 128
  %v600 = vpop.trf.xlu0
  %v601 = vpop.trf.xlu0
  %v602 = vpop.trf.xlu0
  %v603 = vpop.trf.xlu0
  %v604 = vpop.trf.xlu0
  %v605 = vpop.trf.xlu0
  %v606 = vpop.trf.xlu0
  %v607 = vpop.trf.xlu0
  %v608 = vpop.trf.xlu0
  %v609 = vpop.trf.xlu0
  %v610 = vpop.trf.xlu0
  %v611 = vpop.trf.xlu0
  %v612 = vpop.trf.xlu0
  %v613 = vpop.trf.xlu0
  %v614 = vpop.trf.xlu0
  %v615 = vpop.trf.xlu0
  %616 = vxpose.xlu0.b32.start [1/16] %v184, 128
  %617 = vxpose.xlu0.b32.cont [2/16] %v185, 128
  %618 = vxpose.xlu0.b32.cont [3/16] %v186, 128
  %619 = vxpose.xlu0.b32.cont [4/16] %v187, 128
  %620 = vxpose.xlu0.b32.cont [5/16] %v188, 128
  %621 = vxpose.xlu0.b32.cont [6/16] %v189, 128
  %622 = vxpose.xlu0.b32.cont [7/16] %v190, 128
  %623 = vxpose.xlu0.b32.cont [8/16] %v191, 128
  %624 = vxpose.xlu0.b32.cont [9/16] %v192, 128
  %625 = vxpose.xlu0.b32.cont [10/16] %v193, 128
  %626 = vxpose.xlu0.b32.cont [11/16] %v194, 128
  %627 = vxpose.xlu0.b32.cont [12/16] %v195, 128
  %628 = vxpose.xlu0.b32.cont [13/16] %v196, 128
  %629 = vxpose.xlu0.b32.cont [14/16] %v197, 128
  %630 = vxpose.xlu0.b32.cont [15/16] %v198, 128
  %631 = vxpose.xlu0.b32.end [16/16] %v199, 128
  %v632 = vpop.trf.xlu0
  %v633 = vpop.trf.xlu0
  %v634 = vpop.trf.xlu0
  %v635 = vpop.trf.xlu0
  %v636 = vpop.trf.xlu0
  %v637 = vpop.trf.xlu0
  %v638 = vpop.trf.xlu0
  %v639 = vpop.trf.xlu0
  %v640 = vpop.trf.xlu0
  %v641 = vpop.trf.xlu0
  %v642 = vpop.trf.xlu0
  %v643 = vpop.trf.xlu0
  %v644 = vpop.trf.xlu0
  %v645 = vpop.trf.xlu0
  %v646 = vpop.trf.xlu0
  %v647 = vpop.trf.xlu0
  %648 = vxpose.xlu0.b32.start [1/16] %v200, 128
  %649 = vxpose.xlu0.b32.cont [2/16] %v201, 128
  %650 = vxpose.xlu0.b32.cont [3/16] %v202, 128
  %651 = vxpose.xlu0.b32.cont [4/16] %v203, 128
  %652 = vxpose.xlu0.b32.cont [5/16] %v204, 128
  %653 = vxpose.xlu0.b32.cont [6/16] %v205, 128
  %654 = vxpose.xlu0.b32.cont [7/16] %v206, 128
  %655 = vxpose.xlu0.b32.cont [8/16] %v207, 128
  %656 = vxpose.xlu0.b32.cont [9/16] %v208, 128
  %657 = vxpose.xlu0.b32.cont [10/16] %v209, 128
  %658 = vxpose.xlu0.b32.cont [11/16] %v210, 128
  %659 = vxpose.xlu0.b32.cont [12/16] %v211, 128
  %660 = vxpose.xlu0.b32.cont [13/16] %v212, 128
  %661 = vxpose.xlu0.b32.cont [14/16] %v213, 128
  %662 = vxpose.xlu0.b32.cont [15/16] %v214, 128
  %663 = vxpose.xlu0.b32.end [16/16] %v215, 128
  %v664 = vpop.trf.xlu0
  %v665 = vpop.trf.xlu0
  %v666 = vpop.trf.xlu0
  %v667 = vpop.trf.xlu0
  %v668 = vpop.trf.xlu0
  %v669 = vpop.trf.xlu0
  %v670 = vpop.trf.xlu0
  %v671 = vpop.trf.xlu0
  %v672 = vpop.trf.xlu0
  %v673 = vpop.trf.xlu0
  %v674 = vpop.trf.xlu0
  %v675 = vpop.trf.xlu0
  %v676 = vpop.trf.xlu0
  %v677 = vpop.trf.xlu0
  %v678 = vpop.trf.xlu0
  %v679 = vpop.trf.xlu0
  %680 = vxpose.xlu0.b32.start [1/16] %v216, 128
  %681 = vxpose.xlu0.b32.cont [2/16] %v217, 128
  %682 = vxpose.xlu0.b32.cont [3/16] %v218, 128
  %683 = vxpose.xlu0.b32.cont [4/16] %v219, 128
  %684 = vxpose.xlu0.b32.cont [5/16] %v220, 128
  %685 = vxpose.xlu0.b32.cont [6/16] %v221, 128
  %686 = vxpose.xlu0.b32.cont [7/16] %v222, 128
  %687 = vxpose.xlu0.b32.cont [8/16] %v223, 128
  %688 = vxpose.xlu0.b32.cont [9/16] %v224, 128
  %689 = vxpose.xlu0.b32.cont [10/16] %v225, 128
  %690 = vxpose.xlu0.b32.cont [11/16] %v226, 128
  %691 = vxpose.xlu0.b32.cont [12/16] %v227, 128
  %692 = vxpose.xlu0.b32.cont [13/16] %v228, 128
  %693 = vxpose.xlu0.b32.cont [14/16] %v229, 128
  %694 = vxpose.xlu0.b32.cont [15/16] %v230, 128
  %695 = vxpose.xlu0.b32.end [16/16] %v231, 128
  %v696 = vpop.trf.xlu0
  %v697 = vpop.trf.xlu0
  %v698 = vpop.trf.xlu0
  %v699 = vpop.trf.xlu0
  %v700 = vpop.trf.xlu0
  %v701 = vpop.trf.xlu0
  %v702 = vpop.trf.xlu0
  %v703 = vpop.trf.xlu0
  %v704 = vpop.trf.xlu0
  %v705 = vpop.trf.xlu0
  %v706 = vpop.trf.xlu0
  %v707 = vpop.trf.xlu0
  %v708 = vpop.trf.xlu0
  %v709 = vpop.trf.xlu0
  %v710 = vpop.trf.xlu0
  %v711 = vpop.trf.xlu0
  %712 = vxpose.xlu0.b32.start [1/16] %v232, 128
  %713 = vxpose.xlu0.b32.cont [2/16] %v233, 128
  %714 = vxpose.xlu0.b32.cont [3/16] %v234, 128
  %715 = vxpose.xlu0.b32.cont [4/16] %v235, 128
  %716 = vxpose.xlu0.b32.cont [5/16] %v236, 128
  %717 = vxpose.xlu0.b32.cont [6/16] %v237, 128
  %718 = vxpose.xlu0.b32.cont [7/16] %v238, 128
  %719 = vxpose.xlu0.b32.cont [8/16] %v239, 128
  %720 = vxpose.xlu0.b32.cont [9/16] %v240, 128
  %721 = vxpose.xlu0.b32.cont [10/16] %v241, 128
  %722 = vxpose.xlu0.b32.cont [11/16] %v242, 128
  %723 = vxpose.xlu0.b32.cont [12/16] %v243, 128
  %724 = vxpose.xlu0.b32.cont [13/16] %v244, 128
  %725 = vxpose.xlu0.b32.cont [14/16] %v245, 128
  %726 = vxpose.xlu0.b32.cont [15/16] %v246, 128
  %727 = vxpose.xlu0.b32.end [16/16] %v247, 128
  %v728 = vpop.trf.xlu0
  %v729 = vpop.trf.xlu0
  %v730 = vpop.trf.xlu0
  %v731 = vpop.trf.xlu0
  %v732 = vpop.trf.xlu0
  %v733 = vpop.trf.xlu0
  %v734 = vpop.trf.xlu0
  %v735 = vpop.trf.xlu0
  %v736 = vpop.trf.xlu0
  %v737 = vpop.trf.xlu0
  %v738 = vpop.trf.xlu0
  %v739 = vpop.trf.xlu0
  %v740 = vpop.trf.xlu0
  %v741 = vpop.trf.xlu0
  %v742 = vpop.trf.xlu0
  %v743 = vpop.trf.xlu0
  %744 = vxpose.xlu0.b32.start [1/16] %v248, 128
  %745 = vxpose.xlu0.b32.cont [2/16] %v249, 128
  %746 = vxpose.xlu0.b32.cont [3/16] %v250, 128
  %747 = vxpose.xlu0.b32.cont [4/16] %v251, 128
  %748 = vxpose.xlu0.b32.cont [5/16] %v252, 128
  %749 = vxpose.xlu0.b32.cont [6/16] %v253, 128
  %750 = vxpose.xlu0.b32.cont [7/16] %v254, 128
  %751 = vxpose.xlu0.b32.cont [8/16] %v255, 128
  %752 = vxpose.xlu0.b32.cont [9/16] %v256, 128
  %753 = vxpose.xlu0.b32.cont [10/16] %v257, 128
  %754 = vxpose.xlu0.b32.cont [11/16] %v258, 128
  %755 = vxpose.xlu0.b32.cont [12/16] %v259, 128
  %756 = vxpose.xlu0.b32.cont [13/16] %v260, 128
  %757 = vxpose.xlu0.b32.cont [14/16] %v261, 128
  %758 = vxpose.xlu0.b32.cont [15/16] %v262, 128
  %759 = vxpose.xlu0.b32.end [16/16] %v263, 128
  %v760 = vpop.trf.xlu0
  %v761 = vpop.trf.xlu0
  %v762 = vpop.trf.xlu0
  %v763 = vpop.trf.xlu0
  %v764 = vpop.trf.xlu0
  %v765 = vpop.trf.xlu0
  %v766 = vpop.trf.xlu0
  %v767 = vpop.trf.xlu0
  %v768 = vpop.trf.xlu0
  %v769 = vpop.trf.xlu0
  %v770 = vpop.trf.xlu0
  %v771 = vpop.trf.xlu0
  %v772 = vpop.trf.xlu0
  %v773 = vpop.trf.xlu0
  %v774 = vpop.trf.xlu0
  %v775 = vpop.trf.xlu0
  %776 = vst [vmem:[#allocation2] sm:$0xff] %v280
  %777 = vst [vmem:[#allocation2 + $0x8] sm:$0xff] %v312
  %778 = vst [vmem:[#allocation2 + $0x10] sm:$0xff] %v344
  %779 = vst [vmem:[#allocation2 + $0x18] sm:$0xff] %v376
  %780 = vst [vmem:[#allocation2 + $0x20] sm:$0xff] %v408
  %781 = vst [vmem:[#allocation2 + $0x28] sm:$0xff] %v440
  %782 = vst [vmem:[#allocation2 + $0x30] sm:$0xff] %v472
  %783 = vst [vmem:[#allocation2 + $0x38] sm:$0xff] %v504
  %784 = vst [vmem:[#allocation2 + $0x40] sm:$0xff] %v536
  %785 = vst [vmem:[#allocation2 + $0x48] sm:$0xff] %v568
  %786 = vst [vmem:[#allocation2 + $0x50] sm:$0xff] %v600
  %787 = vst [vmem:[#allocation2 + $0x58] sm:$0xff] %v632
  %788 = vst [vmem:[#allocation2 + $0x60] sm:$0xff] %v664
  %789 = vst [vmem:[#allocation2 + $0x68] sm:$0xff] %v696
  %790 = vst [vmem:[#allocation2 + $0x70] sm:$0xff] %v728
  %791 = vst [vmem:[#allocation2 + $0x78] sm:$0xff] %v760
  %v792 = vld [vmem:[#allocation2] sm:$0x1]
  %v793 = vld [vmem:[#allocation2 + $0x8] sm:$0x1]
  %v794 = vld [vmem:[#allocation2 + $0x10] sm:$0x1]
  %v795 = vld [vmem:[#allocation2 + $0x18] sm:$0x1]
  %v796 = vld [vmem:[#allocation2 + $0x20] sm:$0x1]
  %v797 = vld [vmem:[#allocation2 + $0x28] sm:$0x1]
  %v798 = vld [vmem:[#allocation2 + $0x30] sm:$0x1]
  %v799 = vld [vmem:[#allocation2 + $0x38] sm:$0x1]
  %v800 = vld [vmem:[#allocation2 + $0x40] sm:$0x1]
  %v801 = vld [vmem:[#allocation2 + $0x48] sm:$0x1]
  %v802 = vld [vmem:[#allocation2 + $0x50] sm:$0x1]
  %v803 = vld [vmem:[#allocation2 + $0x58] sm:$0x1]
  %v804 = vld [vmem:[#allocation2 + $0x60] sm:$0x1]
  %v805 = vld [vmem:[#allocation2 + $0x68] sm:$0x1]
  %v806 = vld [vmem:[#allocation2 + $0x70] sm:$0x1]
  %v807 = vld [vmem:[#allocation2 + $0x78] sm:$0x1]
  %v808 = vadd.f32 %v792, 0.0
  %v809 = vadd.f32 %v793, 0.0
  %v810 = vadd.f32 %v794, 0.0
  %v811 = vadd.f32 %v795, 0.0
  %v812 = vadd.f32 %v796, 0.0
  %v813 = vadd.f32 %v797, 0.0
  %v814 = vadd.f32 %v798, 0.0
  %v815 = vadd.f32 %v799, 0.0
  %v816 = vadd.f32 %v800, 0.0
  %v817 = vadd.f32 %v801, 0.0
  %v818 = vadd.f32 %v802, 0.0
  %v819 = vadd.f32 %v803, 0.0
  %v820 = vadd.f32 %v804, 0.0
  %v821 = vadd.f32 %v805, 0.0
  %v822 = vadd.f32 %v806, 0.0
  %v823 = vadd.f32 %v807, 0.0
  %v824 = vsub.f32 %v808, 1.0
  %v825 = vsub.f32 %v809, 1.0
  %v826 = vsub.f32 %v810, 1.0
  %v827 = vsub.f32 %v811, 1.0
  %v828 = vsub.f32 %v812, 1.0
  %v829 = vsub.f32 %v813, 1.0
  %v830 = vsub.f32 %v814, 1.0
  %v831 = vsub.f32 %v815, 1.0
  %v832 = vsub.f32 %v816, 1.0
  %v833 = vsub.f32 %v817, 1.0
  %v834 = vsub.f32 %v818, 1.0
  %v835 = vsub.f32 %v819, 1.0
  %v836 = vsub.f32 %v820, 1.0
  %v837 = vsub.f32 %v821, 1.0
  %v838 = vsub.f32 %v822, 1.0
  %v839 = vsub.f32 %v823, 1.0
  %vm840 = vcmp.ge.f32.partialorder %v824, 0.0
  %vm841 = vcmp.ge.f32.partialorder %v825, 0.0
  %vm842 = vcmp.ge.f32.partialorder %v826, 0.0
  %vm843 = vcmp.ge.f32.partialorder %v827, 0.0
  %vm844 = vcmp.ge.f32.partialorder %v828, 0.0
  %vm845 = vcmp.ge.f32.partialorder %v829, 0.0
  %vm846 = vcmp.ge.f32.partialorder %v830, 0.0
  %vm847 = vcmp.ge.f32.partialorder %v831, 0.0
  %vm848 = vcmp.ge.f32.partialorder %v832, 0.0
  %vm849 = vcmp.ge.f32.partialorder %v833, 0.0
  %vm850 = vcmp.ge.f32.partialorder %v834, 0.0
  %vm851 = vcmp.ge.f32.partialorder %v835, 0.0
  %vm852 = vcmp.ge.f32.partialorder %v836, 0.0
  %vm853 = vcmp.ge.f32.partialorder %v837, 0.0
  %vm854 = vcmp.ge.f32.partialorder %v838, 0.0
  %vm855 = vcmp.ge.f32.partialorder %v839, 0.0
  %v856 = vsel %vm840, 1, 0
  %v857 = vsel %vm841, 1, 0
  %v858 = vsel %vm842, 1, 0
  %v859 = vsel %vm843, 1, 0
  %v860 = vsel %vm844, 1, 0
  %v861 = vsel %vm845, 1, 0
  %v862 = vsel %vm846, 1, 0
  %v863 = vsel %vm847, 1, 0
  %v864 = vsel %vm848, 1, 0
  %v865 = vsel %vm849, 1, 0
  %v866 = vsel %vm850, 1, 0
  %v867 = vsel %vm851, 1, 0
  %v868 = vsel %vm852, 1, 0
  %v869 = vsel %vm853, 1, 0
  %v870 = vsel %vm854, 1, 0
  %v871 = vsel %vm855, 1, 0
  %v872 = vcvt.s32.f32 %v856
  %v873 = vcvt.s32.f32 %v857
  %v874 = vcvt.s32.f32 %v858
  %v875 = vcvt.s32.f32 %v859
  %v876 = vcvt.s32.f32 %v860
  %v877 = vcvt.s32.f32 %v861
  %v878 = vcvt.s32.f32 %v862
  %v879 = vcvt.s32.f32 %v863
  %v880 = vcvt.s32.f32 %v864
  %v881 = vcvt.s32.f32 %v865
  %v882 = vcvt.s32.f32 %v866
  %v883 = vcvt.s32.f32 %v867
  %v884 = vcvt.s32.f32 %v868
  %v885 = vcvt.s32.f32 %v869
  %v886 = vcvt.s32.f32 %v870
  %v887 = vcvt.s32.f32 %v871
  %888 = vst [vmem:[#allocation3] sm:$0x1] %v872
  %889 = vst [vmem:[#allocation3 + $0x8] sm:$0x1] %v873
  %890 = vst [vmem:[#allocation3 + $0x10] sm:$0x1] %v874
  %891 = vst [vmem:[#allocation3 + $0x18] sm:$0x1] %v875
  %892 = vst [vmem:[#allocation3 + $0x20] sm:$0x1] %v876
  %893 = vst [vmem:[#allocation3 + $0x28] sm:$0x1] %v877
  %894 = vst [vmem:[#allocation3 + $0x30] sm:$0x1] %v878
  %895 = vst [vmem:[#allocation3 + $0x38] sm:$0x1] %v879
  %896 = vst [vmem:[#allocation3 + $0x40] sm:$0x1] %v880
  %897 = vst [vmem:[#allocation3 + $0x48] sm:$0x1] %v881
  %898 = vst [vmem:[#allocation3 + $0x50] sm:$0x1] %v882
  %899 = vst [vmem:[#allocation3 + $0x58] sm:$0x1] %v883
  %900 = vst [vmem:[#allocation3 + $0x60] sm:$0x1] %v884
  %901 = vst [vmem:[#allocation3 + $0x68] sm:$0x1] %v885
  %902 = vst [vmem:[#allocation3 + $0x70] sm:$0x1] %v886
  %903 = vst [vmem:[#allocation3 + $0x78] sm:$0x1] %v887
  %v904 = vsub.f32 1.0, %v872
  %v905 = vsub.f32 1.0, %v873
  %v906 = vsub.f32 1.0, %v874
  %v907 = vsub.f32 1.0, %v875
  %v908 = vsub.f32 1.0, %v876
  %v909 = vsub.f32 1.0, %v877
  %v910 = vsub.f32 1.0, %v878
  %v911 = vsub.f32 1.0, %v879
  %v912 = vsub.f32 1.0, %v880
  %v913 = vsub.f32 1.0, %v881
  %v914 = vsub.f32 1.0, %v882
  %v915 = vsub.f32 1.0, %v883
  %v916 = vsub.f32 1.0, %v884
  %v917 = vsub.f32 1.0, %v885
  %v918 = vsub.f32 1.0, %v886
  %v919 = vsub.f32 1.0, %v887
  %v920 = vmul.f32 %v808, %v904
  %v921 = vmul.f32 %v809, %v905
  %v922 = vmul.f32 %v810, %v906
  %v923 = vmul.f32 %v811, %v907
  %v924 = vmul.f32 %v812, %v908
  %v925 = vmul.f32 %v813, %v909
  %v926 = vmul.f32 %v814, %v910
  %v927 = vmul.f32 %v815, %v911
  %v928 = vmul.f32 %v816, %v912
  %v929 = vmul.f32 %v817, %v913
  %v930 = vmul.f32 %v818, %v914
  %v931 = vmul.f32 %v819, %v915
  %v932 = vmul.f32 %v820, %v916
  %v933 = vmul.f32 %v821, %v917
  %v934 = vmul.f32 %v822, %v918
  %v935 = vmul.f32 %v823, %v919
  %v936 = vmul.f32 %v920, 0.5
  %v937 = vmul.f32 %v921, 0.5
  %v938 = vmul.f32 %v922, 0.5
  %v939 = vmul.f32 %v923, 0.5
  %v940 = vmul.f32 %v924, 0.5
  %v941 = vmul.f32 %v925, 0.5
  %v942 = vmul.f32 %v926, 0.5
  %v943 = vmul.f32 %v927, 0.5
  %v944 = vmul.f32 %v928, 0.5
  %v945 = vmul.f32 %v929, 0.5
  %v946 = vmul.f32 %v930, 0.5
  %v947 = vmul.f32 %v931, 0.5
  %v948 = vmul.f32 %v932, 0.5
  %v949 = vmul.f32 %v933, 0.5
  %v950 = vmul.f32 %v934, 0.5
  %v951 = vmul.f32 %v935, 0.5
  %v952 = vld [vmem:[#allocation2 + $0x1] sm:$0x1]
  %v953 = vld [vmem:[#allocation2 + $0x9] sm:$0x1]
  %v954 = vld [vmem:[#allocation2 + $0x11] sm:$0x1]
  %v955 = vld [vmem:[#allocation2 + $0x19] sm:$0x1]
  %v956 = vld [vmem:[#allocation2 + $0x21] sm:$0x1]
  %v957 = vld [vmem:[#allocation2 + $0x29] sm:$0x1]
  %v958 = vld [vmem:[#allocation2 + $0x31] sm:$0x1]
  %v959 = vld [vmem:[#allocation2 + $0x39] sm:$0x1]
  %v960 = vld [vmem:[#allocation2 + $0x41] sm:$0x1]
  %v961 = vld [vmem:[#allocation2 + $0x49] sm:$0x1]
  %v962 = vld [vmem:[#allocation2 + $0x51] sm:$0x1]
  %v963 = vld [vmem:[#allocation2 + $0x59] sm:$0x1]
  %v964 = vld [vmem:[#allocation2 + $0x61] sm:$0x1]
  %v965 = vld [vmem:[#allocation2 + $0x69] sm:$0x1]
  %v966 = vld [vmem:[#allocation2 + $0x71] sm:$0x1]
  %v967 = vld [vmem:[#allocation2 + $0x79] sm:$0x1]
  %v968 = vadd.f32 %v936, %v952
  %v969 = vadd.f32 %v937, %v953
  %v970 = vadd.f32 %v938, %v954
  %v971 = vadd.f32 %v939, %v955
  %v972 = vadd.f32 %v940, %v956
  %v973 = vadd.f32 %v941, %v957
  %v974 = vadd.f32 %v942, %v958
  %v975 = vadd.f32 %v943, %v959
  %v976 = vadd.f32 %v944, %v960
  %v977 = vadd.f32 %v945, %v961
  %v978 = vadd.f32 %v946, %v962
  %v979 = vadd.f32 %v947, %v963
  %v980 = vadd.f32 %v948, %v964
  %v981 = vadd.f32 %v949, %v965
  %v982 = vadd.f32 %v950, %v966
  %v983 = vadd.f32 %v951, %v967
  %v984 = vsub.f32 %v968, 1.0
  %v985 = vsub.f32 %v969, 1.0
  %v986 = vsub.f32 %v970, 1.0
  %v987 = vsub.f32 %v971, 1.0
  %v988 = vsub.f32 %v972, 1.0
  %v989 = vsub.f32 %v973, 1.0
  %v990 = vsub.f32 %v974, 1.0
  %v991 = vsub.f32 %v975, 1.0
  %v992 = vsub.f32 %v976, 1.0
  %v993 = vsub.f32 %v977, 1.0
  %v994 = vsub.f32 %v978, 1.0
  %v995 = vsub.f32 %v979, 1.0
  %v996 = vsub.f32 %v980, 1.0
  %v997 = vsub.f32 %v981, 1.0
  %v998 = vsub.f32 %v982, 1.0
  %v999 = vsub.f32 %v983, 1.0
  %vm1000 = vcmp.ge.f32.partialorder %v984, 0.0
  %vm1001 = vcmp.ge.f32.partialorder %v985, 0.0
  %vm1002 = vcmp.ge.f32.partialorder %v986, 0.0
  %vm1003 = vcmp.ge.f32.partialorder %v987, 0.0
  %vm1004 = vcmp.ge.f32.partialorder %v988, 0.0
  %vm1005 = vcmp.ge.f32.partialorder %v989, 0.0
  %vm1006 = vcmp.ge.f32.partialorder %v990, 0.0
  %vm1007 = vcmp.ge.f32.partialorder %v991, 0.0
  %vm1008 = vcmp.ge.f32.partialorder %v992, 0.0
  %vm1009 = vcmp.ge.f32.partialorder %v993, 0.0
  %vm1010 = vcmp.ge.f32.partialorder %v994, 0.0
  %vm1011 = vcmp.ge.f32.partialorder %v995, 0.0
  %vm1012 = vcmp.ge.f32.partialorder %v996, 0.0
  %vm1013 = vcmp.ge.f32.partialorder %v997, 0.0
  %vm1014 = vcmp.ge.f32.partialorder %v998, 0.0
  %vm1015 = vcmp.ge.f32.partialorder %v999, 0.0
  %v1016 = vsel %vm1000, 1, 0
  %v1017 = vsel %vm1001, 1, 0
  %v1018 = vsel %vm1002, 1, 0
  %v1019 = vsel %vm1003, 1, 0
  %v1020 = vsel %vm1004, 1, 0
  %v1021 = vsel %vm1005, 1, 0
  %v1022 = vsel %vm1006, 1, 0
  %v1023 = vsel %vm1007, 1, 0
  %v1024 = vsel %vm1008, 1, 0
  %v1025 = vsel %vm1009, 1, 0
  %v1026 = vsel %vm1010, 1, 0
  %v1027 = vsel %vm1011, 1, 0
  %v1028 = vsel %vm1012, 1, 0
  %v1029 = vsel %vm1013, 1, 0
  %v1030 = vsel %vm1014, 1, 0
  %v1031 = vsel %vm1015, 1, 0
  %v1032 = vcvt.s32.f32 %v1016
  %v1033 = vcvt.s32.f32 %v1017
  %v1034 = vcvt.s32.f32 %v1018
  %v1035 = vcvt.s32.f32 %v1019
  %v1036 = vcvt.s32.f32 %v1020
  %v1037 = vcvt.s32.f32 %v1021
  %v1038 = vcvt.s32.f32 %v1022
  %v1039 = vcvt.s32.f32 %v1023
  %v1040 = vcvt.s32.f32 %v1024
  %v1041 = vcvt.s32.f32 %v1025
  %v1042 = vcvt.s32.f32 %v1026
  %v1043 = vcvt.s32.f32 %v1027
  %v1044 = vcvt.s32.f32 %v1028
  %v1045 = vcvt.s32.f32 %v1029
  %v1046 = vcvt.s32.f32 %v1030
  %v1047 = vcvt.s32.f32 %v1031
  %1048 = vst [vmem:[#allocation3 + $0x1] sm:$0x1] %v1032
  %1049 = vst [vmem:[#allocation3 + $0x9] sm:$0x1] %v1033
  %1050 = vst [vmem:[#allocation3 + $0x11] sm:$0x1] %v1034
  %1051 = vst [vmem:[#allocation3 + $0x19] sm:$0x1] %v1035
  %1052 = vst [vmem:[#allocation3 + $0x21] sm:$0x1] %v1036
  %1053 = vst [vmem:[#allocation3 + $0x29] sm:$0x1] %v1037
  %1054 = vst [vmem:[#allocation3 + $0x31] sm:$0x1] %v1038
  %1055 = vst [vmem:[#allocation3 + $0x39] sm:$0x1] %v1039
  %1056 = vst [vmem:[#allocation3 + $0x41] sm:$0x1] %v1040
  %1057 = vst [vmem:[#allocation3 + $0x49] sm:$0x1] %v1041
  %1058 = vst [vmem:[#allocation3 + $0x51] sm:$0x1] %v1042
  %1059 = vst [vmem:[#allocation3 + $0x59] sm:$0x1] %v1043
  %1060 = vst [vmem:[#allocation3 + $0x61] sm:$0x1] %v1044
  %1061 = vst [vmem:[#allocation3 + $0x69] sm:$0x1] %v1045
  %1062 = vst [vmem:[#allocation3 + $0x71] sm:$0x1] %v1046
  %1063 = vst [vmem:[#allocation3 + $0x79] sm:$0x1] %v1047
  %v1064 = vsub.f32 1.0, %v1032
  %v1065 = vsub.f32 1.0, %v1033
  %v1066 = vsub.f32 1.0, %v1034
  %v1067 = vsub.f32 1.0, %v1035
  %v1068 = vsub.f32 1.0, %v1036
  %v1069 = vsub.f32 1.0, %v1037
  %v1070 = vsub.f32 1.0, %v1038
  %v1071 = vsub.f32 1.0, %v1039
  %v1072 = vsub.f32 1.0, %v1040
  %v1073 = vsub.f32 1.0, %v1041
  %v1074 = vsub.f32 1.0, %v1042
  %v1075 = vsub.f32 1.0, %v1043
  %v1076 = vsub.f32 1.0, %v1044
  %v1077 = vsub.f32 1.0, %v1045
  %v1078 = vsub.f32 1.0, %v1046
  %v1079 = vsub.f32 1.0, %v1047
  %v1080 = vmul.f32 %v968, %v1064
  %v1081 = vmul.f32 %v969, %v1065
  %v1082 = vmul.f32 %v970, %v1066
  %v1083 = vmul.f32 %v971, %v1067
  %v1084 = vmul.f32 %v972, %v1068
  %v1085 = vmul.f32 %v973, %v1069
  %v1086 = vmul.f32 %v974, %v1070
  %v1087 = vmul.f32 %v975, %v1071
  %v1088 = vmul.f32 %v976, %v1072
  %v1089 = vmul.f32 %v977, %v1073
  %v1090 = vmul.f32 %v978, %v1074
  %v1091 = vmul.f32 %v979, %v1075
  %v1092 = vmul.f32 %v980, %v1076
  %v1093 = vmul.f32 %v981, %v1077
  %v1094 = vmul.f32 %v982, %v1078
  %v1095 = vmul.f32 %v983, %v1079
  %v1096 = vmul.f32 %v1080, 0.5
  %v1097 = vmul.f32 %v1081, 0.5
  %v1098 = vmul.f32 %v1082, 0.5
  %v1099 = vmul.f32 %v1083, 0.5
  %v1100 = vmul.f32 %v1084, 0.5
  %v1101 = vmul.f32 %v1085, 0.5
  %v1102 = vmul.f32 %v1086, 0.5
  %v1103 = vmul.f32 %v1087, 0.5
  %v1104 = vmul.f32 %v1088, 0.5
  %v1105 = vmul.f32 %v1089, 0.5
  %v1106 = vmul.f32 %v1090, 0.5
  %v1107 = vmul.f32 %v1091, 0.5
  %v1108 = vmul.f32 %v1092, 0.5
  %v1109 = vmul.f32 %v1093, 0.5
  %v1110 = vmul.f32 %v1094, 0.5
  %v1111 = vmul.f32 %v1095, 0.5
  %v1112 = vld [vmem:[#allocation2 + $0x2] sm:$0x1]
  %v1113 = vld [vmem:[#allocation2 + $0xa] sm:$0x1]
  %v1114 = vld [vmem:[#allocation2 + $0x12] sm:$0x1]
  %v1115 = vld [vmem:[#allocation2 + $0x1a] sm:$0x1]
  %v1116 = vld [vmem:[#allocation2 + $0x22] sm:$0x1]
  %v1117 = vld [vmem:[#allocation2 + $0x2a] sm:$0x1]
  %v1118 = vld [vmem:[#allocation2 + $0x32] sm:$0x1]
  %v1119 = vld [vmem:[#allocation2 + $0x3a] sm:$0x1]
  %v1120 = vld [vmem:[#allocation2 + $0x42] sm:$0x1]
  %v1121 = vld [vmem:[#allocation2 + $0x4a] sm:$0x1]
  %v1122 = vld [vmem:[#allocation2 + $0x52] sm:$0x1]
  %v1123 = vld [vmem:[#allocation2 + $0x5a] sm:$0x1]
  %v1124 = vld [vmem:[#allocation2 + $0x62] sm:$0x1]
  %v1125 = vld [vmem:[#allocation2 + $0x6a] sm:$0x1]
  %v1126 = vld [vmem:[#allocation2 + $0x72] sm:$0x1]
  %v1127 = vld [vmem:[#allocation2 + $0x7a] sm:$0x1]
  %v1128 = vadd.f32 %v1096, %v1112
  %v1129 = vadd.f32 %v1097, %v1113
  %v1130 = vadd.f32 %v1098, %v1114
  %v1131 = vadd.f32 %v1099, %v1115
  %v1132 = vadd.f32 %v1100, %v1116
  %v1133 = vadd.f32 %v1101, %v1117
  %v1134 = vadd.f32 %v1102, %v1118
  %v1135 = vadd.f32 %v1103, %v1119
  %v1136 = vadd.f32 %v1104, %v1120
  %v1137 = vadd.f32 %v1105, %v1121
  %v1138 = vadd.f32 %v1106, %v1122
  %v1139 = vadd.f32 %v1107, %v1123
  %v1140 = vadd.f32 %v1108, %v1124
  %v1141 = vadd.f32 %v1109, %v1125
  %v1142 = vadd.f32 %v1110, %v1126
  %v1143 = vadd.f32 %v1111, %v1127
  %v1144 = vsub.f32 %v1128, 1.0
  %v1145 = vsub.f32 %v1129, 1.0
  %v1146 = vsub.f32 %v1130, 1.0
  %v1147 = vsub.f32 %v1131, 1.0
  %v1148 = vsub.f32 %v1132, 1.0
  %v1149 = vsub.f32 %v1133, 1.0
  %v1150 = vsub.f32 %v1134, 1.0
  %v1151 = vsub.f32 %v1135, 1.0
  %v1152 = vsub.f32 %v1136, 1.0
  %v1153 = vsub.f32 %v1137, 1.0
  %v1154 = vsub.f32 %v1138, 1.0
  %v1155 = vsub.f32 %v1139, 1.0
  %v1156 = vsub.f32 %v1140, 1.0
  %v1157 = vsub.f32 %v1141, 1.0
  %v1158 = vsub.f32 %v1142, 1.0
  %v1159 = vsub.f32 %v1143, 1.0
  %vm1160 = vcmp.ge.f32.partialorder %v1144, 0.0
  %vm1161 = vcmp.ge.f32.partialorder %v1145, 0.0
  %vm1162 = vcmp.ge.f32.partialorder %v1146, 0.0
  %vm1163 = vcmp.ge.f32.partialorder %v1147, 0.0
  %vm1164 = vcmp.ge.f32.partialorder %v1148, 0.0
  %vm1165 = vcmp.ge.f32.partialorder %v1149, 0.0
  %vm1166 = vcmp.ge.f32.partialorder %v1150, 0.0
  %vm1167 = vcmp.ge.f32.partialorder %v1151, 0.0
  %vm1168 = vcmp.ge.f32.partialorder %v1152, 0.0
  %vm1169 = vcmp.ge.f32.partialorder %v1153, 0.0
  %vm1170 = vcmp.ge.f32.partialorder %v1154, 0.0
  %vm1171 = vcmp.ge.f32.partialorder %v1155, 0.0
  %vm1172 = vcmp.ge.f32.partialorder %v1156, 0.0
  %vm1173 = vcmp.ge.f32.partialorder %v1157, 0.0
  %vm1174 = vcmp.ge.f32.partialorder %v1158, 0.0
  %vm1175 = vcmp.ge.f32.partialorder %v1159, 0.0
  %v1176 = vsel %vm1160, 1, 0
  %v1177 = vsel %vm1161, 1, 0
  %v1178 = vsel %vm1162, 1, 0
  %v1179 = vsel %vm1163, 1, 0
  %v1180 = vsel %vm1164, 1, 0
  %v1181 = vsel %vm1165, 1, 0
  %v1182 = vsel %vm1166, 1, 0
  %v1183 = vsel %vm1167, 1, 0
  %v1184 = vsel %vm1168, 1, 0
  %v1185 = vsel %vm1169, 1, 0
  %v1186 = vsel %vm1170, 1, 0
  %v1187 = vsel %vm1171, 1, 0
  %v1188 = vsel %vm1172, 1, 0
  %v1189 = vsel %vm1173, 1, 0
  %v1190 = vsel %vm1174, 1, 0
  %v1191 = vsel %vm1175, 1, 0
  %v1192 = vcvt.s32.f32 %v1176
  %v1193 = vcvt.s32.f32 %v1177
  %v1194 = vcvt.s32.f32 %v1178
  %v1195 = vcvt.s32.f32 %v1179
  %v1196 = vcvt.s32.f32 %v1180
  %v1197 = vcvt.s32.f32 %v1181
  %v1198 = vcvt.s32.f32 %v1182
  %v1199 = vcvt.s32.f32 %v1183
  %v1200 = vcvt.s32.f32 %v1184
  %v1201 = vcvt.s32.f32 %v1185
  %v1202 = vcvt.s32.f32 %v1186
  %v1203 = vcvt.s32.f32 %v1187
  %v1204 = vcvt.s32.f32 %v1188
  %v1205 = vcvt.s32.f32 %v1189
  %v1206 = vcvt.s32.f32 %v1190
  %v1207 = vcvt.s32.f32 %v1191
  %1208 = vst [vmem:[#allocation3 + $0x2] sm:$0x1] %v1192
  %1209 = vst [vmem:[#allocation3 + $0xa] sm:$0x1] %v1193
  %1210 = vst [vmem:[#allocation3 + $0x12] sm:$0x1] %v1194
  %1211 = vst [vmem:[#allocation3 + $0x1a] sm:$0x1] %v1195
  %1212 = vst [vmem:[#allocation3 + $0x22] sm:$0x1] %v1196
  %1213 = vst [vmem:[#allocation3 + $0x2a] sm:$0x1] %v1197
  %1214 = vst [vmem:[#allocation3 + $0x32] sm:$0x1] %v1198
  %1215 = vst [vmem:[#allocation3 + $0x3a] sm:$0x1] %v1199
  %1216 = vst [vmem:[#allocation3 + $0x42] sm:$0x1] %v1200
  %1217 = vst [vmem:[#allocation3 + $0x4a] sm:$0x1] %v1201
  %1218 = vst [vmem:[#allocation3 + $0x52] sm:$0x1] %v1202
  %1219 = vst [vmem:[#allocation3 + $0x5a] sm:$0x1] %v1203
  %1220 = vst [vmem:[#allocation3 + $0x62] sm:$0x1] %v1204
  %1221 = vst [vmem:[#allocation3 + $0x6a] sm:$0x1] %v1205
  %1222 = vst [vmem:[#allocation3 + $0x72] sm:$0x1] %v1206
  %1223 = vst [vmem:[#allocation3 + $0x7a] sm:$0x1] %v1207
  %v1224 = vsub.f32 1.0, %v1192
  %v1225 = vsub.f32 1.0, %v1193
  %v1226 = vsub.f32 1.0, %v1194
  %v1227 = vsub.f32 1.0, %v1195
  %v1228 = vsub.f32 1.0, %v1196
  %v1229 = vsub.f32 1.0, %v1197
  %v1230 = vsub.f32 1.0, %v1198
  %v1231 = vsub.f32 1.0, %v1199
  %v1232 = vsub.f32 1.0, %v1200
  %v1233 = vsub.f32 1.0, %v1201
  %v1234 = vsub.f32 1.0, %v1202
  %v1235 = vsub.f32 1.0, %v1203
  %v1236 = vsub.f32 1.0, %v1204
  %v1237 = vsub.f32 1.0, %v1205
  %v1238 = vsub.f32 1.0, %v1206
  %v1239 = vsub.f32 1.0, %v1207
  %v1240 = vmul.f32 %v1128, %v1224
  %v1241 = vmul.f32 %v1129, %v1225
  %v1242 = vmul.f32 %v1130, %v1226
  %v1243 = vmul.f32 %v1131, %v1227
  %v1244 = vmul.f32 %v1132, %v1228
  %v1245 = vmul.f32 %v1133, %v1229
  %v1246 = vmul.f32 %v1134, %v1230
  %v1247 = vmul.f32 %v1135, %v1231
  %v1248 = vmul.f32 %v1136, %v1232
  %v1249 = vmul.f32 %v1137, %v1233
  %v1250 = vmul.f32 %v1138, %v1234
  %v1251 = vmul.f32 %v1139, %v1235
  %v1252 = vmul.f32 %v1140, %v1236
  %v1253 = vmul.f32 %v1141, %v1237
  %v1254 = vmul.f32 %v1142, %v1238
  %v1255 = vmul.f32 %v1143, %v1239
  %v1256 = vmul.f32 %v1240, 0.5
  %v1257 = vmul.f32 %v1241, 0.5
  %v1258 = vmul.f32 %v1242, 0.5
  %v1259 = vmul.f32 %v1243, 0.5
  %v1260 = vmul.f32 %v1244, 0.5
  %v1261 = vmul.f32 %v1245, 0.5
  %v1262 = vmul.f32 %v1246, 0.5
  %v1263 = vmul.f32 %v1247, 0.5
  %v1264 = vmul.f32 %v1248, 0.5
  %v1265 = vmul.f32 %v1249, 0.5
  %v1266 = vmul.f32 %v1250, 0.5
  %v1267 = vmul.f32 %v1251, 0.5
  %v1268 = vmul.f32 %v1252, 0.5
  %v1269 = vmul.f32 %v1253, 0.5
  %v1270 = vmul.f32 %v1254, 0.5
  %v1271 = vmul.f32 %v1255, 0.5
  %v1272 = vld [vmem:[#allocation2 + $0x3] sm:$0x1]
  %v1273 = vld [vmem:[#allocation2 + $0xb] sm:$0x1]
  %v1274 = vld [vmem:[#allocation2 + $0x13] sm:$0x1]
  %v1275 = vld [vmem:[#allocation2 + $0x1b] sm:$0x1]
  %v1276 = vld [vmem:[#allocation2 + $0x23] sm:$0x1]
  %v1277 = vld [vmem:[#allocation2 + $0x2b] sm:$0x1]
  %v1278 = vld [vmem:[#allocation2 + $0x33] sm:$0x1]
  %v1279 = vld [vmem:[#allocation2 + $0x3b] sm:$0x1]
  %v1280 = vld [vmem:[#allocation2 + $0x43] sm:$0x1]
  %v1281 = vld [vmem:[#allocation2 + $0x4b] sm:$0x1]
  %v1282 = vld [vmem:[#allocation2 + $0x53] sm:$0x1]
  %v1283 = vld [vmem:[#allocation2 + $0x5b] sm:$0x1]
  %v1284 = vld [vmem:[#allocation2 + $0x63] sm:$0x1]
  %v1285 = vld [vmem:[#allocation2 + $0x6b] sm:$0x1]
  %v1286 = vld [vmem:[#allocation2 + $0x73] sm:$0x1]
  %v1287 = vld [vmem:[#allocation2 + $0x7b] sm:$0x1]
  %v1288 = vadd.f32 %v1256, %v1272
  %v1289 = vadd.f32 %v1257, %v1273
  %v1290 = vadd.f32 %v1258, %v1274
  %v1291 = vadd.f32 %v1259, %v1275
  %v1292 = vadd.f32 %v1260, %v1276
  %v1293 = vadd.f32 %v1261, %v1277
  %v1294 = vadd.f32 %v1262, %v1278
  %v1295 = vadd.f32 %v1263, %v1279
  %v1296 = vadd.f32 %v1264, %v1280
  %v1297 = vadd.f32 %v1265, %v1281
  %v1298 = vadd.f32 %v1266, %v1282
  %v1299 = vadd.f32 %v1267, %v1283
  %v1300 = vadd.f32 %v1268, %v1284
  %v1301 = vadd.f32 %v1269, %v1285
  %v1302 = vadd.f32 %v1270, %v1286
  %v1303 = vadd.f32 %v1271, %v1287
  %v1304 = vsub.f32 %v1288, 1.0
  %v1305 = vsub.f32 %v1289, 1.0
  %v1306 = vsub.f32 %v1290, 1.0
  %v1307 = vsub.f32 %v1291, 1.0
  %v1308 = vsub.f32 %v1292, 1.0
  %v1309 = vsub.f32 %v1293, 1.0
  %v1310 = vsub.f32 %v1294, 1.0
  %v1311 = vsub.f32 %v1295, 1.0
  %v1312 = vsub.f32 %v1296, 1.0
  %v1313 = vsub.f32 %v1297, 1.0
  %v1314 = vsub.f32 %v1298, 1.0
  %v1315 = vsub.f32 %v1299, 1.0
  %v1316 = vsub.f32 %v1300, 1.0
  %v1317 = vsub.f32 %v1301, 1.0
  %v1318 = vsub.f32 %v1302, 1.0
  %v1319 = vsub.f32 %v1303, 1.0
  %vm1320 = vcmp.ge.f32.partialorder %v1304, 0.0
  %vm1321 = vcmp.ge.f32.partialorder %v1305, 0.0
  %vm1322 = vcmp.ge.f32.partialorder %v1306, 0.0
  %vm1323 = vcmp.ge.f32.partialorder %v1307, 0.0
  %vm1324 = vcmp.ge.f32.partialorder %v1308, 0.0
  %vm1325 = vcmp.ge.f32.partialorder %v1309, 0.0
  %vm1326 = vcmp.ge.f32.partialorder %v1310, 0.0
  %vm1327 = vcmp.ge.f32.partialorder %v1311, 0.0
  %vm1328 = vcmp.ge.f32.partialorder %v1312, 0.0
  %vm1329 = vcmp.ge.f32.partialorder %v1313, 0.0
  %vm1330 = vcmp.ge.f32.partialorder %v1314, 0.0
  %vm1331 = vcmp.ge.f32.partialorder %v1315, 0.0
  %vm1332 = vcmp.ge.f32.partialorder %v1316, 0.0
  %vm1333 = vcmp.ge.f32.partialorder %v1317, 0.0
  %vm1334 = vcmp.ge.f32.partialorder %v1318, 0.0
  %vm1335 = vcmp.ge.f32.partialorder %v1319, 0.0
  %v1336 = vsel %vm1320, 1, 0
  %v1337 = vsel %vm1321, 1, 0
  %v1338 = vsel %vm1322, 1, 0
  %v1339 = vsel %vm1323, 1, 0
  %v1340 = vsel %vm1324, 1, 0
  %v1341 = vsel %vm1325, 1, 0
  %v1342 = vsel %vm1326, 1, 0
  %v1343 = vsel %vm1327, 1, 0
  %v1344 = vsel %vm1328, 1, 0
  %v1345 = vsel %vm1329, 1, 0
  %v1346 = vsel %vm1330, 1, 0
  %v1347 = vsel %vm1331, 1, 0
  %v1348 = vsel %vm1332, 1, 0
  %v1349 = vsel %vm1333, 1, 0
  %v1350 = vsel %vm1334, 1, 0
  %v1351 = vsel %vm1335, 1, 0
  %v1352 = vcvt.s32.f32 %v1336
  %v1353 = vcvt.s32.f32 %v1337
  %v1354 = vcvt.s32.f32 %v1338
  %v1355 = vcvt.s32.f32 %v1339
  %v1356 = vcvt.s32.f32 %v1340
  %v1357 = vcvt.s32.f32 %v1341
  %v1358 = vcvt.s32.f32 %v1342
  %v1359 = vcvt.s32.f32 %v1343
  %v1360 = vcvt.s32.f32 %v1344
  %v1361 = vcvt.s32.f32 %v1345
  %v1362 = vcvt.s32.f32 %v1346
  %v1363 = vcvt.s32.f32 %v1347
  %v1364 = vcvt.s32.f32 %v1348
  %v1365 = vcvt.s32.f32 %v1349
  %v1366 = vcvt.s32.f32 %v1350
  %v1367 = vcvt.s32.f32 %v1351
  %1368 = vst [vmem:[#allocation3 + $0x3] sm:$0x1] %v1352
  %1369 = vst [vmem:[#allocation3 + $0xb] sm:$0x1] %v1353
  %1370 = vst [vmem:[#allocation3 + $0x13] sm:$0x1] %v1354
  %1371 = vst [vmem:[#allocation3 + $0x1b] sm:$0x1] %v1355
  %1372 = vst [vmem:[#allocation3 + $0x23] sm:$0x1] %v1356
  %1373 = vst [vmem:[#allocation3 + $0x2b] sm:$0x1] %v1357
  %1374 = vst [vmem:[#allocation3 + $0x33] sm:$0x1] %v1358
  %1375 = vst [vmem:[#allocation3 + $0x3b] sm:$0x1] %v1359
  %1376 = vst [vmem:[#allocation3 + $0x43] sm:$0x1] %v1360
  %1377 = vst [vmem:[#allocation3 + $0x4b] sm:$0x1] %v1361
  %1378 = vst [vmem:[#allocation3 + $0x53] sm:$0x1] %v1362
  %1379 = vst [vmem:[#allocation3 + $0x5b] sm:$0x1] %v1363
  %1380 = vst [vmem:[#allocation3 + $0x63] sm:$0x1] %v1364
  %1381 = vst [vmem:[#allocation3 + $0x6b] sm:$0x1] %v1365
  %1382 = vst [vmem:[#allocation3 + $0x73] sm:$0x1] %v1366
  %1383 = vst [vmem:[#allocation3 + $0x7b] sm:$0x1] %v1367
  %v1384 = vsub.f32 1.0, %v1352
  %v1385 = vsub.f32 1.0, %v1353
  %v1386 = vsub.f32 1.0, %v1354
  %v1387 = vsub.f32 1.0, %v1355
  %v1388 = vsub.f32 1.0, %v1356
  %v1389 = vsub.f32 1.0, %v1357
  %v1390 = vsub.f32 1.0, %v1358
  %v1391 = vsub.f32 1.0, %v1359
  %v1392 = vsub.f32 1.0, %v1360
  %v1393 = vsub.f32 1.0, %v1361
  %v1394 = vsub.f32 1.0, %v1362
  %v1395 = vsub.f32 1.0, %v1363
  %v1396 = vsub.f32 1.0, %v1364
  %v1397 = vsub.f32 1.0, %v1365
  %v1398 = vsub.f32 1.0, %v1366
  %v1399 = vsub.f32 1.0, %v1367
  %v1400 = vmul.f32 %v1288, %v1384
  %v1401 = vmul.f32 %v1289, %v1385
  %v1402 = vmul.f32 %v1290, %v1386
  %v1403 = vmul.f32 %v1291, %v1387
  %v1404 = vmul.f32 %v1292, %v1388
  %v1405 = vmul.f32 %v1293, %v1389
  %v1406 = vmul.f32 %v1294, %v1390
  %v1407 = vmul.f32 %v1295, %v1391
  %v1408 = vmul.f32 %v1296, %v1392
  %v1409 = vmul.f32 %v1297, %v1393
  %v1410 = vmul.f32 %v1298, %v1394
  %v1411 = vmul.f32 %v1299, %v1395
  %v1412 = vmul.f32 %v1300, %v1396
  %v1413 = vmul.f32 %v1301, %v1397
  %v1414 = vmul.f32 %v1302, %v1398
  %v1415 = vmul.f32 %v1303, %v1399
  %v1416 = vmul.f32 %v1400, 0.5
  %v1417 = vmul.f32 %v1401, 0.5
  %v1418 = vmul.f32 %v1402, 0.5
  %v1419 = vmul.f32 %v1403, 0.5
  %v1420 = vmul.f32 %v1404, 0.5
  %v1421 = vmul.f32 %v1405, 0.5
  %v1422 = vmul.f32 %v1406, 0.5
  %v1423 = vmul.f32 %v1407, 0.5
  %v1424 = vmul.f32 %v1408, 0.5
  %v1425 = vmul.f32 %v1409, 0.5
  %v1426 = vmul.f32 %v1410, 0.5
  %v1427 = vmul.f32 %v1411, 0.5
  %v1428 = vmul.f32 %v1412, 0.5
  %v1429 = vmul.f32 %v1413, 0.5
  %v1430 = vmul.f32 %v1414, 0.5
  %v1431 = vmul.f32 %v1415, 0.5
  %v1432 = vld [vmem:[#allocation2 + $0x4] sm:$0x1]
  %v1433 = vld [vmem:[#allocation2 + $0xc] sm:$0x1]
  %v1434 = vld [vmem:[#allocation2 + $0x14] sm:$0x1]
  %v1435 = vld [vmem:[#allocation2 + $0x1c] sm:$0x1]
  %v1436 = vld [vmem:[#allocation2 + $0x24] sm:$0x1]
  %v1437 = vld [vmem:[#allocation2 + $0x2c] sm:$0x1]
  %v1438 = vld [vmem:[#allocation2 + $0x34] sm:$0x1]
  %v1439 = vld [vmem:[#allocation2 + $0x3c] sm:$0x1]
  %v1440 = vld [vmem:[#allocation2 + $0x44] sm:$0x1]
  %v1441 = vld [vmem:[#allocation2 + $0x4c] sm:$0x1]
  %v1442 = vld [vmem:[#allocation2 + $0x54] sm:$0x1]
  %v1443 = vld [vmem:[#allocation2 + $0x5c] sm:$0x1]
  %v1444 = vld [vmem:[#allocation2 + $0x64] sm:$0x1]
  %v1445 = vld [vmem:[#allocation2 + $0x6c] sm:$0x1]
  %v1446 = vld [vmem:[#allocation2 + $0x74] sm:$0x1]
  %v1447 = vld [vmem:[#allocation2 + $0x7c] sm:$0x1]
  %v1448 = vadd.f32 %v1416, %v1432
  %v1449 = vadd.f32 %v1417, %v1433
  %v1450 = vadd.f32 %v1418, %v1434
  %v1451 = vadd.f32 %v1419, %v1435
  %v1452 = vadd.f32 %v1420, %v1436
  %v1453 = vadd.f32 %v1421, %v1437
  %v1454 = vadd.f32 %v1422, %v1438
  %v1455 = vadd.f32 %v1423, %v1439
  %v1456 = vadd.f32 %v1424, %v1440
  %v1457 = vadd.f32 %v1425, %v1441
  %v1458 = vadd.f32 %v1426, %v1442
  %v1459 = vadd.f32 %v1427, %v1443
  %v1460 = vadd.f32 %v1428, %v1444
  %v1461 = vadd.f32 %v1429, %v1445
  %v1462 = vadd.f32 %v1430, %v1446
  %v1463 = vadd.f32 %v1431, %v1447
  %v1464 = vsub.f32 %v1448, 1.0
  %v1465 = vsub.f32 %v1449, 1.0
  %v1466 = vsub.f32 %v1450, 1.0
  %v1467 = vsub.f32 %v1451, 1.0
  %v1468 = vsub.f32 %v1452, 1.0
  %v1469 = vsub.f32 %v1453, 1.0
  %v1470 = vsub.f32 %v1454, 1.0
  %v1471 = vsub.f32 %v1455, 1.0
  %v1472 = vsub.f32 %v1456, 1.0
  %v1473 = vsub.f32 %v1457, 1.0
  %v1474 = vsub.f32 %v1458, 1.0
  %v1475 = vsub.f32 %v1459, 1.0
  %v1476 = vsub.f32 %v1460, 1.0
  %v1477 = vsub.f32 %v1461, 1.0
  %v1478 = vsub.f32 %v1462, 1.0
  %v1479 = vsub.f32 %v1463, 1.0
  %vm1480 = vcmp.ge.f32.partialorder %v1464, 0.0
  %vm1481 = vcmp.ge.f32.partialorder %v1465, 0.0
  %vm1482 = vcmp.ge.f32.partialorder %v1466, 0.0
  %vm1483 = vcmp.ge.f32.partialorder %v1467, 0.0
  %vm1484 = vcmp.ge.f32.partialorder %v1468, 0.0
  %vm1485 = vcmp.ge.f32.partialorder %v1469, 0.0
  %vm1486 = vcmp.ge.f32.partialorder %v1470, 0.0
  %vm1487 = vcmp.ge.f32.partialorder %v1471, 0.0
  %vm1488 = vcmp.ge.f32.partialorder %v1472, 0.0
  %vm1489 = vcmp.ge.f32.partialorder %v1473, 0.0
  %vm1490 = vcmp.ge.f32.partialorder %v1474, 0.0
  %vm1491 = vcmp.ge.f32.partialorder %v1475, 0.0
  %vm1492 = vcmp.ge.f32.partialorder %v1476, 0.0
  %vm1493 = vcmp.ge.f32.partialorder %v1477, 0.0
  %vm1494 = vcmp.ge.f32.partialorder %v1478, 0.0
  %vm1495 = vcmp.ge.f32.partialorder %v1479, 0.0
  %v1496 = vsel %vm1480, 1, 0
  %v1497 = vsel %vm1481, 1, 0
  %v1498 = vsel %vm1482, 1, 0
  %v1499 = vsel %vm1483, 1, 0
  %v1500 = vsel %vm1484, 1, 0
  %v1501 = vsel %vm1485, 1, 0
  %v1502 = vsel %vm1486, 1, 0
  %v1503 = vsel %vm1487, 1, 0
  %v1504 = vsel %vm1488, 1, 0
  %v1505 = vsel %vm1489, 1, 0
  %v1506 = vsel %vm1490, 1, 0
  %v1507 = vsel %vm1491, 1, 0
  %v1508 = vsel %vm1492, 1, 0
  %v1509 = vsel %vm1493, 1, 0
  %v1510 = vsel %vm1494, 1, 0
  %v1511 = vsel %vm1495, 1, 0
  %v1512 = vcvt.s32.f32 %v1496
  %v1513 = vcvt.s32.f32 %v1497
  %v1514 = vcvt.s32.f32 %v1498
  %v1515 = vcvt.s32.f32 %v1499
  %v1516 = vcvt.s32.f32 %v1500
  %v1517 = vcvt.s32.f32 %v1501
  %v1518 = vcvt.s32.f32 %v1502
  %v1519 = vcvt.s32.f32 %v1503
  %v1520 = vcvt.s32.f32 %v1504
  %v1521 = vcvt.s32.f32 %v1505
  %v1522 = vcvt.s32.f32 %v1506
  %v1523 = vcvt.s32.f32 %v1507
  %v1524 = vcvt.s32.f32 %v1508
  %v1525 = vcvt.s32.f32 %v1509
  %v1526 = vcvt.s32.f32 %v1510
  %v1527 = vcvt.s32.f32 %v1511
  %1528 = vst [vmem:[#allocation3 + $0x4] sm:$0x1] %v1512
  %1529 = vst [vmem:[#allocation3 + $0xc] sm:$0x1] %v1513
  %1530 = vst [vmem:[#allocation3 + $0x14] sm:$0x1] %v1514
  %1531 = vst [vmem:[#allocation3 + $0x1c] sm:$0x1] %v1515
  %1532 = vst [vmem:[#allocation3 + $0x24] sm:$0x1] %v1516
  %1533 = vst [vmem:[#allocation3 + $0x2c] sm:$0x1] %v1517
  %1534 = vst [vmem:[#allocation3 + $0x34] sm:$0x1] %v1518
  %1535 = vst [vmem:[#allocation3 + $0x3c] sm:$0x1] %v1519
  %1536 = vst [vmem:[#allocation3 + $0x44] sm:$0x1] %v1520
  %1537 = vst [vmem:[#allocation3 + $0x4c] sm:$0x1] %v1521
  %1538 = vst [vmem:[#allocation3 + $0x54] sm:$0x1] %v1522
  %1539 = vst [vmem:[#allocation3 + $0x5c] sm:$0x1] %v1523
  %1540 = vst [vmem:[#allocation3 + $0x64] sm:$0x1] %v1524
  %1541 = vst [vmem:[#allocation3 + $0x6c] sm:$0x1] %v1525
  %1542 = vst [vmem:[#allocation3 + $0x74] sm:$0x1] %v1526
  %1543 = vst [vmem:[#allocation3 + $0x7c] sm:$0x1] %v1527
  %v1544 = vsub.f32 1.0, %v1512
  %v1545 = vsub.f32 1.0, %v1513
  %v1546 = vsub.f32 1.0, %v1514
  %v1547 = vsub.f32 1.0, %v1515
  %v1548 = vsub.f32 1.0, %v1516
  %v1549 = vsub.f32 1.0, %v1517
  %v1550 = vsub.f32 1.0, %v1518
  %v1551 = vsub.f32 1.0, %v1519
  %v1552 = vsub.f32 1.0, %v1520
  %v1553 = vsub.f32 1.0, %v1521
  %v1554 = vsub.f32 1.0, %v1522
  %v1555 = vsub.f32 1.0, %v1523
  %v1556 = vsub.f32 1.0, %v1524
  %v1557 = vsub.f32 1.0, %v1525
  %v1558 = vsub.f32 1.0, %v1526
  %v1559 = vsub.f32 1.0, %v1527
  %v1560 = vmul.f32 %v1448, %v1544
  %v1561 = vmul.f32 %v1449, %v1545
  %v1562 = vmul.f32 %v1450, %v1546
  %v1563 = vmul.f32 %v1451, %v1547
  %v1564 = vmul.f32 %v1452, %v1548
  %v1565 = vmul.f32 %v1453, %v1549
  %v1566 = vmul.f32 %v1454, %v1550
  %v1567 = vmul.f32 %v1455, %v1551
  %v1568 = vmul.f32 %v1456, %v1552
  %v1569 = vmul.f32 %v1457, %v1553
  %v1570 = vmul.f32 %v1458, %v1554
  %v1571 = vmul.f32 %v1459, %v1555
  %v1572 = vmul.f32 %v1460, %v1556
  %v1573 = vmul.f32 %v1461, %v1557
  %v1574 = vmul.f32 %v1462, %v1558
  %v1575 = vmul.f32 %v1463, %v1559
  %v1576 = vmul.f32 %v1560, 0.5
  %v1577 = vmul.f32 %v1561, 0.5
  %v1578 = vmul.f32 %v1562, 0.5
  %v1579 = vmul.f32 %v1563, 0.5
  %v1580 = vmul.f32 %v1564, 0.5
  %v1581 = vmul.f32 %v1565, 0.5
  %v1582 = vmul.f32 %v1566, 0.5
  %v1583 = vmul.f32 %v1567, 0.5
  %v1584 = vmul.f32 %v1568, 0.5
  %v1585 = vmul.f32 %v1569, 0.5
  %v1586 = vmul.f32 %v1570, 0.5
  %v1587 = vmul.f32 %v1571, 0.5
  %v1588 = vmul.f32 %v1572, 0.5
  %v1589 = vmul.f32 %v1573, 0.5
  %v1590 = vmul.f32 %v1574, 0.5
  %v1591 = vmul.f32 %v1575, 0.5
  %v1592 = vld [vmem:[#allocation2 + $0x5] sm:$0x1]
  %v1593 = vld [vmem:[#allocation2 + $0xd] sm:$0x1]
  %v1594 = vld [vmem:[#allocation2 + $0x15] sm:$0x1]
  %v1595 = vld [vmem:[#allocation2 + $0x1d] sm:$0x1]
  %v1596 = vld [vmem:[#allocation2 + $0x25] sm:$0x1]
  %v1597 = vld [vmem:[#allocation2 + $0x2d] sm:$0x1]
  %v1598 = vld [vmem:[#allocation2 + $0x35] sm:$0x1]
  %v1599 = vld [vmem:[#allocation2 + $0x3d] sm:$0x1]
  %v1600 = vld [vmem:[#allocation2 + $0x45] sm:$0x1]
  %v1601 = vld [vmem:[#allocation2 + $0x4d] sm:$0x1]
  %v1602 = vld [vmem:[#allocation2 + $0x55] sm:$0x1]
  %v1603 = vld [vmem:[#allocation2 + $0x5d] sm:$0x1]
  %v1604 = vld [vmem:[#allocation2 + $0x65] sm:$0x1]
  %v1605 = vld [vmem:[#allocation2 + $0x6d] sm:$0x1]
  %v1606 = vld [vmem:[#allocation2 + $0x75] sm:$0x1]
  %v1607 = vld [vmem:[#allocation2 + $0x7d] sm:$0x1]
  %v1608 = vadd.f32 %v1576, %v1592
  %v1609 = vadd.f32 %v1577, %v1593
  %v1610 = vadd.f32 %v1578, %v1594
  %v1611 = vadd.f32 %v1579, %v1595
  %v1612 = vadd.f32 %v1580, %v1596
  %v1613 = vadd.f32 %v1581, %v1597
  %v1614 = vadd.f32 %v1582, %v1598
  %v1615 = vadd.f32 %v1583, %v1599
  %v1616 = vadd.f32 %v1584, %v1600
  %v1617 = vadd.f32 %v1585, %v1601
  %v1618 = vadd.f32 %v1586, %v1602
  %v1619 = vadd.f32 %v1587, %v1603
  %v1620 = vadd.f32 %v1588, %v1604
  %v1621 = vadd.f32 %v1589, %v1605
  %v1622 = vadd.f32 %v1590, %v1606
  %v1623 = vadd.f32 %v1591, %v1607
  %v1624 = vsub.f32 %v1608, 1.0
  %v1625 = vsub.f32 %v1609, 1.0
  %v1626 = vsub.f32 %v1610, 1.0
  %v1627 = vsub.f32 %v1611, 1.0
  %v1628 = vsub.f32 %v1612, 1.0
  %v1629 = vsub.f32 %v1613, 1.0
  %v1630 = vsub.f32 %v1614, 1.0
  %v1631 = vsub.f32 %v1615, 1.0
  %v1632 = vsub.f32 %v1616, 1.0
  %v1633 = vsub.f32 %v1617, 1.0
  %v1634 = vsub.f32 %v1618, 1.0
  %v1635 = vsub.f32 %v1619, 1.0
  %v1636 = vsub.f32 %v1620, 1.0
  %v1637 = vsub.f32 %v1621, 1.0
  %v1638 = vsub.f32 %v1622, 1.0
  %v1639 = vsub.f32 %v1623, 1.0
  %vm1640 = vcmp.ge.f32.partialorder %v1624, 0.0
  %vm1641 = vcmp.ge.f32.partialorder %v1625, 0.0
  %vm1642 = vcmp.ge.f32.partialorder %v1626, 0.0
  %vm1643 = vcmp.ge.f32.partialorder %v1627, 0.0
  %vm1644 = vcmp.ge.f32.partialorder %v1628, 0.0
  %vm1645 = vcmp.ge.f32.partialorder %v1629, 0.0
  %vm1646 = vcmp.ge.f32.partialorder %v1630, 0.0
  %vm1647 = vcmp.ge.f32.partialorder %v1631, 0.0
  %vm1648 = vcmp.ge.f32.partialorder %v1632, 0.0
  %vm1649 = vcmp.ge.f32.partialorder %v1633, 0.0
  %vm1650 = vcmp.ge.f32.partialorder %v1634, 0.0
  %vm1651 = vcmp.ge.f32.partialorder %v1635, 0.0
  %vm1652 = vcmp.ge.f32.partialorder %v1636, 0.0
  %vm1653 = vcmp.ge.f32.partialorder %v1637, 0.0
  %vm1654 = vcmp.ge.f32.partialorder %v1638, 0.0
  %vm1655 = vcmp.ge.f32.partialorder %v1639, 0.0
  %v1656 = vsel %vm1640, 1, 0
  %v1657 = vsel %vm1641, 1, 0
  %v1658 = vsel %vm1642, 1, 0
  %v1659 = vsel %vm1643, 1, 0
  %v1660 = vsel %vm1644, 1, 0
  %v1661 = vsel %vm1645, 1, 0
  %v1662 = vsel %vm1646, 1, 0
  %v1663 = vsel %vm1647, 1, 0
  %v1664 = vsel %vm1648, 1, 0
  %v1665 = vsel %vm1649, 1, 0
  %v1666 = vsel %vm1650, 1, 0
  %v1667 = vsel %vm1651, 1, 0
  %v1668 = vsel %vm1652, 1, 0
  %v1669 = vsel %vm1653, 1, 0
  %v1670 = vsel %vm1654, 1, 0
  %v1671 = vsel %vm1655, 1, 0
  %v1672 = vcvt.s32.f32 %v1656
  %v1673 = vcvt.s32.f32 %v1657
  %v1674 = vcvt.s32.f32 %v1658
  %v1675 = vcvt.s32.f32 %v1659
  %v1676 = vcvt.s32.f32 %v1660
  %v1677 = vcvt.s32.f32 %v1661
  %v1678 = vcvt.s32.f32 %v1662
  %v1679 = vcvt.s32.f32 %v1663
  %v1680 = vcvt.s32.f32 %v1664
  %v1681 = vcvt.s32.f32 %v1665
  %v1682 = vcvt.s32.f32 %v1666
  %v1683 = vcvt.s32.f32 %v1667
  %v1684 = vcvt.s32.f32 %v1668
  %v1685 = vcvt.s32.f32 %v1669
  %v1686 = vcvt.s32.f32 %v1670
  %v1687 = vcvt.s32.f32 %v1671
  %1688 = vst [vmem:[#allocation3 + $0x5] sm:$0x1] %v1672
  %1689 = vst [vmem:[#allocation3 + $0xd] sm:$0x1] %v1673
  %1690 = vst [vmem:[#allocation3 + $0x15] sm:$0x1] %v1674
  %1691 = vst [vmem:[#allocation3 + $0x1d] sm:$0x1] %v1675
  %1692 = vst [vmem:[#allocation3 + $0x25] sm:$0x1] %v1676
  %1693 = vst [vmem:[#allocation3 + $0x2d] sm:$0x1] %v1677
  %1694 = vst [vmem:[#allocation3 + $0x35] sm:$0x1] %v1678
  %1695 = vst [vmem:[#allocation3 + $0x3d] sm:$0x1] %v1679
  %1696 = vst [vmem:[#allocation3 + $0x45] sm:$0x1] %v1680
  %1697 = vst [vmem:[#allocation3 + $0x4d] sm:$0x1] %v1681
  %1698 = vst [vmem:[#allocation3 + $0x55] sm:$0x1] %v1682
  %1699 = vst [vmem:[#allocation3 + $0x5d] sm:$0x1] %v1683
  %1700 = vst [vmem:[#allocation3 + $0x65] sm:$0x1] %v1684
  %1701 = vst [vmem:[#allocation3 + $0x6d] sm:$0x1] %v1685
  %1702 = vst [vmem:[#allocation3 + $0x75] sm:$0x1] %v1686
  %1703 = vst [vmem:[#allocation3 + $0x7d] sm:$0x1] %v1687
  %v1704 = vsub.f32 1.0, %v1672
  %v1705 = vsub.f32 1.0, %v1673
  %v1706 = vsub.f32 1.0, %v1674
  %v1707 = vsub.f32 1.0, %v1675
  %v1708 = vsub.f32 1.0, %v1676
  %v1709 = vsub.f32 1.0, %v1677
  %v1710 = vsub.f32 1.0, %v1678
  %v1711 = vsub.f32 1.0, %v1679
  %v1712 = vsub.f32 1.0, %v1680
  %v1713 = vsub.f32 1.0, %v1681
  %v1714 = vsub.f32 1.0, %v1682
  %v1715 = vsub.f32 1.0, %v1683
  %v1716 = vsub.f32 1.0, %v1684
  %v1717 = vsub.f32 1.0, %v1685
  %v1718 = vsub.f32 1.0, %v1686
  %v1719 = vsub.f32 1.0, %v1687
  %v1720 = vmul.f32 %v1608, %v1704
  %v1721 = vmul.f32 %v1609, %v1705
  %v1722 = vmul.f32 %v1610, %v1706
  %v1723 = vmul.f32 %v1611, %v1707
  %v1724 = vmul.f32 %v1612, %v1708
  %v1725 = vmul.f32 %v1613, %v1709
  %v1726 = vmul.f32 %v1614, %v1710
  %v1727 = vmul.f32 %v1615, %v1711
  %v1728 = vmul.f32 %v1616, %v1712
  %v1729 = vmul.f32 %v1617, %v1713
  %v1730 = vmul.f32 %v1618, %v1714
  %v1731 = vmul.f32 %v1619, %v1715
  %v1732 = vmul.f32 %v1620, %v1716
  %v1733 = vmul.f32 %v1621, %v1717
  %v1734 = vmul.f32 %v1622, %v1718
  %v1735 = vmul.f32 %v1623, %v1719
  %v1736 = vmul.f32 %v1720, 0.5
  %v1737 = vmul.f32 %v1721, 0.5
  %v1738 = vmul.f32 %v1722, 0.5
  %v1739 = vmul.f32 %v1723, 0.5
  %v1740 = vmul.f32 %v1724, 0.5
  %v1741 = vmul.f32 %v1725, 0.5
  %v1742 = vmul.f32 %v1726, 0.5
  %v1743 = vmul.f32 %v1727, 0.5
  %v1744 = vmul.f32 %v1728, 0.5
  %v1745 = vmul.f32 %v1729, 0.5
  %v1746 = vmul.f32 %v1730, 0.5
  %v1747 = vmul.f32 %v1731, 0.5
  %v1748 = vmul.f32 %v1732, 0.5
  %v1749 = vmul.f32 %v1733, 0.5
  %v1750 = vmul.f32 %v1734, 0.5
  %v1751 = vmul.f32 %v1735, 0.5
  %v1752 = vld [vmem:[#allocation2 + $0x6] sm:$0x1]
  %v1753 = vld [vmem:[#allocation2 + $0xe] sm:$0x1]
  %v1754 = vld [vmem:[#allocation2 + $0x16] sm:$0x1]
  %v1755 = vld [vmem:[#allocation2 + $0x1e] sm:$0x1]
  %v1756 = vld [vmem:[#allocation2 + $0x26] sm:$0x1]
  %v1757 = vld [vmem:[#allocation2 + $0x2e] sm:$0x1]
  %v1758 = vld [vmem:[#allocation2 + $0x36] sm:$0x1]
  %v1759 = vld [vmem:[#allocation2 + $0x3e] sm:$0x1]
  %v1760 = vld [vmem:[#allocation2 + $0x46] sm:$0x1]
  %v1761 = vld [vmem:[#allocation2 + $0x4e] sm:$0x1]
  %v1762 = vld [vmem:[#allocation2 + $0x56] sm:$0x1]
  %v1763 = vld [vmem:[#allocation2 + $0x5e] sm:$0x1]
  %v1764 = vld [vmem:[#allocation2 + $0x66] sm:$0x1]
  %v1765 = vld [vmem:[#allocation2 + $0x6e] sm:$0x1]
  %v1766 = vld [vmem:[#allocation2 + $0x76] sm:$0x1]
  %v1767 = vld [vmem:[#allocation2 + $0x7e] sm:$0x1]
  %v1768 = vadd.f32 %v1736, %v1752
  %v1769 = vadd.f32 %v1737, %v1753
  %v1770 = vadd.f32 %v1738, %v1754
  %v1771 = vadd.f32 %v1739, %v1755
  %v1772 = vadd.f32 %v1740, %v1756
  %v1773 = vadd.f32 %v1741, %v1757
  %v1774 = vadd.f32 %v1742, %v1758
  %v1775 = vadd.f32 %v1743, %v1759
  %v1776 = vadd.f32 %v1744, %v1760
  %v1777 = vadd.f32 %v1745, %v1761
  %v1778 = vadd.f32 %v1746, %v1762
  %v1779 = vadd.f32 %v1747, %v1763
  %v1780 = vadd.f32 %v1748, %v1764
  %v1781 = vadd.f32 %v1749, %v1765
  %v1782 = vadd.f32 %v1750, %v1766
  %v1783 = vadd.f32 %v1751, %v1767
  %v1784 = vsub.f32 %v1768, 1.0
  %v1785 = vsub.f32 %v1769, 1.0
  %v1786 = vsub.f32 %v1770, 1.0
  %v1787 = vsub.f32 %v1771, 1.0
  %v1788 = vsub.f32 %v1772, 1.0
  %v1789 = vsub.f32 %v1773, 1.0
  %v1790 = vsub.f32 %v1774, 1.0
  %v1791 = vsub.f32 %v1775, 1.0
  %v1792 = vsub.f32 %v1776, 1.0
  %v1793 = vsub.f32 %v1777, 1.0
  %v1794 = vsub.f32 %v1778, 1.0
  %v1795 = vsub.f32 %v1779, 1.0
  %v1796 = vsub.f32 %v1780, 1.0
  %v1797 = vsub.f32 %v1781, 1.0
  %v1798 = vsub.f32 %v1782, 1.0
  %v1799 = vsub.f32 %v1783, 1.0
  %vm1800 = vcmp.ge.f32.partialorder %v1784, 0.0
  %vm1801 = vcmp.ge.f32.partialorder %v1785, 0.0
  %vm1802 = vcmp.ge.f32.partialorder %v1786, 0.0
  %vm1803 = vcmp.ge.f32.partialorder %v1787, 0.0
  %vm1804 = vcmp.ge.f32.partialorder %v1788, 0.0
  %vm1805 = vcmp.ge.f32.partialorder %v1789, 0.0
  %vm1806 = vcmp.ge.f32.partialorder %v1790, 0.0
  %vm1807 = vcmp.ge.f32.partialorder %v1791, 0.0
  %vm1808 = vcmp.ge.f32.partialorder %v1792, 0.0
  %vm1809 = vcmp.ge.f32.partialorder %v1793, 0.0
  %vm1810 = vcmp.ge.f32.partialorder %v1794, 0.0
  %vm1811 = vcmp.ge.f32.partialorder %v1795, 0.0
  %vm1812 = vcmp.ge.f32.partialorder %v1796, 0.0
  %vm1813 = vcmp.ge.f32.partialorder %v1797, 0.0
  %vm1814 = vcmp.ge.f32.partialorder %v1798, 0.0
  %vm1815 = vcmp.ge.f32.partialorder %v1799, 0.0
  %v1816 = vsel %vm1800, 1, 0
  %v1817 = vsel %vm1801, 1, 0
  %v1818 = vsel %vm1802, 1, 0
  %v1819 = vsel %vm1803, 1, 0
  %v1820 = vsel %vm1804, 1, 0
  %v1821 = vsel %vm1805, 1, 0
  %v1822 = vsel %vm1806, 1, 0
  %v1823 = vsel %vm1807, 1, 0
  %v1824 = vsel %vm1808, 1, 0
  %v1825 = vsel %vm1809, 1, 0
  %v1826 = vsel %vm1810, 1, 0
  %v1827 = vsel %vm1811, 1, 0
  %v1828 = vsel %vm1812, 1, 0
  %v1829 = vsel %vm1813, 1, 0
  %v1830 = vsel %vm1814, 1, 0
  %v1831 = vsel %vm1815, 1, 0
  %v1832 = vcvt.s32.f32 %v1816
  %v1833 = vcvt.s32.f32 %v1817
  %v1834 = vcvt.s32.f32 %v1818
  %v1835 = vcvt.s32.f32 %v1819
  %v1836 = vcvt.s32.f32 %v1820
  %v1837 = vcvt.s32.f32 %v1821
  %v1838 = vcvt.s32.f32 %v1822
  %v1839 = vcvt.s32.f32 %v1823
  %v1840 = vcvt.s32.f32 %v1824
  %v1841 = vcvt.s32.f32 %v1825
  %v1842 = vcvt.s32.f32 %v1826
  %v1843 = vcvt.s32.f32 %v1827
  %v1844 = vcvt.s32.f32 %v1828
  %v1845 = vcvt.s32.f32 %v1829
  %v1846 = vcvt.s32.f32 %v1830
  %v1847 = vcvt.s32.f32 %v1831
  %1848 = vst [vmem:[#allocation3 + $0x6] sm:$0x1] %v1832
  %1849 = vst [vmem:[#allocation3 + $0xe] sm:$0x1] %v1833
  %1850 = vst [vmem:[#allocation3 + $0x16] sm:$0x1] %v1834
  %1851 = vst [vmem:[#allocation3 + $0x1e] sm:$0x1] %v1835
  %1852 = vst [vmem:[#allocation3 + $0x26] sm:$0x1] %v1836
  %1853 = vst [vmem:[#allocation3 + $0x2e] sm:$0x1] %v1837
  %1854 = vst [vmem:[#allocation3 + $0x36] sm:$0x1] %v1838
  %1855 = vst [vmem:[#allocation3 + $0x3e] sm:$0x1] %v1839
  %1856 = vst [vmem:[#allocation3 + $0x46] sm:$0x1] %v1840
  %1857 = vst [vmem:[#allocation3 + $0x4e] sm:$0x1] %v1841
  %1858 = vst [vmem:[#allocation3 + $0x56] sm:$0x1] %v1842
  %1859 = vst [vmem:[#allocation3 + $0x5e] sm:$0x1] %v1843
  %1860 = vst [vmem:[#allocation3 + $0x66] sm:$0x1] %v1844
  %1861 = vst [vmem:[#allocation3 + $0x6e] sm:$0x1] %v1845
  %1862 = vst [vmem:[#allocation3 + $0x76] sm:$0x1] %v1846
  %1863 = vst [vmem:[#allocation3 + $0x7e] sm:$0x1] %v1847
  %v1864 = vsub.f32 1.0, %v1832
  %v1865 = vsub.f32 1.0, %v1833
  %v1866 = vsub.f32 1.0, %v1834
  %v1867 = vsub.f32 1.0, %v1835
  %v1868 = vsub.f32 1.0, %v1836
  %v1869 = vsub.f32 1.0, %v1837
  %v1870 = vsub.f32 1.0, %v1838
  %v1871 = vsub.f32 1.0, %v1839
  %v1872 = vsub.f32 1.0, %v1840
  %v1873 = vsub.f32 1.0, %v1841
  %v1874 = vsub.f32 1.0, %v1842
  %v1875 = vsub.f32 1.0, %v1843
  %v1876 = vsub.f32 1.0, %v1844
  %v1877 = vsub.f32 1.0, %v1845
  %v1878 = vsub.f32 1.0, %v1846
  %v1879 = vsub.f32 1.0, %v1847
  %v1880 = vmul.f32 %v1768, %v1864
  %v1881 = vmul.f32 %v1769, %v1865
  %v1882 = vmul.f32 %v1770, %v1866
  %v1883 = vmul.f32 %v1771, %v1867
  %v1884 = vmul.f32 %v1772, %v1868
  %v1885 = vmul.f32 %v1773, %v1869
  %v1886 = vmul.f32 %v1774, %v1870
  %v1887 = vmul.f32 %v1775, %v1871
  %v1888 = vmul.f32 %v1776, %v1872
  %v1889 = vmul.f32 %v1777, %v1873
  %v1890 = vmul.f32 %v1778, %v1874
  %v1891 = vmul.f32 %v1779, %v1875
  %v1892 = vmul.f32 %v1780, %v1876
  %v1893 = vmul.f32 %v1781, %v1877
  %v1894 = vmul.f32 %v1782, %v1878
  %v1895 = vmul.f32 %v1783, %v1879
  %v1896 = vmul.f32 %v1880, 0.5
  %v1897 = vmul.f32 %v1881, 0.5
  %v1898 = vmul.f32 %v1882, 0.5
  %v1899 = vmul.f32 %v1883, 0.5
  %v1900 = vmul.f32 %v1884, 0.5
  %v1901 = vmul.f32 %v1885, 0.5
  %v1902 = vmul.f32 %v1886, 0.5
  %v1903 = vmul.f32 %v1887, 0.5
  %v1904 = vmul.f32 %v1888, 0.5
  %v1905 = vmul.f32 %v1889, 0.5
  %v1906 = vmul.f32 %v1890, 0.5
  %v1907 = vmul.f32 %v1891, 0.5
  %v1908 = vmul.f32 %v1892, 0.5
  %v1909 = vmul.f32 %v1893, 0.5
  %v1910 = vmul.f32 %v1894, 0.5
  %v1911 = vmul.f32 %v1895, 0.5
  %v1912 = vld [vmem:[#allocation2 + $0x7] sm:$0x1]
  %v1913 = vld [vmem:[#allocation2 + $0xf] sm:$0x1]
  %v1914 = vld [vmem:[#allocation2 + $0x17] sm:$0x1]
  %v1915 = vld [vmem:[#allocation2 + $0x1f] sm:$0x1]
  %v1916 = vld [vmem:[#allocation2 + $0x27] sm:$0x1]
  %v1917 = vld [vmem:[#allocation2 + $0x2f] sm:$0x1]
  %v1918 = vld [vmem:[#allocation2 + $0x37] sm:$0x1]
  %v1919 = vld [vmem:[#allocation2 + $0x3f] sm:$0x1]
  %v1920 = vld [vmem:[#allocation2 + $0x47] sm:$0x1]
  %v1921 = vld [vmem:[#allocation2 + $0x4f] sm:$0x1]
  %v1922 = vld [vmem:[#allocation2 + $0x57] sm:$0x1]
  %v1923 = vld [vmem:[#allocation2 + $0x5f] sm:$0x1]
  %v1924 = vld [vmem:[#allocation2 + $0x67] sm:$0x1]
  %v1925 = vld [vmem:[#allocation2 + $0x6f] sm:$0x1]
  %v1926 = vld [vmem:[#allocation2 + $0x77] sm:$0x1]
  %v1927 = vld [vmem:[#allocation2 + $0x7f] sm:$0x1]
  %v1928 = vadd.f32 %v1896, %v1912
  %v1929 = vadd.f32 %v1897, %v1913
  %v1930 = vadd.f32 %v1898, %v1914
  %v1931 = vadd.f32 %v1899, %v1915
  %v1932 = vadd.f32 %v1900, %v1916
  %v1933 = vadd.f32 %v1901, %v1917
  %v1934 = vadd.f32 %v1902, %v1918
  %v1935 = vadd.f32 %v1903, %v1919
  %v1936 = vadd.f32 %v1904, %v1920
  %v1937 = vadd.f32 %v1905, %v1921
  %v1938 = vadd.f32 %v1906, %v1922
  %v1939 = vadd.f32 %v1907, %v1923
  %v1940 = vadd.f32 %v1908, %v1924
  %v1941 = vadd.f32 %v1909, %v1925
  %v1942 = vadd.f32 %v1910, %v1926
  %v1943 = vadd.f32 %v1911, %v1927
  %v1944 = vsub.f32 %v1928, 1.0
  %v1945 = vsub.f32 %v1929, 1.0
  %v1946 = vsub.f32 %v1930, 1.0
  %v1947 = vsub.f32 %v1931, 1.0
  %v1948 = vsub.f32 %v1932, 1.0
  %v1949 = vsub.f32 %v1933, 1.0
  %v1950 = vsub.f32 %v1934, 1.0
  %v1951 = vsub.f32 %v1935, 1.0
  %v1952 = vsub.f32 %v1936, 1.0
  %v1953 = vsub.f32 %v1937, 1.0
  %v1954 = vsub.f32 %v1938, 1.0
  %v1955 = vsub.f32 %v1939, 1.0
  %v1956 = vsub.f32 %v1940, 1.0
  %v1957 = vsub.f32 %v1941, 1.0
  %v1958 = vsub.f32 %v1942, 1.0
  %v1959 = vsub.f32 %v1943, 1.0
  %vm1960 = vcmp.ge.f32.partialorder %v1944, 0.0
  %vm1961 = vcmp.ge.f32.partialorder %v1945, 0.0
  %vm1962 = vcmp.ge.f32.partialorder %v1946, 0.0
  %vm1963 = vcmp.ge.f32.partialorder %v1947, 0.0
  %vm1964 = vcmp.ge.f32.partialorder %v1948, 0.0
  %vm1965 = vcmp.ge.f32.partialorder %v1949, 0.0
  %vm1966 = vcmp.ge.f32.partialorder %v1950, 0.0
  %vm1967 = vcmp.ge.f32.partialorder %v1951, 0.0
  %vm1968 = vcmp.ge.f32.partialorder %v1952, 0.0
  %vm1969 = vcmp.ge.f32.partialorder %v1953, 0.0
  %vm1970 = vcmp.ge.f32.partialorder %v1954, 0.0
  %vm1971 = vcmp.ge.f32.partialorder %v1955, 0.0
  %vm1972 = vcmp.ge.f32.partialorder %v1956, 0.0
  %vm1973 = vcmp.ge.f32.partialorder %v1957, 0.0
  %vm1974 = vcmp.ge.f32.partialorder %v1958, 0.0
  %vm1975 = vcmp.ge.f32.partialorder %v1959, 0.0
  %v1976 = vsel %vm1960, 1, 0
  %v1977 = vsel %vm1961, 1, 0
  %v1978 = vsel %vm1962, 1, 0
  %v1979 = vsel %vm1963, 1, 0
  %v1980 = vsel %vm1964, 1, 0
  %v1981 = vsel %vm1965, 1, 0
  %v1982 = vsel %vm1966, 1, 0
  %v1983 = vsel %vm1967, 1, 0
  %v1984 = vsel %vm1968, 1, 0
  %v1985 = vsel %vm1969, 1, 0
  %v1986 = vsel %vm1970, 1, 0
  %v1987 = vsel %vm1971, 1, 0
  %v1988 = vsel %vm1972, 1, 0
  %v1989 = vsel %vm1973, 1, 0
  %v1990 = vsel %vm1974, 1, 0
  %v1991 = vsel %vm1975, 1, 0
  %v1992 = vcvt.s32.f32 %v1976
  %v1993 = vcvt.s32.f32 %v1977
  %v1994 = vcvt.s32.f32 %v1978
  %v1995 = vcvt.s32.f32 %v1979
  %v1996 = vcvt.s32.f32 %v1980
  %v1997 = vcvt.s32.f32 %v1981
  %v1998 = vcvt.s32.f32 %v1982
  %v1999 = vcvt.s32.f32 %v1983
  %v2000 = vcvt.s32.f32 %v1984
  %v2001 = vcvt.s32.f32 %v1985
  %v2002 = vcvt.s32.f32 %v1986
  %v2003 = vcvt.s32.f32 %v1987
  %v2004 = vcvt.s32.f32 %v1988
  %v2005 = vcvt.s32.f32 %v1989
  %v2006 = vcvt.s32.f32 %v1990
  %v2007 = vcvt.s32.f32 %v1991
  %2008 = vst [vmem:[#allocation3 + $0x7] sm:$0x1] %v1992
  %2009 = vst [vmem:[#allocation3 + $0xf] sm:$0x1] %v1993
  %2010 = vst [vmem:[#allocation3 + $0x17] sm:$0x1] %v1994
  %2011 = vst [vmem:[#allocation3 + $0x1f] sm:$0x1] %v1995
  %2012 = vst [vmem:[#allocation3 + $0x27] sm:$0x1] %v1996
  %2013 = vst [vmem:[#allocation3 + $0x2f] sm:$0x1] %v1997
  %2014 = vst [vmem:[#allocation3 + $0x37] sm:$0x1] %v1998
  %2015 = vst [vmem:[#allocation3 + $0x3f] sm:$0x1] %v1999
  %2016 = vst [vmem:[#allocation3 + $0x47] sm:$0x1] %v2000
  %2017 = vst [vmem:[#allocation3 + $0x4f] sm:$0x1] %v2001
  %2018 = vst [vmem:[#allocation3 + $0x57] sm:$0x1] %v2002
  %2019 = vst [vmem:[#allocation3 + $0x5f] sm:$0x1] %v2003
  %2020 = vst [vmem:[#allocation3 + $0x67] sm:$0x1] %v2004
  %2021 = vst [vmem:[#allocation3 + $0x6f] sm:$0x1] %v2005
  %2022 = vst [vmem:[#allocation3 + $0x77] sm:$0x1] %v2006
  %2023 = vst [vmem:[#allocation3 + $0x7f] sm:$0x1] %v2007
  %v2024 = vld [vmem:[#allocation3] sm:$0xff]
  %v2025 = vld [vmem:[#allocation3 + $0x8] sm:$0xff]
  %v2026 = vld [vmem:[#allocation3 + $0x10] sm:$0xff]
  %v2027 = vld [vmem:[#allocation3 + $0x18] sm:$0xff]
  %v2028 = vld [vmem:[#allocation3 + $0x20] sm:$0xff]
  %v2029 = vld [vmem:[#allocation3 + $0x28] sm:$0xff]
  %v2030 = vld [vmem:[#allocation3 + $0x30] sm:$0xff]
  %v2031 = vld [vmem:[#allocation3 + $0x38] sm:$0xff]
  %v2032 = vld [vmem:[#allocation3 + $0x40] sm:$0xff]
  %v2033 = vld [vmem:[#allocation3 + $0x48] sm:$0xff]
  %v2034 = vld [vmem:[#allocation3 + $0x50] sm:$0xff]
  %v2035 = vld [vmem:[#allocation3 + $0x58] sm:$0xff]
  %v2036 = vld [vmem:[#allocation3 + $0x60] sm:$0xff]
  %v2037 = vld [vmem:[#allocation3 + $0x68] sm:$0xff]
  %v2038 = vld [vmem:[#allocation3 + $0x70] sm:$0xff]
  %v2039 = vld [vmem:[#allocation3 + $0x78] sm:$0xff]
  %2040 = vxpose.xlu0.b32.start [1/16] %v2024, 128
  %2041 = vxpose.xlu0.b32.cont [2/16] 0.0, 128
  %2042 = vxpose.xlu0.b32.cont [3/16] 0.0, 128
  %2043 = vxpose.xlu0.b32.cont [4/16] 0.0, 128
  %2044 = vxpose.xlu0.b32.cont [5/16] 0.0, 128
  %2045 = vxpose.xlu0.b32.cont [6/16] 0.0, 128
  %2046 = vxpose.xlu0.b32.cont [7/16] 0.0, 128
  %2047 = vxpose.xlu0.b32.cont [8/16] 0.0, 128
  %2048 = vxpose.xlu0.b32.cont [9/16] 0.0, 128
  %2049 = vxpose.xlu0.b32.cont [10/16] 0.0, 128
  %2050 = vxpose.xlu0.b32.cont [11/16] 0.0, 128
  %2051 = vxpose.xlu0.b32.cont [12/16] 0.0, 128
  %2052 = vxpose.xlu0.b32.cont [13/16] 0.0, 128
  %2053 = vxpose.xlu0.b32.cont [14/16] 0.0, 128
  %2054 = vxpose.xlu0.b32.cont [15/16] 0.0, 128
  %2055 = vxpose.xlu0.b32.end [16/16] 0.0, 128
  %v2056 = vpop.trf.xlu0
  %v2057 = vpop.trf.xlu0
  %v2058 = vpop.trf.xlu0
  %v2059 = vpop.trf.xlu0
  %v2060 = vpop.trf.xlu0
  %v2061 = vpop.trf.xlu0
  %v2062 = vpop.trf.xlu0
  %v2063 = vpop.trf.xlu0
  %v2064 = vpop.trf.xlu0
  %v2065 = vpop.trf.xlu0
  %v2066 = vpop.trf.xlu0
  %v2067 = vpop.trf.xlu0
  %v2068 = vpop.trf.xlu0
  %v2069 = vpop.trf.xlu0
  %v2070 = vpop.trf.xlu0
  %v2071 = vpop.trf.xlu0
  %2072 = vxpose.xlu0.b32.start [1/16] %v2025, 128
  %2073 = vxpose.xlu0.b32.cont [2/16] 0.0, 128
  %2074 = vxpose.xlu0.b32.cont [3/16] 0.0, 128
  %2075 = vxpose.xlu0.b32.cont [4/16] 0.0, 128
  %2076 = vxpose.xlu0.b32.cont [5/16] 0.0, 128
  %2077 = vxpose.xlu0.b32.cont [6/16] 0.0, 128
  %2078 = vxpose.xlu0.b32.cont [7/16] 0.0, 128
  %2079 = vxpose.xlu0.b32.cont [8/16] 0.0, 128
  %2080 = vxpose.xlu0.b32.cont [9/16] 0.0, 128
  %2081 = vxpose.xlu0.b32.cont [10/16] 0.0, 128
  %2082 = vxpose.xlu0.b32.cont [11/16] 0.0, 128
  %2083 = vxpose.xlu0.b32.cont [12/16] 0.0, 128
  %2084 = vxpose.xlu0.b32.cont [13/16] 0.0, 128
  %2085 = vxpose.xlu0.b32.cont [14/16] 0.0, 128
  %2086 = vxpose.xlu0.b32.cont [15/16] 0.0, 128
  %2087 = vxpose.xlu0.b32.end [16/16] 0.0, 128
  %v2088 = vpop.trf.xlu0
  %v2089 = vpop.trf.xlu0
  %v2090 = vpop.trf.xlu0
  %v2091 = vpop.trf.xlu0
  %v2092 = vpop.trf.xlu0
  %v2093 = vpop.trf.xlu0
  %v2094 = vpop.trf.xlu0
  %v2095 = vpop.trf.xlu0
  %v2096 = vpop.trf.xlu0
  %v2097 = vpop.trf.xlu0
  %v2098 = vpop.trf.xlu0
  %v2099 = vpop.trf.xlu0
  %v2100 = vpop.trf.xlu0
  %v2101 = vpop.trf.xlu0
  %v2102 = vpop.trf.xlu0
  %v2103 = vpop.trf.xlu0
  %2104 = vxpose.xlu0.b32.start [1/16] %v2026, 128
  %2105 = vxpose.xlu0.b32.cont [2/16] 0.0, 128
  %2106 = vxpose.xlu0.b32.cont [3/16] 0.0, 128
  %2107 = vxpose.xlu0.b32.cont [4/16] 0.0, 128
  %2108 = vxpose.xlu0.b32.cont [5/16] 0.0, 128
  %2109 = vxpose.xlu0.b32.cont [6/16] 0.0, 128
  %2110 = vxpose.xlu0.b32.cont [7/16] 0.0, 128
  %2111 = vxpose.xlu0.b32.cont [8/16] 0.0, 128
  %2112 = vxpose.xlu0.b32.cont [9/16] 0.0, 128
  %2113 = vxpose.xlu0.b32.cont [10/16] 0.0, 128
  %2114 = vxpose.xlu0.b32.cont [11/16] 0.0, 128
  %2115 = vxpose.xlu0.b32.cont [12/16] 0.0, 128
  %2116 = vxpose.xlu0.b32.cont [13/16] 0.0, 128
  %2117 = vxpose.xlu0.b32.cont [14/16] 0.0, 128
  %2118 = vxpose.xlu0.b32.cont [15/16] 0.0, 128
  %2119 = vxpose.xlu0.b32.end [16/16] 0.0, 128
  %v2120 = vpop.trf.xlu0
  %v2121 = vpop.trf.xlu0
  %v2122 = vpop.trf.xlu0
  %v2123 = vpop.trf.xlu0
  %v2124 = vpop.trf.xlu0
  %v2125 = vpop.trf.xlu0
  %v2126 = vpop.trf.xlu0
  %v2127 = vpop.trf.xlu0
  %v2128 = vpop.trf.xlu0
  %v2129 = vpop.trf.xlu0
  %v2130 = vpop.trf.xlu0
  %v2131 = vpop.trf.xlu0
  %v2132 = vpop.trf.xlu0
  %v2133 = vpop.trf.xlu0
  %v2134 = vpop.trf.xlu0
  %v2135 = vpop.trf.xlu0
  %2136 = vxpose.xlu0.b32.start [1/16] %v2027, 128
  %2137 = vxpose.xlu0.b32.cont [2/16] 0.0, 128
  %2138 = vxpose.xlu0.b32.cont [3/16] 0.0, 128
  %2139 = vxpose.xlu0.b32.cont [4/16] 0.0, 128
  %2140 = vxpose.xlu0.b32.cont [5/16] 0.0, 128
  %2141 = vxpose.xlu0.b32.cont [6/16] 0.0, 128
  %2142 = vxpose.xlu0.b32.cont [7/16] 0.0, 128
  %2143 = vxpose.xlu0.b32.cont [8/16] 0.0, 128
  %2144 = vxpose.xlu0.b32.cont [9/16] 0.0, 128
  %2145 = vxpose.xlu0.b32.cont [10/16] 0.0, 128
  %2146 = vxpose.xlu0.b32.cont [11/16] 0.0, 128
  %2147 = vxpose.xlu0.b32.cont [12/16] 0.0, 128
  %2148 = vxpose.xlu0.b32.cont [13/16] 0.0, 128
  %2149 = vxpose.xlu0.b32.cont [14/16] 0.0, 128
  %2150 = vxpose.xlu0.b32.cont [15/16] 0.0, 128
  %2151 = vxpose.xlu0.b32.end [16/16] 0.0, 128
  %v2152 = vpop.trf.xlu0
  %v2153 = vpop.trf.xlu0
  %v2154 = vpop.trf.xlu0
  %v2155 = vpop.trf.xlu0
  %v2156 = vpop.trf.xlu0
  %v2157 = vpop.trf.xlu0
  %v2158 = vpop.trf.xlu0
  %v2159 = vpop.trf.xlu0
  %v2160 = vpop.trf.xlu0
  %v2161 = vpop.trf.xlu0
  %v2162 = vpop.trf.xlu0
  %v2163 = vpop.trf.xlu0
  %v2164 = vpop.trf.xlu0
  %v2165 = vpop.trf.xlu0
  %v2166 = vpop.trf.xlu0
  %v2167 = vpop.trf.xlu0
  %2168 = vxpose.xlu0.b32.start [1/16] %v2028, 128
  %2169 = vxpose.xlu0.b32.cont [2/16] 0.0, 128
  %2170 = vxpose.xlu0.b32.cont [3/16] 0.0, 128
  %2171 = vxpose.xlu0.b32.cont [4/16] 0.0, 128
  %2172 = vxpose.xlu0.b32.cont [5/16] 0.0, 128
  %2173 = vxpose.xlu0.b32.cont [6/16] 0.0, 128
  %2174 = vxpose.xlu0.b32.cont [7/16] 0.0, 128
  %2175 = vxpose.xlu0.b32.cont [8/16] 0.0, 128
  %2176 = vxpose.xlu0.b32.cont [9/16] 0.0, 128
  %2177 = vxpose.xlu0.b32.cont [10/16] 0.0, 128
  %2178 = vxpose.xlu0.b32.cont [11/16] 0.0, 128
  %2179 = vxpose.xlu0.b32.cont [12/16] 0.0, 128
  %2180 = vxpose.xlu0.b32.cont [13/16] 0.0, 128
  %2181 = vxpose.xlu0.b32.cont [14/16] 0.0, 128
  %2182 = vxpose.xlu0.b32.cont [15/16] 0.0, 128
  %2183 = vxpose.xlu0.b32.end [16/16] 0.0, 128
  %v2184 = vpop.trf.xlu0
  %v2185 = vpop.trf.xlu0
  %v2186 = vpop.trf.xlu0
  %v2187 = vpop.trf.xlu0
  %v2188 = vpop.trf.xlu0
  %v2189 = vpop.trf.xlu0
  %v2190 = vpop.trf.xlu0
  %v2191 = vpop.trf.xlu0
  %v2192 = vpop.trf.xlu0
  %v2193 = vpop.trf.xlu0
  %v2194 = vpop.trf.xlu0
  %v2195 = vpop.trf.xlu0
  %v2196 = vpop.trf.xlu0
  %v2197 = vpop.trf.xlu0
  %v2198 = vpop.trf.xlu0
  %v2199 = vpop.trf.xlu0
  %2200 = vxpose.xlu0.b32.start [1/16] %v2029, 128
  %2201 = vxpose.xlu0.b32.cont [2/16] 0.0, 128
  %2202 = vxpose.xlu0.b32.cont [3/16] 0.0, 128
  %2203 = vxpose.xlu0.b32.cont [4/16] 0.0, 128
  %2204 = vxpose.xlu0.b32.cont [5/16] 0.0, 128
  %2205 = vxpose.xlu0.b32.cont [6/16] 0.0, 128
  %2206 = vxpose.xlu0.b32.cont [7/16] 0.0, 128
  %2207 = vxpose.xlu0.b32.cont [8/16] 0.0, 128
  %2208 = vxpose.xlu0.b32.cont [9/16] 0.0, 128
  %2209 = vxpose.xlu0.b32.cont [10/16] 0.0, 128
  %2210 = vxpose.xlu0.b32.cont [11/16] 0.0, 128
  %2211 = vxpose.xlu0.b32.cont [12/16] 0.0, 128
  %2212 = vxpose.xlu0.b32.cont [13/16] 0.0, 128
  %2213 = vxpose.xlu0.b32.cont [14/16] 0.0, 128
  %2214 = vxpose.xlu0.b32.cont [15/16] 0.0, 128
  %2215 = vxpose.xlu0.b32.end [16/16] 0.0, 128
  %v2216 = vpop.trf.xlu0
  %v2217 = vpop.trf.xlu0
  %v2218 = vpop.trf.xlu0
  %v2219 = vpop.trf.xlu0
  %v2220 = vpop.trf.xlu0
  %v2221 = vpop.trf.xlu0
  %v2222 = vpop.trf.xlu0
  %v2223 = vpop.trf.xlu0
  %v2224 = vpop.trf.xlu0
  %v2225 = vpop.trf.xlu0
  %v2226 = vpop.trf.xlu0
  %v2227 = vpop.trf.xlu0
  %v2228 = vpop.trf.xlu0
  %v2229 = vpop.trf.xlu0
  %v2230 = vpop.trf.xlu0
  %v2231 = vpop.trf.xlu0
  %2232 = vxpose.xlu0.b32.start [1/16] %v2030, 128
  %2233 = vxpose.xlu0.b32.cont [2/16] 0.0, 128
  %2234 = vxpose.xlu0.b32.cont [3/16] 0.0, 128
  %2235 = vxpose.xlu0.b32.cont [4/16] 0.0, 128
  %2236 = vxpose.xlu0.b32.cont [5/16] 0.0, 128
  %2237 = vxpose.xlu0.b32.cont [6/16] 0.0, 128
  %2238 = vxpose.xlu0.b32.cont [7/16] 0.0, 128
  %2239 = vxpose.xlu0.b32.cont [8/16] 0.0, 128
  %2240 = vxpose.xlu0.b32.cont [9/16] 0.0, 128
  %2241 = vxpose.xlu0.b32.cont [10/16] 0.0, 128
  %2242 = vxpose.xlu0.b32.cont [11/16] 0.0, 128
  %2243 = vxpose.xlu0.b32.cont [12/16] 0.0, 128
  %2244 = vxpose.xlu0.b32.cont [13/16] 0.0, 128
  %2245 = vxpose.xlu0.b32.cont [14/16] 0.0, 128
  %2246 = vxpose.xlu0.b32.cont [15/16] 0.0, 128
  %2247 = vxpose.xlu0.b32.end [16/16] 0.0, 128
  %v2248 = vpop.trf.xlu0
  %v2249 = vpop.trf.xlu0
  %v2250 = vpop.trf.xlu0
  %v2251 = vpop.trf.xlu0
  %v2252 = vpop.trf.xlu0
  %v2253 = vpop.trf.xlu0
  %v2254 = vpop.trf.xlu0
  %v2255 = vpop.trf.xlu0
  %v2256 = vpop.trf.xlu0
  %v2257 = vpop.trf.xlu0
  %v2258 = vpop.trf.xlu0
  %v2259 = vpop.trf.xlu0
  %v2260 = vpop.trf.xlu0
  %v2261 = vpop.trf.xlu0
  %v2262 = vpop.trf.xlu0
  %v2263 = vpop.trf.xlu0
  %2264 = vxpose.xlu0.b32.start [1/16] %v2031, 128
  %2265 = vxpose.xlu0.b32.cont [2/16] 0.0, 128
  %2266 = vxpose.xlu0.b32.cont [3/16] 0.0, 128
  %2267 = vxpose.xlu0.b32.cont [4/16] 0.0, 128
  %2268 = vxpose.xlu0.b32.cont [5/16] 0.0, 128
  %2269 = vxpose.xlu0.b32.cont [6/16] 0.0, 128
  %2270 = vxpose.xlu0.b32.cont [7/16] 0.0, 128
  %2271 = vxpose.xlu0.b32.cont [8/16] 0.0, 128
  %2272 = vxpose.xlu0.b32.cont [9/16] 0.0, 128
  %2273 = vxpose.xlu0.b32.cont [10/16] 0.0, 128
  %2274 = vxpose.xlu0.b32.cont [11/16] 0.0, 128
  %2275 = vxpose.xlu0.b32.cont [12/16] 0.0, 128
  %2276 = vxpose.xlu0.b32.cont [13/16] 0.0, 128
  %2277 = vxpose.xlu0.b32.cont [14/16] 0.0, 128
  %2278 = vxpose.xlu0.b32.cont [15/16] 0.0, 128
  %2279 = vxpose.xlu0.b32.end [16/16] 0.0, 128
  %v2280 = vpop.trf.xlu0
  %v2281 = vpop.trf.xlu0
  %v2282 = vpop.trf.xlu0
  %v2283 = vpop.trf.xlu0
  %v2284 = vpop.trf.xlu0
  %v2285 = vpop.trf.xlu0
  %v2286 = vpop.trf.xlu0
  %v2287 = vpop.trf.xlu0
  %v2288 = vpop.trf.xlu0
  %v2289 = vpop.trf.xlu0
  %v2290 = vpop.trf.xlu0
  %v2291 = vpop.trf.xlu0
  %v2292 = vpop.trf.xlu0
  %v2293 = vpop.trf.xlu0
  %v2294 = vpop.trf.xlu0
  %v2295 = vpop.trf.xlu0
  %2296 = vxpose.xlu0.b32.start [1/16] %v2032, 128
  %2297 = vxpose.xlu0.b32.cont [2/16] 0.0, 128
  %2298 = vxpose.xlu0.b32.cont [3/16] 0.0, 128
  %2299 = vxpose.xlu0.b32.cont [4/16] 0.0, 128
  %2300 = vxpose.xlu0.b32.cont [5/16] 0.0, 128
  %2301 = vxpose.xlu0.b32.cont [6/16] 0.0, 128
  %2302 = vxpose.xlu0.b32.cont [7/16] 0.0, 128
  %2303 = vxpose.xlu0.b32.cont [8/16] 0.0, 128
  %2304 = vxpose.xlu0.b32.cont [9/16] 0.0, 128
  %2305 = vxpose.xlu0.b32.cont [10/16] 0.0, 128
  %2306 = vxpose.xlu0.b32.cont [11/16] 0.0, 128
  %2307 = vxpose.xlu0.b32.cont [12/16] 0.0, 128
  %2308 = vxpose.xlu0.b32.cont [13/16] 0.0, 128
  %2309 = vxpose.xlu0.b32.cont [14/16] 0.0, 128
  %2310 = vxpose.xlu0.b32.cont [15/16] 0.0, 128
  %2311 = vxpose.xlu0.b32.end [16/16] 0.0, 128
  %v2312 = vpop.trf.xlu0
  %v2313 = vpop.trf.xlu0
  %v2314 = vpop.trf.xlu0
  %v2315 = vpop.trf.xlu0
  %v2316 = vpop.trf.xlu0
  %v2317 = vpop.trf.xlu0
  %v2318 = vpop.trf.xlu0
  %v2319 = vpop.trf.xlu0
  %v2320 = vpop.trf.xlu0
  %v2321 = vpop.trf.xlu0
  %v2322 = vpop.trf.xlu0
  %v2323 = vpop.trf.xlu0
  %v2324 = vpop.trf.xlu0
  %v2325 = vpop.trf.xlu0
  %v2326 = vpop.trf.xlu0
  %v2327 = vpop.trf.xlu0
  %2328 = vxpose.xlu0.b32.start [1/16] %v2033, 128
  %2329 = vxpose.xlu0.b32.cont [2/16] 0.0, 128
  %2330 = vxpose.xlu0.b32.cont [3/16] 0.0, 128
  %2331 = vxpose.xlu0.b32.cont [4/16] 0.0, 128
  %2332 = vxpose.xlu0.b32.cont [5/16] 0.0, 128
  %2333 = vxpose.xlu0.b32.cont [6/16] 0.0, 128
  %2334 = vxpose.xlu0.b32.cont [7/16] 0.0, 128
  %2335 = vxpose.xlu0.b32.cont [8/16] 0.0, 128
  %2336 = vxpose.xlu0.b32.cont [9/16] 0.0, 128
  %2337 = vxpose.xlu0.b32.cont [10/16] 0.0, 128
  %2338 = vxpose.xlu0.b32.cont [11/16] 0.0, 128
  %2339 = vxpose.xlu0.b32.cont [12/16] 0.0, 128
  %2340 = vxpose.xlu0.b32.cont [13/16] 0.0, 128
  %2341 = vxpose.xlu0.b32.cont [14/16] 0.0, 128
  %2342 = vxpose.xlu0.b32.cont [15/16] 0.0, 128
  %2343 = vxpose.xlu0.b32.end [16/16] 0.0, 128
  %v2344 = vpop.trf.xlu0
  %v2345 = vpop.trf.xlu0
  %v2346 = vpop.trf.xlu0
  %v2347 = vpop.trf.xlu0
  %v2348 = vpop.trf.xlu0
  %v2349 = vpop.trf.xlu0
  %v2350 = vpop.trf.xlu0
  %v2351 = vpop.trf.xlu0
  %v2352 = vpop.trf.xlu0
  %v2353 = vpop.trf.xlu0
  %v2354 = vpop.trf.xlu0
  %v2355 = vpop.trf.xlu0
  %v2356 = vpop.trf.xlu0
  %v2357 = vpop.trf.xlu0
  %v2358 = vpop.trf.xlu0
  %v2359 = vpop.trf.xlu0
  %2360 = vxpose.xlu0.b32.start [1/16] %v2034, 128
  %2361 = vxpose.xlu0.b32.cont [2/16] 0.0, 128
  %2362 = vxpose.xlu0.b32.cont [3/16] 0.0, 128
  %2363 = vxpose.xlu0.b32.cont [4/16] 0.0, 128
  %2364 = vxpose.xlu0.b32.cont [5/16] 0.0, 128
  %2365 = vxpose.xlu0.b32.cont [6/16] 0.0, 128
  %2366 = vxpose.xlu0.b32.cont [7/16] 0.0, 128
  %2367 = vxpose.xlu0.b32.cont [8/16] 0.0, 128
  %2368 = vxpose.xlu0.b32.cont [9/16] 0.0, 128
  %2369 = vxpose.xlu0.b32.cont [10/16] 0.0, 128
  %2370 = vxpose.xlu0.b32.cont [11/16] 0.0, 128
  %2371 = vxpose.xlu0.b32.cont [12/16] 0.0, 128
  %2372 = vxpose.xlu0.b32.cont [13/16] 0.0, 128
  %2373 = vxpose.xlu0.b32.cont [14/16] 0.0, 128
  %2374 = vxpose.xlu0.b32.cont [15/16] 0.0, 128
  %2375 = vxpose.xlu0.b32.end [16/16] 0.0, 128
  %v2376 = vpop.trf.xlu0
  %v2377 = vpop.trf.xlu0
  %v2378 = vpop.trf.xlu0
  %v2379 = vpop.trf.xlu0
  %v2380 = vpop.trf.xlu0
  %v2381 = vpop.trf.xlu0
  %v2382 = vpop.trf.xlu0
  %v2383 = vpop.trf.xlu0
  %v2384 = vpop.trf.xlu0
  %v2385 = vpop.trf.xlu0
  %v2386 = vpop.trf.xlu0
  %v2387 = vpop.trf.xlu0
  %v2388 = vpop.trf.xlu0
  %v2389 = vpop.trf.xlu0
  %v2390 = vpop.trf.xlu0
  %v2391 = vpop.trf.xlu0
  %2392 = vxpose.xlu0.b32.start [1/16] %v2035, 128
  %2393 = vxpose.xlu0.b32.cont [2/16] 0.0, 128
  %2394 = vxpose.xlu0.b32.cont [3/16] 0.0, 128
  %2395 = vxpose.xlu0.b32.cont [4/16] 0.0, 128
  %2396 = vxpose.xlu0.b32.cont [5/16] 0.0, 128
  %2397 = vxpose.xlu0.b32.cont [6/16] 0.0, 128
  %2398 = vxpose.xlu0.b32.cont [7/16] 0.0, 128
  %2399 = vxpose.xlu0.b32.cont [8/16] 0.0, 128
  %2400 = vxpose.xlu0.b32.cont [9/16] 0.0, 128
  %2401 = vxpose.xlu0.b32.cont [10/16] 0.0, 128
  %2402 = vxpose.xlu0.b32.cont [11/16] 0.0, 128
  %2403 = vxpose.xlu0.b32.cont [12/16] 0.0, 128
  %2404 = vxpose.xlu0.b32.cont [13/16] 0.0, 128
  %2405 = vxpose.xlu0.b32.cont [14/16] 0.0, 128
  %2406 = vxpose.xlu0.b32.cont [15/16] 0.0, 128
  %2407 = vxpose.xlu0.b32.end [16/16] 0.0, 128
  %v2408 = vpop.trf.xlu0
  %v2409 = vpop.trf.xlu0
  %v2410 = vpop.trf.xlu0
  %v2411 = vpop.trf.xlu0
  %v2412 = vpop.trf.xlu0
  %v2413 = vpop.trf.xlu0
  %v2414 = vpop.trf.xlu0
  %v2415 = vpop.trf.xlu0
  %v2416 = vpop.trf.xlu0
  %v2417 = vpop.trf.xlu0
  %v2418 = vpop.trf.xlu0
  %v2419 = vpop.trf.xlu0
  %v2420 = vpop.trf.xlu0
  %v2421 = vpop.trf.xlu0
  %v2422 = vpop.trf.xlu0
  %v2423 = vpop.trf.xlu0
  %2424 = vxpose.xlu0.b32.start [1/16] %v2036, 128
  %2425 = vxpose.xlu0.b32.cont [2/16] 0.0, 128
  %2426 = vxpose.xlu0.b32.cont [3/16] 0.0, 128
  %2427 = vxpose.xlu0.b32.cont [4/16] 0.0, 128
  %2428 = vxpose.xlu0.b32.cont [5/16] 0.0, 128
  %2429 = vxpose.xlu0.b32.cont [6/16] 0.0, 128
  %2430 = vxpose.xlu0.b32.cont [7/16] 0.0, 128
  %2431 = vxpose.xlu0.b32.cont [8/16] 0.0, 128
  %2432 = vxpose.xlu0.b32.cont [9/16] 0.0, 128
  %2433 = vxpose.xlu0.b32.cont [10/16] 0.0, 128
  %2434 = vxpose.xlu0.b32.cont [11/16] 0.0, 128
  %2435 = vxpose.xlu0.b32.cont [12/16] 0.0, 128
  %2436 = vxpose.xlu0.b32.cont [13/16] 0.0, 128
  %2437 = vxpose.xlu0.b32.cont [14/16] 0.0, 128
  %2438 = vxpose.xlu0.b32.cont [15/16] 0.0, 128
  %2439 = vxpose.xlu0.b32.end [16/16] 0.0, 128
  %v2440 = vpop.trf.xlu0
  %v2441 = vpop.trf.xlu0
  %v2442 = vpop.trf.xlu0
  %v2443 = vpop.trf.xlu0
  %v2444 = vpop.trf.xlu0
  %v2445 = vpop.trf.xlu0
  %v2446 = vpop.trf.xlu0
  %v2447 = vpop.trf.xlu0
  %v2448 = vpop.trf.xlu0
  %v2449 = vpop.trf.xlu0
  %v2450 = vpop.trf.xlu0
  %v2451 = vpop.trf.xlu0
  %v2452 = vpop.trf.xlu0
  %v2453 = vpop.trf.xlu0
  %v2454 = vpop.trf.xlu0
  %v2455 = vpop.trf.xlu0
  %2456 = vxpose.xlu0.b32.start [1/16] %v2037, 128
  %2457 = vxpose.xlu0.b32.cont [2/16] 0.0, 128
  %2458 = vxpose.xlu0.b32.cont [3/16] 0.0, 128
  %2459 = vxpose.xlu0.b32.cont [4/16] 0.0, 128
  %2460 = vxpose.xlu0.b32.cont [5/16] 0.0, 128
  %2461 = vxpose.xlu0.b32.cont [6/16] 0.0, 128
  %2462 = vxpose.xlu0.b32.cont [7/16] 0.0, 128
  %2463 = vxpose.xlu0.b32.cont [8/16] 0.0, 128
  %2464 = vxpose.xlu0.b32.cont [9/16] 0.0, 128
  %2465 = vxpose.xlu0.b32.cont [10/16] 0.0, 128
  %2466 = vxpose.xlu0.b32.cont [11/16] 0.0, 128
  %2467 = vxpose.xlu0.b32.cont [12/16] 0.0, 128
  %2468 = vxpose.xlu0.b32.cont [13/16] 0.0, 128
  %2469 = vxpose.xlu0.b32.cont [14/16] 0.0, 128
  %2470 = vxpose.xlu0.b32.cont [15/16] 0.0, 128
  %2471 = vxpose.xlu0.b32.end [16/16] 0.0, 128
  %v2472 = vpop.trf.xlu0
  %v2473 = vpop.trf.xlu0
  %v2474 = vpop.trf.xlu0
  %v2475 = vpop.trf.xlu0
  %v2476 = vpop.trf.xlu0
  %v2477 = vpop.trf.xlu0
  %v2478 = vpop.trf.xlu0
  %v2479 = vpop.trf.xlu0
  %v2480 = vpop.trf.xlu0
  %v2481 = vpop.trf.xlu0
  %v2482 = vpop.trf.xlu0
  %v2483 = vpop.trf.xlu0
  %v2484 = vpop.trf.xlu0
  %v2485 = vpop.trf.xlu0
  %v2486 = vpop.trf.xlu0
  %v2487 = vpop.trf.xlu0
  %2488 = vxpose.xlu0.b32.start [1/16] %v2038, 128
  %2489 = vxpose.xlu0.b32.cont [2/16] 0.0, 128
  %2490 = vxpose.xlu0.b32.cont [3/16] 0.0, 128
  %2491 = vxpose.xlu0.b32.cont [4/16] 0.0, 128
  %2492 = vxpose.xlu0.b32.cont [5/16] 0.0, 128
  %2493 = vxpose.xlu0.b32.cont [6/16] 0.0, 128
  %2494 = vxpose.xlu0.b32.cont [7/16] 0.0, 128
  %2495 = vxpose.xlu0.b32.cont [8/16] 0.0, 128
  %2496 = vxpose.xlu0.b32.cont [9/16] 0.0, 128
  %2497 = vxpose.xlu0.b32.cont [10/16] 0.0, 128
  %2498 = vxpose.xlu0.b32.cont [11/16] 0.0, 128
  %2499 = vxpose.xlu0.b32.cont [12/16] 0.0, 128
  %2500 = vxpose.xlu0.b32.cont [13/16] 0.0, 128
  %2501 = vxpose.xlu0.b32.cont [14/16] 0.0, 128
  %2502 = vxpose.xlu0.b32.cont [15/16] 0.0, 128
  %2503 = vxpose.xlu0.b32.end [16/16] 0.0, 128
  %v2504 = vpop.trf.xlu0
  %v2505 = vpop.trf.xlu0
  %v2506 = vpop.trf.xlu0
  %v2507 = vpop.trf.xlu0
  %v2508 = vpop.trf.xlu0
  %v2509 = vpop.trf.xlu0
  %v2510 = vpop.trf.xlu0
  %v2511 = vpop.trf.xlu0
  %v2512 = vpop.trf.xlu0
  %v2513 = vpop.trf.xlu0
  %v2514 = vpop.trf.xlu0
  %v2515 = vpop.trf.xlu0
  %v2516 = vpop.trf.xlu0
  %v2517 = vpop.trf.xlu0
  %v2518 = vpop.trf.xlu0
  %v2519 = vpop.trf.xlu0
  %2520 = vxpose.xlu0.b32.start [1/16] %v2039, 128
  %2521 = vxpose.xlu0.b32.cont [2/16] 0.0, 128
  %2522 = vxpose.xlu0.b32.cont [3/16] 0.0, 128
  %2523 = vxpose.xlu0.b32.cont [4/16] 0.0, 128
  %2524 = vxpose.xlu0.b32.cont [5/16] 0.0, 128
  %2525 = vxpose.xlu0.b32.cont [6/16] 0.0, 128
  %2526 = vxpose.xlu0.b32.cont [7/16] 0.0, 128
  %2527 = vxpose.xlu0.b32.cont [8/16] 0.0, 128
  %2528 = vxpose.xlu0.b32.cont [9/16] 0.0, 128
  %2529 = vxpose.xlu0.b32.cont [10/16] 0.0, 128
  %2530 = vxpose.xlu0.b32.cont [11/16] 0.0, 128
  %2531 = vxpose.xlu0.b32.cont [12/16] 0.0, 128
  %2532 = vxpose.xlu0.b32.cont [13/16] 0.0, 128
  %2533 = vxpose.xlu0.b32.cont [14/16] 0.0, 128
  %2534 = vxpose.xlu0.b32.cont [15/16] 0.0, 128
  %2535 = vxpose.xlu0.b32.end [16/16] 0.0, 128
  %v2536 = vpop.trf.xlu0
  %v2537 = vpop.trf.xlu0
  %v2538 = vpop.trf.xlu0
  %v2539 = vpop.trf.xlu0
  %v2540 = vpop.trf.xlu0
  %v2541 = vpop.trf.xlu0
  %v2542 = vpop.trf.xlu0
  %v2543 = vpop.trf.xlu0
  %v2544 = vpop.trf.xlu0
  %v2545 = vpop.trf.xlu0
  %v2546 = vpop.trf.xlu0
  %v2547 = vpop.trf.xlu0
  %v2548 = vpop.trf.xlu0
  %v2549 = vpop.trf.xlu0
  %v2550 = vpop.trf.xlu0
  %v2551 = vpop.trf.xlu0
  %vm2552 = vcmask 64512
  %2553 = vst.msk [vmem:[%s1] sm:$0xff] %vm2552, %v2056
  %2554 = vst.msk [vmem:[%s1 + $0x8] sm:$0xff] %vm2552, %v2057
  %2555 = vst.msk [vmem:[%s1 + $0x10] sm:$0xff] %vm2552, %v2058
  %2556 = vst.msk [vmem:[%s1 + $0x18] sm:$0xff] %vm2552, %v2059
  %2557 = vst.msk [vmem:[%s1 + $0x20] sm:$0xff] %vm2552, %v2060
  %2558 = vst.msk [vmem:[%s1 + $0x28] sm:$0xff] %vm2552, %v2061
  %2559 = vst.msk [vmem:[%s1 + $0x30] sm:$0xff] %vm2552, %v2062
  %2560 = vst.msk [vmem:[%s1 + $0x38] sm:$0xff] %vm2552, %v2063
  %2561 = vst.msk [vmem:[%s1 + $0x40] sm:$0xff] %vm2552, %v2064
  %2562 = vst.msk [vmem:[%s1 + $0x48] sm:$0xff] %vm2552, %v2065
  %2563 = vst.msk [vmem:[%s1 + $0x50] sm:$0xff] %vm2552, %v2066
  %2564 = vst.msk [vmem:[%s1 + $0x58] sm:$0xff] %vm2552, %v2067
  %2565 = vst.msk [vmem:[%s1 + $0x60] sm:$0xff] %vm2552, %v2068
  %2566 = vst.msk [vmem:[%s1 + $0x68] sm:$0xff] %vm2552, %v2069
  %2567 = vst.msk [vmem:[%s1 + $0x70] sm:$0xff] %vm2552, %v2070
  %2568 = vst.msk [vmem:[%s1 + $0x78] sm:$0xff] %vm2552, %v2071
  %2569 = vst.msk [vmem:[%s1 + $0x80] sm:$0xff] %vm2552, %v2088
  %2570 = vst.msk [vmem:[%s1 + $0x88] sm:$0xff] %vm2552, %v2089
  %2571 = vst.msk [vmem:[%s1 + $0x90] sm:$0xff] %vm2552, %v2090
  %2572 = vst.msk [vmem:[%s1 + $0x98] sm:$0xff] %vm2552, %v2091
  %2573 = vst.msk [vmem:[%s1 + $0xa0] sm:$0xff] %vm2552, %v2092
  %2574 = vst.msk [vmem:[%s1 + $0xa8] sm:$0xff] %vm2552, %v2093
  %2575 = vst.msk [vmem:[%s1 + $0xb0] sm:$0xff] %vm2552, %v2094
  %2576 = vst.msk [vmem:[%s1 + $0xb8] sm:$0xff] %vm2552, %v2095
  %2577 = vst.msk [vmem:[%s1 + $0xc0] sm:$0xff] %vm2552, %v2096
  %2578 = vst.msk [vmem:[%s1 + $0xc8] sm:$0xff] %vm2552, %v2097
  %2579 = vst.msk [vmem:[%s1 + $0xd0] sm:$0xff] %vm2552, %v2098
  %2580 = vst.msk [vmem:[%s1 + $0xd8] sm:$0xff] %vm2552, %v2099
  %2581 = vst.msk [vmem:[%s1 + $0xe0] sm:$0xff] %vm2552, %v2100
  %2582 = vst.msk [vmem:[%s1 + $0xe8] sm:$0xff] %vm2552, %v2101
  %2583 = vst.msk [vmem:[%s1 + $0xf0] sm:$0xff] %vm2552, %v2102
  %2584 = vst.msk [vmem:[%s1 + $0xf8] sm:$0xff] %vm2552, %v2103
  %2585 = vst.msk [vmem:[%s1 + $0x100] sm:$0xff] %vm2552, %v2120
  %2586 = vst.msk [vmem:[%s1 + $0x108] sm:$0xff] %vm2552, %v2121
  %2587 = vst.msk [vmem:[%s1 + $0x110] sm:$0xff] %vm2552, %v2122
  %2588 = vst.msk [vmem:[%s1 + $0x118] sm:$0xff] %vm2552, %v2123
  %2589 = vst.msk [vmem:[%s1 + $0x120] sm:$0xff] %vm2552, %v2124
  %2590 = vst.msk [vmem:[%s1 + $0x128] sm:$0xff] %vm2552, %v2125
  %2591 = vst.msk [vmem:[%s1 + $0x130] sm:$0xff] %vm2552, %v2126
  %2592 = vst.msk [vmem:[%s1 + $0x138] sm:$0xff] %vm2552, %v2127
  %2593 = vst.msk [vmem:[%s1 + $0x140] sm:$0xff] %vm2552, %v2128
  %2594 = vst.msk [vmem:[%s1 + $0x148] sm:$0xff] %vm2552, %v2129
  %2595 = vst.msk [vmem:[%s1 + $0x150] sm:$0xff] %vm2552, %v2130
  %2596 = vst.msk [vmem:[%s1 + $0x158] sm:$0xff] %vm2552, %v2131
  %2597 = vst.msk [vmem:[%s1 + $0x160] sm:$0xff] %vm2552, %v2132
  %2598 = vst.msk [vmem:[%s1 + $0x168] sm:$0xff] %vm2552, %v2133
  %2599 = vst.msk [vmem:[%s1 + $0x170] sm:$0xff] %vm2552, %v2134
  %2600 = vst.msk [vmem:[%s1 + $0x178] sm:$0xff] %vm2552, %v2135
  %2601 = vst.msk [vmem:[%s1 + $0x180] sm:$0xff] %vm2552, %v2152
  %2602 = vst.msk [vmem:[%s1 + $0x188] sm:$0xff] %vm2552, %v2153
  %2603 = vst.msk [vmem:[%s1 + $0x190] sm:$0xff] %vm2552, %v2154
  %2604 = vst.msk [vmem:[%s1 + $0x198] sm:$0xff] %vm2552, %v2155
  %2605 = vst.msk [vmem:[%s1 + $0x1a0] sm:$0xff] %vm2552, %v2156
  %2606 = vst.msk [vmem:[%s1 + $0x1a8] sm:$0xff] %vm2552, %v2157
  %2607 = vst.msk [vmem:[%s1 + $0x1b0] sm:$0xff] %vm2552, %v2158
  %2608 = vst.msk [vmem:[%s1 + $0x1b8] sm:$0xff] %vm2552, %v2159
  %2609 = vst.msk [vmem:[%s1 + $0x1c0] sm:$0xff] %vm2552, %v2160
  %2610 = vst.msk [vmem:[%s1 + $0x1c8] sm:$0xff] %vm2552, %v2161
  %2611 = vst.msk [vmem:[%s1 + $0x1d0] sm:$0xff] %vm2552, %v2162
  %2612 = vst.msk [vmem:[%s1 + $0x1d8] sm:$0xff] %vm2552, %v2163
  %2613 = vst.msk [vmem:[%s1 + $0x1e0] sm:$0xff] %vm2552, %v2164
  %2614 = vst.msk [vmem:[%s1 + $0x1e8] sm:$0xff] %vm2552, %v2165
  %2615 = vst.msk [vmem:[%s1 + $0x1f0] sm:$0xff] %vm2552, %v2166
  %2616 = vst.msk [vmem:[%s1 + $0x1f8] sm:$0xff] %vm2552, %v2167
  %2617 = vst.msk [vmem:[%s1 + $0x200] sm:$0xff] %vm2552, %v2184
  %2618 = vst.msk [vmem:[%s1 + $0x208] sm:$0xff] %vm2552, %v2185
  %2619 = vst.msk [vmem:[%s1 + $0x210] sm:$0xff] %vm2552, %v2186
  %2620 = vst.msk [vmem:[%s1 + $0x218] sm:$0xff] %vm2552, %v2187
  %2621 = vst.msk [vmem:[%s1 + $0x220] sm:$0xff] %vm2552, %v2188
  %2622 = vst.msk [vmem:[%s1 + $0x228] sm:$0xff] %vm2552, %v2189
  %2623 = vst.msk [vmem:[%s1 + $0x230] sm:$0xff] %vm2552, %v2190
  %2624 = vst.msk [vmem:[%s1 + $0x238] sm:$0xff] %vm2552, %v2191
  %2625 = vst.msk [vmem:[%s1 + $0x240] sm:$0xff] %vm2552, %v2192
  %2626 = vst.msk [vmem:[%s1 + $0x248] sm:$0xff] %vm2552, %v2193
  %2627 = vst.msk [vmem:[%s1 + $0x250] sm:$0xff] %vm2552, %v2194
  %2628 = vst.msk [vmem:[%s1 + $0x258] sm:$0xff] %vm2552, %v2195
  %2629 = vst.msk [vmem:[%s1 + $0x260] sm:$0xff] %vm2552, %v2196
  %2630 = vst.msk [vmem:[%s1 + $0x268] sm:$0xff] %vm2552, %v2197
  %2631 = vst.msk [vmem:[%s1 + $0x270] sm:$0xff] %vm2552, %v2198
  %2632 = vst.msk [vmem:[%s1 + $0x278] sm:$0xff] %vm2552, %v2199
  %2633 = vst.msk [vmem:[%s1 + $0x280] sm:$0xff] %vm2552, %v2216
  %2634 = vst.msk [vmem:[%s1 + $0x288] sm:$0xff] %vm2552, %v2217
  %2635 = vst.msk [vmem:[%s1 + $0x290] sm:$0xff] %vm2552, %v2218
  %2636 = vst.msk [vmem:[%s1 + $0x298] sm:$0xff] %vm2552, %v2219
  %2637 = vst.msk [vmem:[%s1 + $0x2a0] sm:$0xff] %vm2552, %v2220
  %2638 = vst.msk [vmem:[%s1 + $0x2a8] sm:$0xff] %vm2552, %v2221
  %2639 = vst.msk [vmem:[%s1 + $0x2b0] sm:$0xff] %vm2552, %v2222
  %2640 = vst.msk [vmem:[%s1 + $0x2b8] sm:$0xff] %vm2552, %v2223
  %2641 = vst.msk [vmem:[%s1 + $0x2c0] sm:$0xff] %vm2552, %v2224
  %2642 = vst.msk [vmem:[%s1 + $0x2c8] sm:$0xff] %vm2552, %v2225
  %2643 = vst.msk [vmem:[%s1 + $0x2d0] sm:$0xff] %vm2552, %v2226
  %2644 = vst.msk [vmem:[%s1 + $0x2d8] sm:$0xff] %vm2552, %v2227
  %2645 = vst.msk [vmem:[%s1 + $0x2e0] sm:$0xff] %vm2552, %v2228
  %2646 = vst.msk [vmem:[%s1 + $0x2e8] sm:$0xff] %vm2552, %v2229
  %2647 = vst.msk [vmem:[%s1 + $0x2f0] sm:$0xff] %vm2552, %v2230
  %2648 = vst.msk [vmem:[%s1 + $0x2f8] sm:$0xff] %vm2552, %v2231
  %2649 = vst.msk [vmem:[%s1 + $0x300] sm:$0xff] %vm2552, %v2248
  %2650 = vst.msk [vmem:[%s1 + $0x308] sm:$0xff] %vm2552, %v2249
  %2651 = vst.msk [vmem:[%s1 + $0x310] sm:$0xff] %vm2552, %v2250
  %2652 = vst.msk [vmem:[%s1 + $0x318] sm:$0xff] %vm2552, %v2251
  %2653 = vst.msk [vmem:[%s1 + $0x320] sm:$0xff] %vm2552, %v2252
  %2654 = vst.msk [vmem:[%s1 + $0x328] sm:$0xff] %vm2552, %v2253
  %2655 = vst.msk [vmem:[%s1 + $0x330] sm:$0xff] %vm2552, %v2254
  %2656 = vst.msk [vmem:[%s1 + $0x338] sm:$0xff] %vm2552, %v2255
  %2657 = vst.msk [vmem:[%s1 + $0x340] sm:$0xff] %vm2552, %v2256
  %2658 = vst.msk [vmem:[%s1 + $0x348] sm:$0xff] %vm2552, %v2257
  %2659 = vst.msk [vmem:[%s1 + $0x350] sm:$0xff] %vm2552, %v2258
  %2660 = vst.msk [vmem:[%s1 + $0x358] sm:$0xff] %vm2552, %v2259
  %2661 = vst.msk [vmem:[%s1 + $0x360] sm:$0xff] %vm2552, %v2260
  %2662 = vst.msk [vmem:[%s1 + $0x368] sm:$0xff] %vm2552, %v2261
  %2663 = vst.msk [vmem:[%s1 + $0x370] sm:$0xff] %vm2552, %v2262
  %2664 = vst.msk [vmem:[%s1 + $0x378] sm:$0xff] %vm2552, %v2263
  %2665 = vst.msk [vmem:[%s1 + $0x380] sm:$0xff] %vm2552, %v2280
  %2666 = vst.msk [vmem:[%s1 + $0x388] sm:$0xff] %vm2552, %v2281
  %2667 = vst.msk [vmem:[%s1 + $0x390] sm:$0xff] %vm2552, %v2282
  %2668 = vst.msk [vmem:[%s1 + $0x398] sm:$0xff] %vm2552, %v2283
  %2669 = vst.msk [vmem:[%s1 + $0x3a0] sm:$0xff] %vm2552, %v2284
  %2670 = vst.msk [vmem:[%s1 + $0x3a8] sm:$0xff] %vm2552, %v2285
  %2671 = vst.msk [vmem:[%s1 + $0x3b0] sm:$0xff] %vm2552, %v2286
  %2672 = vst.msk [vmem:[%s1 + $0x3b8] sm:$0xff] %vm2552, %v2287
  %2673 = vst.msk [vmem:[%s1 + $0x3c0] sm:$0xff] %vm2552, %v2288
  %2674 = vst.msk [vmem:[%s1 + $0x3c8] sm:$0xff] %vm2552, %v2289
  %2675 = vst.msk [vmem:[%s1 + $0x3d0] sm:$0xff] %vm2552, %v2290
  %2676 = vst.msk [vmem:[%s1 + $0x3d8] sm:$0xff] %vm2552, %v2291
  %2677 = vst.msk [vmem:[%s1 + $0x3e0] sm:$0xff] %vm2552, %v2292
  %2678 = vst.msk [vmem:[%s1 + $0x3e8] sm:$0xff] %vm2552, %v2293
  %2679 = vst.msk [vmem:[%s1 + $0x3f0] sm:$0xff] %vm2552, %v2294
  %2680 = vst.msk [vmem:[%s1 + $0x3f8] sm:$0xff] %vm2552, %v2295
  %2681 = vst.msk [vmem:[%s1 + $0x400] sm:$0xff] %vm2552, %v2312
  %2682 = vst.msk [vmem:[%s1 + $0x408] sm:$0xff] %vm2552, %v2313
  %2683 = vst.msk [vmem:[%s1 + $0x410] sm:$0xff] %vm2552, %v2314
  %2684 = vst.msk [vmem:[%s1 + $0x418] sm:$0xff] %vm2552, %v2315
  %2685 = vst.msk [vmem:[%s1 + $0x420] sm:$0xff] %vm2552, %v2316
  %2686 = vst.msk [vmem:[%s1 + $0x428] sm:$0xff] %vm2552, %v2317
  %2687 = vst.msk [vmem:[%s1 + $0x430] sm:$0xff] %vm2552, %v2318
  %2688 = vst.msk [vmem:[%s1 + $0x438] sm:$0xff] %vm2552, %v2319
  %2689 = vst.msk [vmem:[%s1 + $0x440] sm:$0xff] %vm2552, %v2320
  %2690 = vst.msk [vmem:[%s1 + $0x448] sm:$0xff] %vm2552, %v2321
  %2691 = vst.msk [vmem:[%s1 + $0x450] sm:$0xff] %vm2552, %v2322
  %2692 = vst.msk [vmem:[%s1 + $0x458] sm:$0xff] %vm2552, %v2323
  %2693 = vst.msk [vmem:[%s1 + $0x460] sm:$0xff] %vm2552, %v2324
  %2694 = vst.msk [vmem:[%s1 + $0x468] sm:$0xff] %vm2552, %v2325
  %2695 = vst.msk [vmem:[%s1 + $0x470] sm:$0xff] %vm2552, %v2326
  %2696 = vst.msk [vmem:[%s1 + $0x478] sm:$0xff] %vm2552, %v2327
  %2697 = vst.msk [vmem:[%s1 + $0x480] sm:$0xff] %vm2552, %v2344
  %2698 = vst.msk [vmem:[%s1 + $0x488] sm:$0xff] %vm2552, %v2345
  %2699 = vst.msk [vmem:[%s1 + $0x490] sm:$0xff] %vm2552, %v2346
  %2700 = vst.msk [vmem:[%s1 + $0x498] sm:$0xff] %vm2552, %v2347
  %2701 = vst.msk [vmem:[%s1 + $0x4a0] sm:$0xff] %vm2552, %v2348
  %2702 = vst.msk [vmem:[%s1 + $0x4a8] sm:$0xff] %vm2552, %v2349
  %2703 = vst.msk [vmem:[%s1 + $0x4b0] sm:$0xff] %vm2552, %v2350
  %2704 = vst.msk [vmem:[%s1 + $0x4b8] sm:$0xff] %vm2552, %v2351
  %2705 = vst.msk [vmem:[%s1 + $0x4c0] sm:$0xff] %vm2552, %v2352
  %2706 = vst.msk [vmem:[%s1 + $0x4c8] sm:$0xff] %vm2552, %v2353
  %2707 = vst.msk [vmem:[%s1 + $0x4d0] sm:$0xff] %vm2552, %v2354
  %2708 = vst.msk [vmem:[%s1 + $0x4d8] sm:$0xff] %vm2552, %v2355
  %2709 = vst.msk [vmem:[%s1 + $0x4e0] sm:$0xff] %vm2552, %v2356
  %2710 = vst.msk [vmem:[%s1 + $0x4e8] sm:$0xff] %vm2552, %v2357
  %2711 = vst.msk [vmem:[%s1 + $0x4f0] sm:$0xff] %vm2552, %v2358
  %2712 = vst.msk [vmem:[%s1 + $0x4f8] sm:$0xff] %vm2552, %v2359
  %2713 = vst.msk [vmem:[%s1 + $0x500] sm:$0xff] %vm2552, %v2376
  %2714 = vst.msk [vmem:[%s1 + $0x508] sm:$0xff] %vm2552, %v2377
  %2715 = vst.msk [vmem:[%s1 + $0x510] sm:$0xff] %vm2552, %v2378
  %2716 = vst.msk [vmem:[%s1 + $0x518] sm:$0xff] %vm2552, %v2379
  %2717 = vst.msk [vmem:[%s1 + $0x520] sm:$0xff] %vm2552, %v2380
  %2718 = vst.msk [vmem:[%s1 + $0x528] sm:$0xff] %vm2552, %v2381
  %2719 = vst.msk [vmem:[%s1 + $0x530] sm:$0xff] %vm2552, %v2382
  %2720 = vst.msk [vmem:[%s1 + $0x538] sm:$0xff] %vm2552, %v2383
  %2721 = vst.msk [vmem:[%s1 + $0x540] sm:$0xff] %vm2552, %v2384
  %2722 = vst.msk [vmem:[%s1 + $0x548] sm:$0xff] %vm2552, %v2385
  %2723 = vst.msk [vmem:[%s1 + $0x550] sm:$0xff] %vm2552, %v2386
  %2724 = vst.msk [vmem:[%s1 + $0x558] sm:$0xff] %vm2552, %v2387
  %2725 = vst.msk [vmem:[%s1 + $0x560] sm:$0xff] %vm2552, %v2388
  %2726 = vst.msk [vmem:[%s1 + $0x568] sm:$0xff] %vm2552, %v2389
  %2727 = vst.msk [vmem:[%s1 + $0x570] sm:$0xff] %vm2552, %v2390
  %2728 = vst.msk [vmem:[%s1 + $0x578] sm:$0xff] %vm2552, %v2391
  %2729 = vst.msk [vmem:[%s1 + $0x580] sm:$0xff] %vm2552, %v2408
  %2730 = vst.msk [vmem:[%s1 + $0x588] sm:$0xff] %vm2552, %v2409
  %2731 = vst.msk [vmem:[%s1 + $0x590] sm:$0xff] %vm2552, %v2410
  %2732 = vst.msk [vmem:[%s1 + $0x598] sm:$0xff] %vm2552, %v2411
  %2733 = vst.msk [vmem:[%s1 + $0x5a0] sm:$0xff] %vm2552, %v2412
  %2734 = vst.msk [vmem:[%s1 + $0x5a8] sm:$0xff] %vm2552, %v2413
  %2735 = vst.msk [vmem:[%s1 + $0x5b0] sm:$0xff] %vm2552, %v2414
  %2736 = vst.msk [vmem:[%s1 + $0x5b8] sm:$0xff] %vm2552, %v2415
  %2737 = vst.msk [vmem:[%s1 + $0x5c0] sm:$0xff] %vm2552, %v2416
  %2738 = vst.msk [vmem:[%s1 + $0x5c8] sm:$0xff] %vm2552, %v2417
  %2739 = vst.msk [vmem:[%s1 + $0x5d0] sm:$0xff] %vm2552, %v2418
  %2740 = vst.msk [vmem:[%s1 + $0x5d8] sm:$0xff] %vm2552, %v2419
  %2741 = vst.msk [vmem:[%s1 + $0x5e0] sm:$0xff] %vm2552, %v2420
  %2742 = vst.msk [vmem:[%s1 + $0x5e8] sm:$0xff] %vm2552, %v2421
  %2743 = vst.msk [vmem:[%s1 + $0x5f0] sm:$0xff] %vm2552, %v2422
  %2744 = vst.msk [vmem:[%s1 + $0x5f8] sm:$0xff] %vm2552, %v2423
  %2745 = vst.msk [vmem:[%s1 + $0x600] sm:$0xff] %vm2552, %v2440
  %2746 = vst.msk [vmem:[%s1 + $0x608] sm:$0xff] %vm2552, %v2441
  %2747 = vst.msk [vmem:[%s1 + $0x610] sm:$0xff] %vm2552, %v2442
  %2748 = vst.msk [vmem:[%s1 + $0x618] sm:$0xff] %vm2552, %v2443
  %2749 = vst.msk [vmem:[%s1 + $0x620] sm:$0xff] %vm2552, %v2444
  %2750 = vst.msk [vmem:[%s1 + $0x628] sm:$0xff] %vm2552, %v2445
  %2751 = vst.msk [vmem:[%s1 + $0x630] sm:$0xff] %vm2552, %v2446
  %2752 = vst.msk [vmem:[%s1 + $0x638] sm:$0xff] %vm2552, %v2447
  %2753 = vst.msk [vmem:[%s1 + $0x640] sm:$0xff] %vm2552, %v2448
  %2754 = vst.msk [vmem:[%s1 + $0x648] sm:$0xff] %vm2552, %v2449
  %2755 = vst.msk [vmem:[%s1 + $0x650] sm:$0xff] %vm2552, %v2450
  %2756 = vst.msk [vmem:[%s1 + $0x658] sm:$0xff] %vm2552, %v2451
  %2757 = vst.msk [vmem:[%s1 + $0x660] sm:$0xff] %vm2552, %v2452
  %2758 = vst.msk [vmem:[%s1 + $0x668] sm:$0xff] %vm2552, %v2453
  %2759 = vst.msk [vmem:[%s1 + $0x670] sm:$0xff] %vm2552, %v2454
  %2760 = vst.msk [vmem:[%s1 + $0x678] sm:$0xff] %vm2552, %v2455
  %2761 = vst.msk [vmem:[%s1 + $0x680] sm:$0xff] %vm2552, %v2472
  %2762 = vst.msk [vmem:[%s1 + $0x688] sm:$0xff] %vm2552, %v2473
  %2763 = vst.msk [vmem:[%s1 + $0x690] sm:$0xff] %vm2552, %v2474
  %2764 = vst.msk [vmem:[%s1 + $0x698] sm:$0xff] %vm2552, %v2475
  %2765 = vst.msk [vmem:[%s1 + $0x6a0] sm:$0xff] %vm2552, %v2476
  %2766 = vst.msk [vmem:[%s1 + $0x6a8] sm:$0xff] %vm2552, %v2477
  %2767 = vst.msk [vmem:[%s1 + $0x6b0] sm:$0xff] %vm2552, %v2478
  %2768 = vst.msk [vmem:[%s1 + $0x6b8] sm:$0xff] %vm2552, %v2479
  %2769 = vst.msk [vmem:[%s1 + $0x6c0] sm:$0xff] %vm2552, %v2480
  %2770 = vst.msk [vmem:[%s1 + $0x6c8] sm:$0xff] %vm2552, %v2481
  %2771 = vst.msk [vmem:[%s1 + $0x6d0] sm:$0xff] %vm2552, %v2482
  %2772 = vst.msk [vmem:[%s1 + $0x6d8] sm:$0xff] %vm2552, %v2483
  %2773 = vst.msk [vmem:[%s1 + $0x6e0] sm:$0xff] %vm2552, %v2484
  %2774 = vst.msk [vmem:[%s1 + $0x6e8] sm:$0xff] %vm2552, %v2485
  %2775 = vst.msk [vmem:[%s1 + $0x6f0] sm:$0xff] %vm2552, %v2486
  %2776 = vst.msk [vmem:[%s1 + $0x6f8] sm:$0xff] %vm2552, %v2487
  %2777 = vst.msk [vmem:[%s1 + $0x700] sm:$0xff] %vm2552, %v2504
  %2778 = vst.msk [vmem:[%s1 + $0x708] sm:$0xff] %vm2552, %v2505
  %2779 = vst.msk [vmem:[%s1 + $0x710] sm:$0xff] %vm2552, %v2506
  %2780 = vst.msk [vmem:[%s1 + $0x718] sm:$0xff] %vm2552, %v2507
  %2781 = vst.msk [vmem:[%s1 + $0x720] sm:$0xff] %vm2552, %v2508
  %2782 = vst.msk [vmem:[%s1 + $0x728] sm:$0xff] %vm2552, %v2509
  %2783 = vst.msk [vmem:[%s1 + $0x730] sm:$0xff] %vm2552, %v2510
  %2784 = vst.msk [vmem:[%s1 + $0x738] sm:$0xff] %vm2552, %v2511
  %2785 = vst.msk [vmem:[%s1 + $0x740] sm:$0xff] %vm2552, %v2512
  %2786 = vst.msk [vmem:[%s1 + $0x748] sm:$0xff] %vm2552, %v2513
  %2787 = vst.msk [vmem:[%s1 + $0x750] sm:$0xff] %vm2552, %v2514
  %2788 = vst.msk [vmem:[%s1 + $0x758] sm:$0xff] %vm2552, %v2515
  %2789 = vst.msk [vmem:[%s1 + $0x760] sm:$0xff] %vm2552, %v2516
  %2790 = vst.msk [vmem:[%s1 + $0x768] sm:$0xff] %vm2552, %v2517
  %2791 = vst.msk [vmem:[%s1 + $0x770] sm:$0xff] %vm2552, %v2518
  %2792 = vst.msk [vmem:[%s1 + $0x778] sm:$0xff] %vm2552, %v2519
  %2793 = vst.msk [vmem:[%s1 + $0x780] sm:$0xff] %vm2552, %v2536
  %2794 = vst.msk [vmem:[%s1 + $0x788] sm:$0xff] %vm2552, %v2537
  %2795 = vst.msk [vmem:[%s1 + $0x790] sm:$0xff] %vm2552, %v2538
  %2796 = vst.msk [vmem:[%s1 + $0x798] sm:$0xff] %vm2552, %v2539
  %2797 = vst.msk [vmem:[%s1 + $0x7a0] sm:$0xff] %vm2552, %v2540
  %2798 = vst.msk [vmem:[%s1 + $0x7a8] sm:$0xff] %vm2552, %v2541
  %2799 = vst.msk [vmem:[%s1 + $0x7b0] sm:$0xff] %vm2552, %v2542
  %2800 = vst.msk [vmem:[%s1 + $0x7b8] sm:$0xff] %vm2552, %v2543
  %2801 = vst.msk [vmem:[%s1 + $0x7c0] sm:$0xff] %vm2552, %v2544
  %2802 = vst.msk [vmem:[%s1 + $0x7c8] sm:$0xff] %vm2552, %v2545
  %2803 = vst.msk [vmem:[%s1 + $0x7d0] sm:$0xff] %vm2552, %v2546
  %2804 = vst.msk [vmem:[%s1 + $0x7d8] sm:$0xff] %vm2552, %v2547
  %2805 = vst.msk [vmem:[%s1 + $0x7e0] sm:$0xff] %vm2552, %v2548
  %2806 = vst.msk [vmem:[%s1 + $0x7e8] sm:$0xff] %vm2552, %v2549
  %2807 = vst.msk [vmem:[%s1 + $0x7f0] sm:$0xff] %vm2552, %v2550
  %2808 = vst.msk [vmem:[%s1 + $0x7f8] sm:$0xff] %vm2552, %v2551
  // Predicated region
  $region6: #{_lif_fused.1} parent=0 // pred_check
    _
  $region7: #{_lif_fused.1} parent=0 // pred_check_branch
    %2810 = sbr.rel (0) target = $region9
  $region8: #{_lif_fused.1} parent=0 // pred_region
    _
  $region9: #{_lif_fused.1} parent=0 // pred_fallthru
    _
  // Predicated region
  $region10: #{_lif_fused.1} parent=0 // pred_check
    _
  $region11: #{_lif_fused.1} parent=0 // pred_check_branch
    %2812 = sbr.rel (0) target = $region13
  $region12: #{_lif_fused.1} parent=0 // pred_region
    _
  $region13: #{_lif_fused.1} parent=0 // pred_fallthru
    _

// kernel: _lif_tmajor.1
$region0: #{_lif_tmajor.1}
  #allocation0 [shape = 'u32[]', space=smem, size = 0x4, offset = 0x4, fixed_abs, tag = 'smem constant byte address 0x4 - core index']
  #allocation1 [shape = 'u32[72,128]{1,0:T(1,128)}', space=vmem, size = 0x9000, scoped, tag = 'internal scratch']
  %s0 = inlined_call_operand.vmem [shape: f32[8,16,128], index: 0, kind: input, shape index: {}]
  %s1 = inlined_call_operand.vmem [shape: f32[8,16,128], index: 1, kind: output, shape index: {}]
  %s2 = sld [smem:[#allocation0]]
  $region14: #{_lif_tmajor.1} parent=0
    _
  %s4 = ssub.s32 1, %s2
  %s5 = scalar_select 0, %s4, %s2
  // Predicated region
  $region2: #{_lif_tmajor.1} parent=0 // pred_check
    _
  $region3: #{_lif_tmajor.1} parent=0 // pred_check_branch
    %7 = sbr.rel (0) target = $region5
  $region4: #{_lif_tmajor.1} parent=0 // pred_region
    _
  $region5: #{_lif_tmajor.1} parent=0 // pred_fallthru
    _
  %v8 = vld [vmem:[%s0] sm:$0xff]
  %v9 = vld [vmem:[%s0 + $0x8] sm:$0xff]
  %v10 = vadd.f32 %v8, 0.0
  %v11 = vadd.f32 %v9, 0.0
  %v12 = vsub.f32 %v10, 1.0
  %v13 = vsub.f32 %v11, 1.0
  %vm14 = vcmp.ge.f32.partialorder %v12, 0.0
  %vm15 = vcmp.ge.f32.partialorder %v13, 0.0
  %v16 = vsel %vm14, 1, 0
  %v17 = vsel %vm15, 1, 0
  %v18 = vcvt.s32.f32 %v16
  %v19 = vcvt.s32.f32 %v17
  %20 = vst [vmem:[%s1] sm:$0xff] %v18
  %21 = vst [vmem:[%s1 + $0x8] sm:$0xff] %v19
  %v22 = vsub.f32 1.0, %v18
  %v23 = vsub.f32 1.0, %v19
  %v24 = vmul.f32 %v10, %v22
  %v25 = vmul.f32 %v11, %v23
  %v26 = vmul.f32 %v24, 0.5
  %v27 = vmul.f32 %v25, 0.5
  %s28 = scalar_lea.vmem %s0, 16
  %v29 = vld [vmem:[%s28] sm:$0xff]
  %v30 = vld [vmem:[%s28 + $0x8] sm:$0xff]
  %v31 = vadd.f32 %v26, %v29
  %v32 = vadd.f32 %v27, %v30
  %v33 = vsub.f32 %v31, 1.0
  %v34 = vsub.f32 %v32, 1.0
  %vm35 = vcmp.ge.f32.partialorder %v33, 0.0
  %vm36 = vcmp.ge.f32.partialorder %v34, 0.0
  %v37 = vsel %vm35, 1, 0
  %v38 = vsel %vm36, 1, 0
  %v39 = vcvt.s32.f32 %v37
  %v40 = vcvt.s32.f32 %v38
  %s41 = scalar_lea.vmem %s1, 16
  %42 = vst [vmem:[%s41] sm:$0xff] %v39
  %43 = vst [vmem:[%s41 + $0x8] sm:$0xff] %v40
  %v44 = vsub.f32 1.0, %v39
  %v45 = vsub.f32 1.0, %v40
  %v46 = vmul.f32 %v31, %v44
  %v47 = vmul.f32 %v32, %v45
  %v48 = vmul.f32 %v46, 0.5
  %v49 = vmul.f32 %v47, 0.5
  %s50 = scalar_lea.vmem %s0, 32
  %v51 = vld [vmem:[%s50] sm:$0xff]
  %v52 = vld [vmem:[%s50 + $0x8] sm:$0xff]
  %v53 = vadd.f32 %v48, %v51
  %v54 = vadd.f32 %v49, %v52
  %v55 = vsub.f32 %v53, 1.0
  %v56 = vsub.f32 %v54, 1.0
  %vm57 = vcmp.ge.f32.partialorder %v55, 0.0
  %vm58 = vcmp.ge.f32.partialorder %v56, 0.0
  %v59 = vsel %vm57, 1, 0
  %v60 = vsel %vm58, 1, 0
  %v61 = vcvt.s32.f32 %v59
  %v62 = vcvt.s32.f32 %v60
  %s63 = scalar_lea.vmem %s1, 32
  %64 = vst [vmem:[%s63] sm:$0xff] %v61
  %65 = vst [vmem:[%s63 + $0x8] sm:$0xff] %v62
  %v66 = vsub.f32 1.0, %v61
  %v67 = vsub.f32 1.0, %v62
  %v68 = vmul.f32 %v53, %v66
  %v69 = vmul.f32 %v54, %v67
  %v70 = vmul.f32 %v68, 0.5
  %v71 = vmul.f32 %v69, 0.5
  %s72 = scalar_lea.vmem %s0, 48
  %v73 = vld [vmem:[%s72] sm:$0xff]
  %v74 = vld [vmem:[%s72 + $0x8] sm:$0xff]
  %v75 = vadd.f32 %v70, %v73
  %v76 = vadd.f32 %v71, %v74
  %v77 = vsub.f32 %v75, 1.0
  %v78 = vsub.f32 %v76, 1.0
  %vm79 = vcmp.ge.f32.partialorder %v77, 0.0
  %vm80 = vcmp.ge.f32.partialorder %v78, 0.0
  %v81 = vsel %vm79, 1, 0
  %v82 = vsel %vm80, 1, 0
  %v83 = vcvt.s32.f32 %v81
  %v84 = vcvt.s32.f32 %v82
  %s85 = scalar_lea.vmem %s1, 48
  %86 = vst [vmem:[%s85] sm:$0xff] %v83
  %87 = vst [vmem:[%s85 + $0x8] sm:$0xff] %v84
  %v88 = vsub.f32 1.0, %v83
  %v89 = vsub.f32 1.0, %v84
  %v90 = vmul.f32 %v75, %v88
  %v91 = vmul.f32 %v76, %v89
  %v92 = vmul.f32 %v90, 0.5
  %v93 = vmul.f32 %v91, 0.5
  %s94 = scalar_lea.vmem %s0, 64
  %v95 = vld [vmem:[%s94] sm:$0xff]
  %v96 = vld [vmem:[%s94 + $0x8] sm:$0xff]
  %v97 = vadd.f32 %v92, %v95
  %v98 = vadd.f32 %v93, %v96
  %v99 = vsub.f32 %v97, 1.0
  %v100 = vsub.f32 %v98, 1.0
  %vm101 = vcmp.ge.f32.partialorder %v99, 0.0
  %vm102 = vcmp.ge.f32.partialorder %v100, 0.0
  %v103 = vsel %vm101, 1, 0
  %v104 = vsel %vm102, 1, 0
  %v105 = vcvt.s32.f32 %v103
  %v106 = vcvt.s32.f32 %v104
  %s107 = scalar_lea.vmem %s1, 64
  %108 = vst [vmem:[%s107] sm:$0xff] %v105
  %109 = vst [vmem:[%s107 + $0x8] sm:$0xff] %v106
  %v110 = vsub.f32 1.0, %v105
  %v111 = vsub.f32 1.0, %v106
  %v112 = vmul.f32 %v97, %v110
  %v113 = vmul.f32 %v98, %v111
  %v114 = vmul.f32 %v112, 0.5
  %v115 = vmul.f32 %v113, 0.5
  %s116 = scalar_lea.vmem %s0, 80
  %v117 = vld [vmem:[%s116] sm:$0xff]
  %v118 = vld [vmem:[%s116 + $0x8] sm:$0xff]
  %v119 = vadd.f32 %v114, %v117
  %v120 = vadd.f32 %v115, %v118
  %v121 = vsub.f32 %v119, 1.0
  %v122 = vsub.f32 %v120, 1.0
  %vm123 = vcmp.ge.f32.partialorder %v121, 0.0
  %vm124 = vcmp.ge.f32.partialorder %v122, 0.0
  %v125 = vsel %vm123, 1, 0
  %v126 = vsel %vm124, 1, 0
  %v127 = vcvt.s32.f32 %v125
  %v128 = vcvt.s32.f32 %v126
  %s129 = scalar_lea.vmem %s1, 80
  %130 = vst [vmem:[%s129] sm:$0xff] %v127
  %131 = vst [vmem:[%s129 + $0x8] sm:$0xff] %v128
  %v132 = vsub.f32 1.0, %v127
  %v133 = vsub.f32 1.0, %v128
  %v134 = vmul.f32 %v119, %v132
  %v135 = vmul.f32 %v120, %v133
  %v136 = vmul.f32 %v134, 0.5
  %v137 = vmul.f32 %v135, 0.5
  %s138 = scalar_lea.vmem %s0, 96
  %v139 = vld [vmem:[%s138] sm:$0xff]
  %v140 = vld [vmem:[%s138 + $0x8] sm:$0xff]
  %v141 = vadd.f32 %v136, %v139
  %v142 = vadd.f32 %v137, %v140
  %v143 = vsub.f32 %v141, 1.0
  %v144 = vsub.f32 %v142, 1.0
  %vm145 = vcmp.ge.f32.partialorder %v143, 0.0
  %vm146 = vcmp.ge.f32.partialorder %v144, 0.0
  %v147 = vsel %vm145, 1, 0
  %v148 = vsel %vm146, 1, 0
  %v149 = vcvt.s32.f32 %v147
  %v150 = vcvt.s32.f32 %v148
  %s151 = scalar_lea.vmem %s1, 96
  %152 = vst [vmem:[%s151] sm:$0xff] %v149
  %153 = vst [vmem:[%s151 + $0x8] sm:$0xff] %v150
  %v154 = vsub.f32 1.0, %v149
  %v155 = vsub.f32 1.0, %v150
  %v156 = vmul.f32 %v141, %v154
  %v157 = vmul.f32 %v142, %v155
  %v158 = vmul.f32 %v156, 0.5
  %v159 = vmul.f32 %v157, 0.5
  %s160 = scalar_lea.vmem %s0, 112
  %v161 = vld [vmem:[%s160] sm:$0xff]
  %v162 = vld [vmem:[%s160 + $0x8] sm:$0xff]
  %v163 = vadd.f32 %v158, %v161
  %v164 = vadd.f32 %v159, %v162
  %v165 = vsub.f32 %v163, 1.0
  %v166 = vsub.f32 %v164, 1.0
  %vm167 = vcmp.ge.f32.partialorder %v165, 0.0
  %vm168 = vcmp.ge.f32.partialorder %v166, 0.0
  %v169 = vsel %vm167, 1, 0
  %v170 = vsel %vm168, 1, 0
  %v171 = vcvt.s32.f32 %v169
  %v172 = vcvt.s32.f32 %v170
  %s173 = scalar_lea.vmem %s1, 112
  %174 = vst [vmem:[%s173] sm:$0xff] %v171
  %175 = vst [vmem:[%s173 + $0x8] sm:$0xff] %v172
  // Predicated region
  $region6: #{_lif_tmajor.1} parent=0 // pred_check
    _
  $region7: #{_lif_tmajor.1} parent=0 // pred_check_branch
    %177 = sbr.rel (0) target = $region9
  $region8: #{_lif_tmajor.1} parent=0 // pred_region
    _
  $region9: #{_lif_tmajor.1} parent=0 // pred_fallthru
    _
  // Predicated region
  $region10: #{_lif_tmajor.1} parent=0 // pred_check
    _
  $region11: #{_lif_tmajor.1} parent=0 // pred_check_branch
    %179 = sbr.rel (0) target = $region13
  $region12: #{_lif_tmajor.1} parent=0 // pred_region
    _
  $region13: #{_lif_tmajor.1} parent=0 // pred_fallthru
    _

</llo_original>
